<compile_context>
chip_gen: v6e
topology: v6e:2x2x1
jax: 0.10.0
libtpu: 0.0.40
codegen_flags: <defaults>
</compile_context>

<pallas_src>
import jax
import jax.numpy as jnp
from jax.experimental import pallas as pl
from jax.experimental.pallas import tpu as pltpu


_LANE = 128      # pad hidden/output feature dims to a multiple of this
_SUBLANE = 8     # batch tiles must be a multiple of this


def _round_up(x, m):
    return ((x + m - 1) // m) * m


def _mlp_kernel(x_ref,
                w1, b1, w2, b2, w3, b3, w4, b4, w5, b5, w6, b6, w7, b7,
                o_ref):
    """Fused 7-layer MLP on one (TB, in_features) batch tile.

    x and weights are bf16 (MXU-native inputs), biases f32.  Dots accumulate
    in f32; bias add / ReLU are f32; hidden activations repack to bf16 once
    per layer before the next dot.
    """
    h = x_ref[...]                                       # bf16 (TB, F_in)
    hidden = ((w1, b1), (w2, b2), (w3, b3), (w4, b4), (w5, b5), (w6, b6))
    for w_ref, b_ref in hidden:
        a = jnp.dot(h, w_ref[...], preferred_element_type=jnp.float32)
        h = jnp.maximum(a + b_ref[...], 0.0).astype(jnp.bfloat16)
    out = jnp.dot(h, w7[...], preferred_element_type=jnp.float32) + b7[...]
    o_ref[...] = out.astype(o_ref.dtype)


def prepare_params(params):
    """Pad feature dims to lane multiples (input dim stays unpadded) and cast
    weights to bf16.  Call ONCE at parameter init — hoisted out of the
    forward path so no per-step XLA pad/cast over the whole model.

    params: list of 7 (W, b) pairs with W: (in, out), b: (out,).
    Returns (flat_padded_params, pdims).  Zero padding is exact: padded
    hidden columns stay 0 through bias+ReLU; padded output columns/rows are
    sliced off after the kernel.
    """
    dims = [params[0][0].shape[0]] + [w.shape[1] for w, _ in params]
    pdims = [dims[0]] + [_round_up(d, _LANE) for d in dims[1:]]
    flat = []
    for li, (w, b) in enumerate(params):
        wp = jnp.zeros((pdims[li], pdims[li + 1]), jnp.float32)
        wp = wp.at[:w.shape[0], :w.shape[1]].set(w).astype(jnp.bfloat16)
        bp = jnp.zeros((1, pdims[li + 1]), jnp.float32)
        bp = bp.at[0, :b.shape[0]].set(b)
        flat += [wp, bp]
    return flat, pdims


def _build_specs(tb, pdims, single_buffer_weights):
    # Constant block index for every grid step -> weights/biases stay resident
    # in VMEM across the whole batch grid (no re-DMA).  Buffered(1): a block
    # that is never re-fetched does not need a second buffer.
    const_kwargs = (dict(pipeline_mode=pl.Buffered(1))
                    if single_buffer_weights else {})
    in_specs = [pl.BlockSpec((tb, pdims[0]), lambda i: (i, 0))]
    for li in range(len(pdims) - 1):
        in_specs += [
            pl.BlockSpec((pdims[li], pdims[li + 1]), lambda i: (0, 0),
                         **const_kwargs),
            pl.BlockSpec((1, pdims[li + 1]), lambda i: (0, 0),
                         **const_kwargs),
        ]
    out_specs = pl.BlockSpec((tb, pdims[-1]), lambda i: (i, 0))
    return in_specs, out_specs


def mlp_forward(x, flat_params, pdims, num_classes, *, batch_block=512):
    """x: (batch, input_size) f32/bf16; flat_params/pdims from prepare_params."""
    batch, in_features = x.shape
    assert in_features == pdims[0]
    n_layers = len(pdims) - 1

    # ---- batch tiling: tb multiple of 8; >= 2 grid steps when batch allows
    # (v7x has two TensorCores that split a "parallel" grid axis). -----------
    tb = min(batch_block, _round_up(max(batch, 1), _SUBLANE))
    if batch > _SUBLANE and pl.cdiv(batch, tb) < 2:
        tb = max(_SUBLANE, _round_up(pl.cdiv(batch, 2), _SUBLANE))
    padded_batch = _round_up(batch, tb)
    grid = (padded_batch // tb,)

    # ---- x: the only per-step streamed operand -> bf16, pad batch rows -----
    xb = x.astype(jnp.bfloat16)
    if padded_batch != batch:
        xp = jnp.zeros((padded_batch, in_features), jnp.bfloat16)
        xp = xp.at[:batch].set(xb)
    else:
        xp = xb

    # ---- explicit VMEM budget ----------------------------------------------
    weight_bytes = sum(pdims[i] * pdims[i + 1] * 2 for i in range(n_layers))
    bias_bytes = sum(pdims[i + 1] * 4 for i in range(n_layers))
    x_tile_bytes = 2 * tb * pdims[0] * 2          # bf16, double-buffered
    out_tile_bytes = 2 * tb * pdims[-1] * 4       # f32, double-buffered
    act_bytes = 4 * tb * max(pdims[1:]) * 4       # intermediates (generous)
    vmem_need = (weight_bytes + bias_bytes + x_tile_bytes
                 + out_tile_bytes + act_bytes)
    vmem_limit = int(min(max(vmem_need * 1.25, 32 << 20), 128 << 20))
    # TODO(synk): on v7x (64 MiB VMEM/core) the all-weights-resident strategy
    # stops fitting once padded bf16 weights exceed ~48 MiB; in that regime
    # tile the output-feature dim per layer (or re-stream weights per tile).

    flops = int(2 * padded_batch
                * sum(pdims[i] * pdims[i + 1] for i in range(n_layers)))
    bytes_accessed = int(xp.size * 2 + weight_bytes + bias_bytes
                         + padded_batch * pdims[-1] * 4)

    def _call(single_buffer_weights):
        in_specs, out_specs = _build_specs(tb, pdims, single_buffer_weights)
        return pl.pallas_call(
            _mlp_kernel,
            out_shape=jax.ShapeDtypeStruct((padded_batch, pdims[-1]),
                                           jnp.float32),
            grid=grid,
            in_specs=in_specs,
            out_specs=out_specs,
            compiler_params=pltpu.CompilerParams(
                dimension_semantics=("parallel",),
                vmem_limit_bytes=vmem_limit),
            cost_estimate=pl.CostEstimate(flops=flops, transcendentals=0,
                                          bytes_accessed=bytes_accessed),
        )(xp, *flat_params)

    try:
        out_padded = _call(True)      # single-buffer the resident weights
    except Exception:
        # Fallback if this jax build rejects pipeline_mode on top-level specs:
        # identical kernel, default (double) buffering on the constant blocks.
        out_padded = _call(False)

    return out_padded[:batch, :num_classes]


def predict_proba(x, flat_params, pdims, num_classes):
    """Matches NeuralNet.predict_proba: softmax over the kernel logits."""
    return jax.nn.softmax(mlp_forward(x, flat_params, pdims, num_classes),
                          axis=1)


def init_linear_params(key, in_features, out_features):
    """Deterministic init mimicking nn.Linear (uniform +/- 1/sqrt(fan_in))."""
    kw, kb = jax.random.split(key)
    bound = 1.0 / jnp.sqrt(jnp.float32(in_features))
    # Stored as (in, out) == transpose of PyTorch's (out, in) weight.
    w = jax.random.uniform(kw, (in_features, out_features),
                           minval=-bound, maxval=bound, dtype=jnp.float32)
    b = jax.random.uniform(kb, (out_features,),
                           minval=-bound, maxval=bound, dtype=jnp.float32)
    return w, b


def reference_forward_f32(x, params):
    """Pure-JAX f32 reference of the PyTorch forward pass."""
    h = x
    for w, b in params[:-1]:
        h = jnp.maximum(h @ w + b, 0.0)
    w, b = params[-1]
    return h @ w + b


def reference_forward_bf16(x, params):
    """Pure-JAX reference matching the kernel's numerics exactly:
    bf16 dot inputs, f32 accumulation, f32 bias add / ReLU."""
    h = x.astype(jnp.float32)
    n = len(params)
    for idx, (w, b) in enumerate(params):
        a = jnp.dot(h.astype(jnp.bfloat16), w.astype(jnp.bfloat16),
                    preferred_element_type=jnp.float32) + b
        h = a if idx == n - 1 else jnp.maximum(a, 0.0)
    return h


if __name__ == "__main__":
    key = jax.random.PRNGKey(0)

    # Small but grid-exercising shapes consistent with the module's forward.
    batch = 512               # -> 2 batch tiles of 256 rows (grid=(2,))
    input_size = 32
    hidden_sizes = [32, 32, 32, 32, 32, 32]
    num_classes = 8
    dims = [input_size] + hidden_sizes + [num_classes]

    keys = jax.random.split(key, len(dims))  # 7 layer keys + 1 for x
    params = [init_linear_params(keys[i], dims[i], dims[i + 1])
              for i in range(len(dims) - 1)]
    x = jax.random.normal(keys[-1], (batch, input_size), dtype=jnp.float32)

    # Pad + bf16-cast the weights ONCE (hoisted out of the forward path).
    flat_params, pdims = prepare_params(params)

    out = jax.block_until_ready(mlp_forward(x, flat_params, pdims, num_classes))

    ref_match = reference_forward_bf16(x, params)
    ref_f32 = reference_forward_f32(x, params)
    assert out.shape == (batch, num_classes)
    assert jnp.allclose(out, ref_match, atol=1e-3, rtol=1e-3), \
        "mismatch vs bf16-matched reference"
    assert jnp.allclose(out, ref_f32, atol=1e-1, rtol=1e-1), \
        "mismatch vs f32 reference"

    print("KERNEL_OK")
</pallas_src>

<mosaic_0001>
module attributes {stable_mosaic.version = 11 : i64} {
  func.func @_mlp_kernel(%arg0: i32, %arg1: memref<256x32xbf16, #tpu.memory_space<vmem>>, %arg2: memref<32x128xbf16, #tpu.memory_space<vmem>>, %arg3: memref<1x128xf32, #tpu.memory_space<vmem>>, %arg4: memref<128x128xbf16, #tpu.memory_space<vmem>>, %arg5: memref<1x128xf32, #tpu.memory_space<vmem>>, %arg6: memref<128x128xbf16, #tpu.memory_space<vmem>>, %arg7: memref<1x128xf32, #tpu.memory_space<vmem>>, %arg8: memref<128x128xbf16, #tpu.memory_space<vmem>>, %arg9: memref<1x128xf32, #tpu.memory_space<vmem>>, %arg10: memref<128x128xbf16, #tpu.memory_space<vmem>>, %arg11: memref<1x128xf32, #tpu.memory_space<vmem>>, %arg12: memref<128x128xbf16, #tpu.memory_space<vmem>>, %arg13: memref<1x128xf32, #tpu.memory_space<vmem>>, %arg14: memref<128x128xbf16, #tpu.memory_space<vmem>>, %arg15: memref<1x128xf32, #tpu.memory_space<vmem>>, %arg16: memref<256x128xf32, #tpu.memory_space<vmem>>) attributes {dimension_semantics = [#tpu.dimension_semantics<parallel>], iteration_bounds = array<i64: 2>, scalar_prefetch = 0 : i64, scratch_operands = 0 : i64, tpu.core_type = #tpu.core_type<tc>, window_params = [{transform_indices = @transform_0, window_bounds = array<i64: 256, 32>}, {pipeline_mode = #tpu.pipeline_mode<synchronous>, transform_indices = @transform_1, window_bounds = array<i64: 32, 128>}, {pipeline_mode = #tpu.pipeline_mode<synchronous>, transform_indices = @transform_2, window_bounds = array<i64: 1, 128>}, {pipeline_mode = #tpu.pipeline_mode<synchronous>, transform_indices = @transform_3, window_bounds = array<i64: 128, 128>}, {pipeline_mode = #tpu.pipeline_mode<synchronous>, transform_indices = @transform_4, window_bounds = array<i64: 1, 128>}, {pipeline_mode = #tpu.pipeline_mode<synchronous>, transform_indices = @transform_5, window_bounds = array<i64: 128, 128>}, {pipeline_mode = #tpu.pipeline_mode<synchronous>, transform_indices = @transform_6, window_bounds = array<i64: 1, 128>}, {pipeline_mode = #tpu.pipeline_mode<synchronous>, transform_indices = @transform_7, window_bounds = array<i64: 128, 128>}, {pipeline_mode = #tpu.pipeline_mode<synchronous>, transform_indices = @transform_8, window_bounds = array<i64: 1, 128>}, {pipeline_mode = #tpu.pipeline_mode<synchronous>, transform_indices = @transform_9, window_bounds = array<i64: 128, 128>}, {pipeline_mode = #tpu.pipeline_mode<synchronous>, transform_indices = @transform_10, window_bounds = array<i64: 1, 128>}, {pipeline_mode = #tpu.pipeline_mode<synchronous>, transform_indices = @transform_11, window_bounds = array<i64: 128, 128>}, {pipeline_mode = #tpu.pipeline_mode<synchronous>, transform_indices = @transform_12, window_bounds = array<i64: 1, 128>}, {pipeline_mode = #tpu.pipeline_mode<synchronous>, transform_indices = @transform_13, window_bounds = array<i64: 128, 128>}, {pipeline_mode = #tpu.pipeline_mode<synchronous>, transform_indices = @transform_14, window_bounds = array<i64: 1, 128>}, {transform_indices = @transform_15, window_bounds = array<i64: 256, 128>}]} {
    %c0 = arith.constant 0 : index
    %c0_0 = arith.constant 0 : index
    %0 = vector.load %arg1[%c0, %c0_0] : memref<256x32xbf16, #tpu.memory_space<vmem>>, vector<256x32xbf16>
    %c0_1 = arith.constant 0 : index
    %c0_2 = arith.constant 0 : index
    %1 = vector.load %arg2[%c0_1, %c0_2] : memref<32x128xbf16, #tpu.memory_space<vmem>>, vector<32x128xbf16>
    %cst = arith.constant dense<0.000000e+00> : vector<256x128xf32>
    %2 = tpu.matmul %0, %1, %cst {dimension_numbers = #tpu.dot_dimension_numbers<[1], [0], [0], [1], [0, 0, 1, 1], [], []>} : vector<256x32xbf16>, vector<32x128xbf16>, vector<256x128xf32> -> vector<256x128xf32>
    %c0_3 = arith.constant 0 : index
    %c0_4 = arith.constant 0 : index
    %3 = vector.load %arg3[%c0_3, %c0_4] : memref<1x128xf32, #tpu.memory_space<vmem>>, vector<1x128xf32>
    %4 = vector.broadcast %3 : vector<1x128xf32> to vector<256x128xf32>
    %5 = arith.addf %2, %4 : vector<256x128xf32>
    %cst_5 = arith.constant 0.000000e+00 : f32
    %6 = vector.broadcast %cst_5 : f32 to vector<256x128xf32>
    %7 = arith.maximumf %5, %6 : vector<256x128xf32>
    %8 = arith.truncf %7 : vector<256x128xf32> to vector<256x128xbf16>
    %c0_6 = arith.constant 0 : index
    %c0_7 = arith.constant 0 : index
    %9 = vector.load %arg4[%c0_6, %c0_7] : memref<128x128xbf16, #tpu.memory_space<vmem>>, vector<128x128xbf16>
    %cst_8 = arith.constant dense<0.000000e+00> : vector<256x128xf32>
    %10 = tpu.matmul %8, %9, %cst_8 {dimension_numbers = #tpu.dot_dimension_numbers<[1], [0], [0], [1], [0, 0, 1, 1], [], []>} : vector<256x128xbf16>, vector<128x128xbf16>, vector<256x128xf32> -> vector<256x128xf32>
    %c0_9 = arith.constant 0 : index
    %c0_10 = arith.constant 0 : index
    %11 = vector.load %arg5[%c0_9, %c0_10] : memref<1x128xf32, #tpu.memory_space<vmem>>, vector<1x128xf32>
    %12 = vector.broadcast %11 : vector<1x128xf32> to vector<256x128xf32>
    %13 = arith.addf %10, %12 : vector<256x128xf32>
    %cst_11 = arith.constant 0.000000e+00 : f32
    %14 = vector.broadcast %cst_11 : f32 to vector<256x128xf32>
    %15 = arith.maximumf %13, %14 : vector<256x128xf32>
    %16 = arith.truncf %15 : vector<256x128xf32> to vector<256x128xbf16>
    %c0_12 = arith.constant 0 : index
    %c0_13 = arith.constant 0 : index
    %17 = vector.load %arg6[%c0_12, %c0_13] : memref<128x128xbf16, #tpu.memory_space<vmem>>, vector<128x128xbf16>
    %cst_14 = arith.constant dense<0.000000e+00> : vector<256x128xf32>
    %18 = tpu.matmul %16, %17, %cst_14 {dimension_numbers = #tpu.dot_dimension_numbers<[1], [0], [0], [1], [0, 0, 1, 1], [], []>} : vector<256x128xbf16>, vector<128x128xbf16>, vector<256x128xf32> -> vector<256x128xf32>
    %c0_15 = arith.constant 0 : index
    %c0_16 = arith.constant 0 : index
    %19 = vector.load %arg7[%c0_15, %c0_16] : memref<1x128xf32, #tpu.memory_space<vmem>>, vector<1x128xf32>
    %20 = vector.broadcast %19 : vector<1x128xf32> to vector<256x128xf32>
    %21 = arith.addf %18, %20 : vector<256x128xf32>
    %cst_17 = arith.constant 0.000000e+00 : f32
    %22 = vector.broadcast %cst_17 : f32 to vector<256x128xf32>
    %23 = arith.maximumf %21, %22 : vector<256x128xf32>
    %24 = arith.truncf %23 : vector<256x128xf32> to vector<256x128xbf16>
    %c0_18 = arith.constant 0 : index
    %c0_19 = arith.constant 0 : index
    %25 = vector.load %arg8[%c0_18, %c0_19] : memref<128x128xbf16, #tpu.memory_space<vmem>>, vector<128x128xbf16>
    %cst_20 = arith.constant dense<0.000000e+00> : vector<256x128xf32>
    %26 = tpu.matmul %24, %25, %cst_20 {dimension_numbers = #tpu.dot_dimension_numbers<[1], [0], [0], [1], [0, 0, 1, 1], [], []>} : vector<256x128xbf16>, vector<128x128xbf16>, vector<256x128xf32> -> vector<256x128xf32>
    %c0_21 = arith.constant 0 : index
    %c0_22 = arith.constant 0 : index
    %27 = vector.load %arg9[%c0_21, %c0_22] : memref<1x128xf32, #tpu.memory_space<vmem>>, vector<1x128xf32>
    %28 = vector.broadcast %27 : vector<1x128xf32> to vector<256x128xf32>
    %29 = arith.addf %26, %28 : vector<256x128xf32>
    %cst_23 = arith.constant 0.000000e+00 : f32
    %30 = vector.broadcast %cst_23 : f32 to vector<256x128xf32>
    %31 = arith.maximumf %29, %30 : vector<256x128xf32>
    %32 = arith.truncf %31 : vector<256x128xf32> to vector<256x128xbf16>
    %c0_24 = arith.constant 0 : index
    %c0_25 = arith.constant 0 : index
    %33 = vector.load %arg10[%c0_24, %c0_25] : memref<128x128xbf16, #tpu.memory_space<vmem>>, vector<128x128xbf16>
    %cst_26 = arith.constant dense<0.000000e+00> : vector<256x128xf32>
    %34 = tpu.matmul %32, %33, %cst_26 {dimension_numbers = #tpu.dot_dimension_numbers<[1], [0], [0], [1], [0, 0, 1, 1], [], []>} : vector<256x128xbf16>, vector<128x128xbf16>, vector<256x128xf32> -> vector<256x128xf32>
    %c0_27 = arith.constant 0 : index
    %c0_28 = arith.constant 0 : index
    %35 = vector.load %arg11[%c0_27, %c0_28] : memref<1x128xf32, #tpu.memory_space<vmem>>, vector<1x128xf32>
    %36 = vector.broadcast %35 : vector<1x128xf32> to vector<256x128xf32>
    %37 = arith.addf %34, %36 : vector<256x128xf32>
    %cst_29 = arith.constant 0.000000e+00 : f32
    %38 = vector.broadcast %cst_29 : f32 to vector<256x128xf32>
    %39 = arith.maximumf %37, %38 : vector<256x128xf32>
    %40 = arith.truncf %39 : vector<256x128xf32> to vector<256x128xbf16>
    %c0_30 = arith.constant 0 : index
    %c0_31 = arith.constant 0 : index
    %41 = vector.load %arg12[%c0_30, %c0_31] : memref<128x128xbf16, #tpu.memory_space<vmem>>, vector<128x128xbf16>
    %cst_32 = arith.constant dense<0.000000e+00> : vector<256x128xf32>
    %42 = tpu.matmul %40, %41, %cst_32 {dimension_numbers = #tpu.dot_dimension_numbers<[1], [0], [0], [1], [0, 0, 1, 1], [], []>} : vector<256x128xbf16>, vector<128x128xbf16>, vector<256x128xf32> -> vector<256x128xf32>
    %c0_33 = arith.constant 0 : index
    %c0_34 = arith.constant 0 : index
    %43 = vector.load %arg13[%c0_33, %c0_34] : memref<1x128xf32, #tpu.memory_space<vmem>>, vector<1x128xf32>
    %44 = vector.broadcast %43 : vector<1x128xf32> to vector<256x128xf32>
    %45 = arith.addf %42, %44 : vector<256x128xf32>
    %cst_35 = arith.constant 0.000000e+00 : f32
    %46 = vector.broadcast %cst_35 : f32 to vector<256x128xf32>
    %47 = arith.maximumf %45, %46 : vector<256x128xf32>
    %48 = arith.truncf %47 : vector<256x128xf32> to vector<256x128xbf16>
    %c0_36 = arith.constant 0 : index
    %c0_37 = arith.constant 0 : index
    %49 = vector.load %arg14[%c0_36, %c0_37] : memref<128x128xbf16, #tpu.memory_space<vmem>>, vector<128x128xbf16>
    %cst_38 = arith.constant dense<0.000000e+00> : vector<256x128xf32>
    %50 = tpu.matmul %48, %49, %cst_38 {dimension_numbers = #tpu.dot_dimension_numbers<[1], [0], [0], [1], [0, 0, 1, 1], [], []>} : vector<256x128xbf16>, vector<128x128xbf16>, vector<256x128xf32> -> vector<256x128xf32>
    %c0_39 = arith.constant 0 : index
    %c0_40 = arith.constant 0 : index
    %51 = vector.load %arg15[%c0_39, %c0_40] : memref<1x128xf32, #tpu.memory_space<vmem>>, vector<1x128xf32>
    %52 = vector.broadcast %51 : vector<1x128xf32> to vector<256x128xf32>
    %53 = arith.addf %50, %52 : vector<256x128xf32>
    %c0_41 = arith.constant 0 : index
    %c0_42 = arith.constant 0 : index
    %54 = vector.load %arg16[%c0_41, %c0_42] : memref<256x128xf32, #tpu.memory_space<vmem>>, vector<256x128xf32>
    tpu.vector_store %arg16[%c0_41, %c0_42], %53 {strides = array<i32>} : memref<256x128xf32, #tpu.memory_space<vmem>>, vector<256x128xf32>,
    return
  }
  func.func @transform_0(%arg0: i32) -> (i32, i32) {
    %c0_i32 = arith.constant 0 : i32
    %c0_i32_0 = arith.constant 0 : i32
    return %arg0, %c0_i32 : i32, i32
  }
  func.func @transform_1(%arg0: i32) -> (i32, i32) {
    %c0_i32 = arith.constant 0 : i32
    %c0_i32_0 = arith.constant 0 : i32
    %c0_i32_1 = arith.constant 0 : i32
    return %c0_i32, %c0_i32_0 : i32, i32
  }
  func.func @transform_2(%arg0: i32) -> (i32, i32) {
    %c0_i32 = arith.constant 0 : i32
    %c0_i32_0 = arith.constant 0 : i32
    %c0_i32_1 = arith.constant 0 : i32
    return %c0_i32, %c0_i32_0 : i32, i32
  }
  func.func @transform_3(%arg0: i32) -> (i32, i32) {
    %c0_i32 = arith.constant 0 : i32
    %c0_i32_0 = arith.constant 0 : i32
    %c0_i32_1 = arith.constant 0 : i32
    return %c0_i32, %c0_i32_0 : i32, i32
  }
  func.func @transform_4(%arg0: i32) -> (i32, i32) {
    %c0_i32 = arith.constant 0 : i32
    %c0_i32_0 = arith.constant 0 : i32
    %c0_i32_1 = arith.constant 0 : i32
    return %c0_i32, %c0_i32_0 : i32, i32
  }
  func.func @transform_5(%arg0: i32) -> (i32, i32) {
    %c0_i32 = arith.constant 0 : i32
    %c0_i32_0 = arith.constant 0 : i32
    %c0_i32_1 = arith.constant 0 : i32
    return %c0_i32, %c0_i32_0 : i32, i32
  }
  func.func @transform_6(%arg0: i32) -> (i32, i32) {
    %c0_i32 = arith.constant 0 : i32
    %c0_i32_0 = arith.constant 0 : i32
    %c0_i32_1 = arith.constant 0 : i32
    return %c0_i32, %c0_i32_0 : i32, i32
  }
  func.func @transform_7(%arg0: i32) -> (i32, i32) {
    %c0_i32 = arith.constant 0 : i32
    %c0_i32_0 = arith.constant 0 : i32
    %c0_i32_1 = arith.constant 0 : i32
    return %c0_i32, %c0_i32_0 : i32, i32
  }
  func.func @transform_8(%arg0: i32) -> (i32, i32) {
    %c0_i32 = arith.constant 0 : i32
    %c0_i32_0 = arith.constant 0 : i32
    %c0_i32_1 = arith.constant 0 : i32
    return %c0_i32, %c0_i32_0 : i32, i32
  }
  func.func @transform_9(%arg0: i32) -> (i32, i32) {
    %c0_i32 = arith.constant 0 : i32
    %c0_i32_0 = arith.constant 0 : i32
    %c0_i32_1 = arith.constant 0 : i32
    return %c0_i32, %c0_i32_0 : i32, i32
  }
  func.func @transform_10(%arg0: i32) -> (i32, i32) {
    %c0_i32 = arith.constant 0 : i32
    %c0_i32_0 = arith.constant 0 : i32
    %c0_i32_1 = arith.constant 0 : i32
    return %c0_i32, %c0_i32_0 : i32, i32
  }
  func.func @transform_11(%arg0: i32) -> (i32, i32) {
    %c0_i32 = arith.constant 0 : i32
    %c0_i32_0 = arith.constant 0 : i32
    %c0_i32_1 = arith.constant 0 : i32
    return %c0_i32, %c0_i32_0 : i32, i32
  }
  func.func @transform_12(%arg0: i32) -> (i32, i32) {
    %c0_i32 = arith.constant 0 : i32
    %c0_i32_0 = arith.constant 0 : i32
    %c0_i32_1 = arith.constant 0 : i32
    return %c0_i32, %c0_i32_0 : i32, i32
  }
  func.func @transform_13(%arg0: i32) -> (i32, i32) {
    %c0_i32 = arith.constant 0 : i32
    %c0_i32_0 = arith.constant 0 : i32
    %c0_i32_1 = arith.constant 0 : i32
    return %c0_i32, %c0_i32_0 : i32, i32
  }
  func.func @transform_14(%arg0: i32) -> (i32, i32) {
    %c0_i32 = arith.constant 0 : i32
    %c0_i32_0 = arith.constant 0 : i32
    %c0_i32_1 = arith.constant 0 : i32
    return %c0_i32, %c0_i32_0 : i32, i32
  }
  func.func @transform_15(%arg0: i32) -> (i32, i32) {
    %c0_i32 = arith.constant 0 : i32
    %c0_i32_0 = arith.constant 0 : i32
    return %arg0, %c0_i32 : i32, i32
  }
}

module attributes {stable_mosaic.version = 11 : i64} {
  func.func @_mlp_kernel(%arg0: i32, %arg1: memref<256x32xbf16, #tpu.memory_space<vmem>>, %arg2: memref<32x128xbf16, #tpu.memory_space<vmem>>, %arg3: memref<1x128xf32, #tpu.memory_space<vmem>>, %arg4: memref<128x128xbf16, #tpu.memory_space<vmem>>, %arg5: memref<1x128xf32, #tpu.memory_space<vmem>>, %arg6: memref<128x128xbf16, #tpu.memory_space<vmem>>, %arg7: memref<1x128xf32, #tpu.memory_space<vmem>>, %arg8: memref<128x128xbf16, #tpu.memory_space<vmem>>, %arg9: memref<1x128xf32, #tpu.memory_space<vmem>>, %arg10: memref<128x128xbf16, #tpu.memory_space<vmem>>, %arg11: memref<1x128xf32, #tpu.memory_space<vmem>>, %arg12: memref<128x128xbf16, #tpu.memory_space<vmem>>, %arg13: memref<1x128xf32, #tpu.memory_space<vmem>>, %arg14: memref<128x128xbf16, #tpu.memory_space<vmem>>, %arg15: memref<1x128xf32, #tpu.memory_space<vmem>>, %arg16: memref<256x128xf32, #tpu.memory_space<vmem>>) attributes {dimension_semantics = [#tpu.dimension_semantics<parallel>], iteration_bounds = array<i64: 2>, scalar_prefetch = 0 : i64, scratch_operands = 0 : i64, tpu.core_type = #tpu.core_type<tc>, window_params = [{transform_indices = @transform_0, window_bounds = array<i64: 256, 32>}, {pipeline_mode = #tpu.pipeline_mode<synchronous>, transform_indices = @transform_1, window_bounds = array<i64: 32, 128>}, {pipeline_mode = #tpu.pipeline_mode<synchronous>, transform_indices = @transform_2, window_bounds = array<i64: 1, 128>}, {pipeline_mode = #tpu.pipeline_mode<synchronous>, transform_indices = @transform_3, window_bounds = array<i64: 128, 128>}, {pipeline_mode = #tpu.pipeline_mode<synchronous>, transform_indices = @transform_4, window_bounds = array<i64: 1, 128>}, {pipeline_mode = #tpu.pipeline_mode<synchronous>, transform_indices = @transform_5, window_bounds = array<i64: 128, 128>}, {pipeline_mode = #tpu.pipeline_mode<synchronous>, transform_indices = @transform_6, window_bounds = array<i64: 1, 128>}, {pipeline_mode = #tpu.pipeline_mode<synchronous>, transform_indices = @transform_7, window_bounds = array<i64: 128, 128>}, {pipeline_mode = #tpu.pipeline_mode<synchronous>, transform_indices = @transform_8, window_bounds = array<i64: 1, 128>}, {pipeline_mode = #tpu.pipeline_mode<synchronous>, transform_indices = @transform_9, window_bounds = array<i64: 128, 128>}, {pipeline_mode = #tpu.pipeline_mode<synchronous>, transform_indices = @transform_10, window_bounds = array<i64: 1, 128>}, {pipeline_mode = #tpu.pipeline_mode<synchronous>, transform_indices = @transform_11, window_bounds = array<i64: 128, 128>}, {pipeline_mode = #tpu.pipeline_mode<synchronous>, transform_indices = @transform_12, window_bounds = array<i64: 1, 128>}, {pipeline_mode = #tpu.pipeline_mode<synchronous>, transform_indices = @transform_13, window_bounds = array<i64: 128, 128>}, {pipeline_mode = #tpu.pipeline_mode<synchronous>, transform_indices = @transform_14, window_bounds = array<i64: 1, 128>}, {transform_indices = @transform_15, window_bounds = array<i64: 256, 128>}]} {
    %c0 = arith.constant 0 : index
    %c0_0 = arith.constant 0 : index
    %0 = vector.load %arg1[%c0, %c0_0] : memref<256x32xbf16, #tpu.memory_space<vmem>>, vector<256x32xbf16>
    %c0_1 = arith.constant 0 : index
    %c0_2 = arith.constant 0 : index
    %1 = vector.load %arg2[%c0_1, %c0_2] : memref<32x128xbf16, #tpu.memory_space<vmem>>, vector<32x128xbf16>
    %cst = arith.constant dense<0.000000e+00> : vector<256x128xf32>
    %2 = tpu.matmul %0, %1, %cst {dimension_numbers = #tpu.dot_dimension_numbers<[1], [0], [0], [1], [0, 0, 1, 1], [], []>} : vector<256x32xbf16>, vector<32x128xbf16>, vector<256x128xf32> -> vector<256x128xf32>
    %c0_3 = arith.constant 0 : index
    %c0_4 = arith.constant 0 : index
    %3 = vector.load %arg3[%c0_3, %c0_4] : memref<1x128xf32, #tpu.memory_space<vmem>>, vector<1x128xf32>
    %4 = vector.broadcast %3 : vector<1x128xf32> to vector<256x128xf32>
    %5 = arith.addf %2, %4 : vector<256x128xf32>
    %cst_5 = arith.constant 0.000000e+00 : f32
    %6 = vector.broadcast %cst_5 : f32 to vector<256x128xf32>
    %7 = arith.maximumf %5, %6 : vector<256x128xf32>
    %8 = arith.truncf %7 : vector<256x128xf32> to vector<256x128xbf16>
    %c0_6 = arith.constant 0 : index
    %c0_7 = arith.constant 0 : index
    %9 = vector.load %arg4[%c0_6, %c0_7] : memref<128x128xbf16, #tpu.memory_space<vmem>>, vector<128x128xbf16>
    %cst_8 = arith.constant dense<0.000000e+00> : vector<256x128xf32>
    %10 = tpu.matmul %8, %9, %cst_8 {dimension_numbers = #tpu.dot_dimension_numbers<[1], [0], [0], [1], [0, 0, 1, 1], [], []>} : vector<256x128xbf16>, vector<128x128xbf16>, vector<256x128xf32> -> vector<256x128xf32>
    %c0_9 = arith.constant 0 : index
    %c0_10 = arith.constant 0 : index
    %11 = vector.load %arg5[%c0_9, %c0_10] : memref<1x128xf32, #tpu.memory_space<vmem>>, vector<1x128xf32>
    %12 = vector.broadcast %11 : vector<1x128xf32> to vector<256x128xf32>
    %13 = arith.addf %10, %12 : vector<256x128xf32>
    %cst_11 = arith.constant 0.000000e+00 : f32
    %14 = vector.broadcast %cst_11 : f32 to vector<256x128xf32>
    %15 = arith.maximumf %13, %14 : vector<256x128xf32>
    %16 = arith.truncf %15 : vector<256x128xf32> to vector<256x128xbf16>
    %c0_12 = arith.constant 0 : index
    %c0_13 = arith.constant 0 : index
    %17 = vector.load %arg6[%c0_12, %c0_13] : memref<128x128xbf16, #tpu.memory_space<vmem>>, vector<128x128xbf16>
    %cst_14 = arith.constant dense<0.000000e+00> : vector<256x128xf32>
    %18 = tpu.matmul %16, %17, %cst_14 {dimension_numbers = #tpu.dot_dimension_numbers<[1], [0], [0], [1], [0, 0, 1, 1], [], []>} : vector<256x128xbf16>, vector<128x128xbf16>, vector<256x128xf32> -> vector<256x128xf32>
    %c0_15 = arith.constant 0 : index
    %c0_16 = arith.constant 0 : index
    %19 = vector.load %arg7[%c0_15, %c0_16] : memref<1x128xf32, #tpu.memory_space<vmem>>, vector<1x128xf32>
    %20 = vector.broadcast %19 : vector<1x128xf32> to vector<256x128xf32>
    %21 = arith.addf %18, %20 : vector<256x128xf32>
    %cst_17 = arith.constant 0.000000e+00 : f32
    %22 = vector.broadcast %cst_17 : f32 to vector<256x128xf32>
    %23 = arith.maximumf %21, %22 : vector<256x128xf32>
    %24 = arith.truncf %23 : vector<256x128xf32> to vector<256x128xbf16>
    %c0_18 = arith.constant 0 : index
    %c0_19 = arith.constant 0 : index
    %25 = vector.load %arg8[%c0_18, %c0_19] : memref<128x128xbf16, #tpu.memory_space<vmem>>, vector<128x128xbf16>
    %cst_20 = arith.constant dense<0.000000e+00> : vector<256x128xf32>
    %26 = tpu.matmul %24, %25, %cst_20 {dimension_numbers = #tpu.dot_dimension_numbers<[1], [0], [0], [1], [0, 0, 1, 1], [], []>} : vector<256x128xbf16>, vector<128x128xbf16>, vector<256x128xf32> -> vector<256x128xf32>
    %c0_21 = arith.constant 0 : index
    %c0_22 = arith.constant 0 : index
    %27 = vector.load %arg9[%c0_21, %c0_22] : memref<1x128xf32, #tpu.memory_space<vmem>>, vector<1x128xf32>
    %28 = vector.broadcast %27 : vector<1x128xf32> to vector<256x128xf32>
    %29 = arith.addf %26, %28 : vector<256x128xf32>
    %cst_23 = arith.constant 0.000000e+00 : f32
    %30 = vector.broadcast %cst_23 : f32 to vector<256x128xf32>
    %31 = arith.maximumf %29, %30 : vector<256x128xf32>
    %32 = arith.truncf %31 : vector<256x128xf32> to vector<256x128xbf16>
    %c0_24 = arith.constant 0 : index
    %c0_25 = arith.constant 0 : index
    %33 = vector.load %arg10[%c0_24, %c0_25] : memref<128x128xbf16, #tpu.memory_space<vmem>>, vector<128x128xbf16>
    %cst_26 = arith.constant dense<0.000000e+00> : vector<256x128xf32>
    %34 = tpu.matmul %32, %33, %cst_26 {dimension_numbers = #tpu.dot_dimension_numbers<[1], [0], [0], [1], [0, 0, 1, 1], [], []>} : vector<256x128xbf16>, vector<128x128xbf16>, vector<256x128xf32> -> vector<256x128xf32>
    %c0_27 = arith.constant 0 : index
    %c0_28 = arith.constant 0 : index
    %35 = vector.load %arg11[%c0_27, %c0_28] : memref<1x128xf32, #tpu.memory_space<vmem>>, vector<1x128xf32>
    %36 = vector.broadcast %35 : vector<1x128xf32> to vector<256x128xf32>
    %37 = arith.addf %34, %36 : vector<256x128xf32>
    %cst_29 = arith.constant 0.000000e+00 : f32
    %38 = vector.broadcast %cst_29 : f32 to vector<256x128xf32>
    %39 = arith.maximumf %37, %38 : vector<256x128xf32>
    %40 = arith.truncf %39 : vector<256x128xf32> to vector<256x128xbf16>
    %c0_30 = arith.constant 0 : index
    %c0_31 = arith.constant 0 : index
    %41 = vector.load %arg12[%c0_30, %c0_31] : memref<128x128xbf16, #tpu.memory_space<vmem>>, vector<128x128xbf16>
    %cst_32 = arith.constant dense<0.000000e+00> : vector<256x128xf32>
    %42 = tpu.matmul %40, %41, %cst_32 {dimension_numbers = #tpu.dot_dimension_numbers<[1], [0], [0], [1], [0, 0, 1, 1], [], []>} : vector<256x128xbf16>, vector<128x128xbf16>, vector<256x128xf32> -> vector<256x128xf32>
    %c0_33 = arith.constant 0 : index
    %c0_34 = arith.constant 0 : index
    %43 = vector.load %arg13[%c0_33, %c0_34] : memref<1x128xf32, #tpu.memory_space<vmem>>, vector<1x128xf32>
    %44 = vector.broadcast %43 : vector<1x128xf32> to vector<256x128xf32>
    %45 = arith.addf %42, %44 : vector<256x128xf32>
    %cst_35 = arith.constant 0.000000e+00 : f32
    %46 = vector.broadcast %cst_35 : f32 to vector<256x128xf32>
    %47 = arith.maximumf %45, %46 : vector<256x128xf32>
    %48 = arith.truncf %47 : vector<256x128xf32> to vector<256x128xbf16>
    %c0_36 = arith.constant 0 : index
    %c0_37 = arith.constant 0 : index
    %49 = vector.load %arg14[%c0_36, %c0_37] : memref<128x128xbf16, #tpu.memory_space<vmem>>, vector<128x128xbf16>
    %cst_38 = arith.constant dense<0.000000e+00> : vector<256x128xf32>
    %50 = tpu.matmul %48, %49, %cst_38 {dimension_numbers = #tpu.dot_dimension_numbers<[1], [0], [0], [1], [0, 0, 1, 1], [], []>} : vector<256x128xbf16>, vector<128x128xbf16>, vector<256x128xf32> -> vector<256x128xf32>
    %c0_39 = arith.constant 0 : index
    %c0_40 = arith.constant 0 : index
    %51 = vector.load %arg15[%c0_39, %c0_40] : memref<1x128xf32, #tpu.memory_space<vmem>>, vector<1x128xf32>
    %52 = vector.broadcast %51 : vector<1x128xf32> to vector<256x128xf32>
    %53 = arith.addf %50, %52 : vector<256x128xf32>
    %c0_41 = arith.constant 0 : index
    %c0_42 = arith.constant 0 : index
    %54 = vector.load %arg16[%c0_41, %c0_42] : memref<256x128xf32, #tpu.memory_space<vmem>>, vector<256x128xf32>
    tpu.vector_store %arg16[%c0_41, %c0_42], %53 {strides = array<i32>} : memref<256x128xf32, #tpu.memory_space<vmem>>, vector<256x128xf32>,
    return
  }
  func.func @transform_0(%arg0: i32) -> (i32, i32) {
    %c0_i32 = arith.constant 0 : i32
    %c0_i32_0 = arith.constant 0 : i32
    return %arg0, %c0_i32 : i32, i32
  }
  func.func @transform_1(%arg0: i32) -> (i32, i32) {
    %c0_i32 = arith.constant 0 : i32
    %c0_i32_0 = arith.constant 0 : i32
    %c0_i32_1 = arith.constant 0 : i32
    return %c0_i32, %c0_i32_0 : i32, i32
  }
  func.func @transform_2(%arg0: i32) -> (i32, i32) {
    %c0_i32 = arith.constant 0 : i32
    %c0_i32_0 = arith.constant 0 : i32
    %c0_i32_1 = arith.constant 0 : i32
    return %c0_i32, %c0_i32_0 : i32, i32
  }
  func.func @transform_3(%arg0: i32) -> (i32, i32) {
    %c0_i32 = arith.constant 0 : i32
    %c0_i32_0 = arith.constant 0 : i32
    %c0_i32_1 = arith.constant 0 : i32
    return %c0_i32, %c0_i32_0 : i32, i32
  }
  func.func @transform_4(%arg0: i32) -> (i32, i32) {
    %c0_i32 = arith.constant 0 : i32
    %c0_i32_0 = arith.constant 0 : i32
    %c0_i32_1 = arith.constant 0 : i32
    return %c0_i32, %c0_i32_0 : i32, i32
  }
  func.func @transform_5(%arg0: i32) -> (i32, i32) {
    %c0_i32 = arith.constant 0 : i32
    %c0_i32_0 = arith.constant 0 : i32
    %c0_i32_1 = arith.constant 0 : i32
    return %c0_i32, %c0_i32_0 : i32, i32
  }
  func.func @transform_6(%arg0: i32) -> (i32, i32) {
    %c0_i32 = arith.constant 0 : i32
    %c0_i32_0 = arith.constant 0 : i32
    %c0_i32_1 = arith.constant 0 : i32
    return %c0_i32, %c0_i32_0 : i32, i32
  }
  func.func @transform_7(%arg0: i32) -> (i32, i32) {
    %c0_i32 = arith.constant 0 : i32
    %c0_i32_0 = arith.constant 0 : i32
    %c0_i32_1 = arith.constant 0 : i32
    return %c0_i32, %c0_i32_0 : i32, i32
  }
  func.func @transform_8(%arg0: i32) -> (i32, i32) {
    %c0_i32 = arith.constant 0 : i32
    %c0_i32_0 = arith.constant 0 : i32
    %c0_i32_1 = arith.constant 0 : i32
    return %c0_i32, %c0_i32_0 : i32, i32
  }
  func.func @transform_9(%arg0: i32) -> (i32, i32) {
    %c0_i32 = arith.constant 0 : i32
    %c0_i32_0 = arith.constant 0 : i32
    %c0_i32_1 = arith.constant 0 : i32
    return %c0_i32, %c0_i32_0 : i32, i32
  }
  func.func @transform_10(%arg0: i32) -> (i32, i32) {
    %c0_i32 = arith.constant 0 : i32
    %c0_i32_0 = arith.constant 0 : i32
    %c0_i32_1 = arith.constant 0 : i32
    return %c0_i32, %c0_i32_0 : i32, i32
  }
  func.func @transform_11(%arg0: i32) -> (i32, i32) {
    %c0_i32 = arith.constant 0 : i32
    %c0_i32_0 = arith.constant 0 : i32
    %c0_i32_1 = arith.constant 0 : i32
    return %c0_i32, %c0_i32_0 : i32, i32
  }
  func.func @transform_12(%arg0: i32) -> (i32, i32) {
    %c0_i32 = arith.constant 0 : i32
    %c0_i32_0 = arith.constant 0 : i32
    %c0_i32_1 = arith.constant 0 : i32
    return %c0_i32, %c0_i32_0 : i32, i32
  }
  func.func @transform_13(%arg0: i32) -> (i32, i32) {
    %c0_i32 = arith.constant 0 : i32
    %c0_i32_0 = arith.constant 0 : i32
    %c0_i32_1 = arith.constant 0 : i32
    return %c0_i32, %c0_i32_0 : i32, i32
  }
  func.func @transform_14(%arg0: i32) -> (i32, i32) {
    %c0_i32 = arith.constant 0 : i32
    %c0_i32_0 = arith.constant 0 : i32
    %c0_i32_1 = arith.constant 0 : i32
    return %c0_i32, %c0_i32_0 : i32, i32
  }
  func.func @transform_15(%arg0: i32) -> (i32, i32) {
    %c0_i32 = arith.constant 0 : i32
    %c0_i32_0 = arith.constant 0 : i32
    return %arg0, %c0_i32 : i32, i32
  }
}

</mosaic_0001>

<llo_original>
// kernel: tpu_custom_call.1
$region0: #{tpu_custom_call.1}
  #allocation0 [shape = 'u32[]', space=smem, size = 0x4, offset = 0x4, fixed_abs, tag = 'smem constant byte address 0x4 - core index']
  #allocation1 [shape = 'u32[144,128]{1,0:T(1,128)}', space=vmem, size = 0x12000, scoped, tag = 'internal scratch']
  %s0 = inlined_call_operand.vmem [shape: bf16[512,32], index: 0, kind: input, shape index: {}]
  %s1 = inlined_call_operand.hbm [shape: bf16[32,128], index: 1, kind: input, shape index: {}]
  %s2 = inlined_call_operand.vmem [shape: f32[1,128], index: 2, kind: input, shape index: {}]
  %s3 = inlined_call_operand.vmem [shape: bf16[128,128], index: 3, kind: input, shape index: {}]
  %s4 = inlined_call_operand.vmem [shape: f32[1,128], index: 4, kind: input, shape index: {}]
  %s5 = inlined_call_operand.vmem [shape: bf16[128,128], index: 5, kind: input, shape index: {}]
  %s6 = inlined_call_operand.vmem [shape: f32[1,128], index: 6, kind: input, shape index: {}]
  %s7 = inlined_call_operand.vmem [shape: bf16[128,128], index: 7, kind: input, shape index: {}]
  %s8 = inlined_call_operand.vmem [shape: f32[1,128], index: 8, kind: input, shape index: {}]
  %s9 = inlined_call_operand.vmem [shape: bf16[128,128], index: 9, kind: input, shape index: {}]
  %s10 = inlined_call_operand.vmem [shape: f32[1,128], index: 10, kind: input, shape index: {}]
  %s11 = inlined_call_operand.vmem [shape: bf16[128,128], index: 11, kind: input, shape index: {}]
  %s12 = inlined_call_operand.vmem [shape: f32[1,128], index: 12, kind: input, shape index: {}]
  %s13 = inlined_call_operand.hbm [shape: bf16[128,128], index: 13, kind: input, shape index: {}]
  %s14 = inlined_call_operand.vmem [shape: f32[1,128], index: 14, kind: input, shape index: {}]
  %s15 = inlined_call_operand.hbm [shape: f32[512,128], index: 15, kind: output, shape index: {}]
  %s16 = sld [smem:[#allocation0]]
  $region101: #{tpu_custom_call.1} parent=0
    _
  %s18 = ssub.s32 1, %s16
  %s19 = scalar_select 0, %s18, %s16
  $region1: #{tpu_custom_call.1} parent=0
    #allocation2 [shape = 'u8[8192]{0}', space=vmem, size = 0x2000, scoped, tag = 'input window, operand 1, single buffered']
    #allocation3 [shape = 's32[2]{0}', space=sflag, size = 0x8, scoped, tag = 'scoped memory for tpu_custom_call.1']
    #allocation4 [shape = 's32[2]{0}', space=sflag, size = 0x8, scoped, tag = 'scoped memory for tpu_custom_call.1']
    #allocation5 [shape = 'u8[32768]{0}', space=vmem, size = 0x8000, scoped, tag = 'input window, operand 13, single buffered']
    #allocation6 [shape = 's32[1]{0}', space=sflag, size = 0x4, scoped, tag = 'scoped memory for tpu_custom_call.1']
    #allocation7 [shape = 'u8[262144]{0}', space=vmem, size = 0x40000, scoped, tag = 'output window, operand 0']
    %20 = vsyncpa [#allocation3], 0
    %21 = vsyncpa [#allocation6], 0
    %22 = vsyncpa [#allocation4], 0
    %s23 = scalar_lea.sflag [#allocation4], 1
    %24 = vsyncpa %s23, 0
    loop: start=0, step=1, limit=4
    $region2: #{tpu_custom_call.1} parent=1 // loop_pre_header
      _
    $region3: #{tpu_custom_call.1} parent=1 // loop_header
      %s26 = sphi 0, %s30
      %p27 = scmp.ge.s32.totalorder %s26, 4
      %s36 = sphi 0, %s38
      %s39 = sphi 0, %s36
      %s40 = sphi 0, %s39
      %s56 = sphi 0, %s40
      %s60 = sphi 0, %s60
      %s62 = sphi 0, %s60
      %s63 = sphi 0, %s62
      %s77 = sphi 0, %s63
      %s81 = sphi 0, %s81
      %s83 = sphi 0, %s81
      %s84 = sphi 0, %s83
      %s98 = sphi 0, %s84
      %s102 = sphi 0, %s102
      %s104 = sphi 0, %s102
      %s105 = sphi 0, %s104
      %s119 = sphi 0, %s105
      %s123 = sphi 0, %s123
      %s125 = sphi 0, %s123
      %s126 = sphi 0, %s125
      %s140 = sphi 0, %s126
      %s144 = sphi 0, %s144
      %s146 = sphi 0, %s144
      %s147 = sphi 0, %s146
      %s161 = sphi 0, %s147
      %s165 = sphi 0, %s165
      %s167 = sphi 0, %s165
      %s168 = sphi 0, %s167
      %s182 = sphi 0, %s168
      %s186 = sphi 0, %s186
      %s188 = sphi 0, %s186
      %s189 = sphi 0, %s188
      %s203 = sphi 0, %s189
      %s207 = sphi 0, %s207
      %s209 = sphi 0, %s207
      %s210 = sphi 0, %s209
      %s224 = sphi 0, %s210
      %s228 = sphi 0, %s228
      %s230 = sphi 0, %s228
      %s231 = sphi 0, %s230
      %s245 = sphi 0, %s231
      %s249 = sphi 0, %s249
      %s251 = sphi 0, %s249
      %s252 = sphi 0, %s251
      %s266 = sphi 0, %s252
      %s270 = sphi 0, %s270
      %s272 = sphi 0, %s270
      %s273 = sphi 0, %s272
      %s287 = sphi 0, %s273
      %s291 = sphi 0, %s291
      %s293 = sphi 0, %s291
      %s294 = sphi 0, %s293
      %s308 = sphi 0, %s294
      %s312 = sphi 0, %s312
      %s314 = sphi 0, %s312
      %s315 = sphi 0, %s314
      %s329 = sphi 0, %s315
      %s333 = sphi 0, %s333
      %s335 = sphi 0, %s333
      %s336 = sphi 0, %s335
      %s350 = sphi 0, %s336
      %s356 = sphi 0, %s358
      %s359 = sphi 0, %s356
      %s360 = sphi 0, %s359
      %s376 = sphi 0, %s360
    $region4: #{tpu_custom_call.1} parent=1 // loop_header_branch
      %29 = sbr.rel (%p27) target = $region8
    $region5: #{tpu_custom_call.1} parent=1 // loop_body
      %s31 = ssub.s32 %s26, 1
      %s32 = ssub.s32 %s26, 2
      %s33 = sadd.s32 %s26, 1
      %s34 = ssub.s32 %s26, %s33
      %p35 = scmp.eq.s32.totalorder %s34, 0
      %s37 = sadd.s32 %s36, 1
      %s38 = scalar_select %p35, %s36, %s37
      %p41 = pneg %p35
      %p42 = scmp.eq.s32.totalorder %s26, 1
      %p43 = por %p41, %p42
      %p44 = scmp.ne.s32.totalorder %s36, %s39
      %p45 = scmp.eq.s32.totalorder %s26, 0
      %p46 = por %p44, %p45
      %p47 = scmp.ne.s32.totalorder %s36, %s39
      %p48 = scmp.eq.s32.totalorder %s31, 1
      %p49 = por %p47, %p48
      %p50 = scmp.ne.s32.totalorder %s39, %s40
      %p51 = scmp.eq.s32.totalorder %s31, 0
      %p52 = por %p50, %p51
      %p53 = scmp.ne.s32.totalorder %s39, %s40
      %p54 = scmp.eq.s32.totalorder %s32, 1
      %p55 = por %p53, %p54
      %p57 = scmp.ne.s32.totalorder %s40, %s56
      %p58 = scmp.eq.s32.totalorder %s32, 0
      %p59 = por %p57, %p58
      %s61 = sadd.s32 %s60, 1
      %p64 = scmp.eq.s32.totalorder %s26, 1
      %p65 = scmp.ne.s32.totalorder %s60, %s62
      %p66 = scmp.eq.s32.totalorder %s26, 0
      %p67 = por %p65, %p66
      %p68 = scmp.ne.s32.totalorder %s60, %s62
      %p69 = scmp.eq.s32.totalorder %s31, 1
      %p70 = por %p68, %p69
      %p71 = scmp.ne.s32.totalorder %s62, %s63
      %p72 = scmp.eq.s32.totalorder %s31, 0
      %p73 = por %p71, %p72
      %p74 = scmp.ne.s32.totalorder %s62, %s63
      %p75 = scmp.eq.s32.totalorder %s32, 1
      %p76 = por %p74, %p75
      %p78 = scmp.ne.s32.totalorder %s63, %s77
      %p79 = scmp.eq.s32.totalorder %s32, 0
      %p80 = por %p78, %p79
      %s82 = sadd.s32 %s81, 1
      %p85 = scmp.eq.s32.totalorder %s26, 1
      %p86 = scmp.ne.s32.totalorder %s81, %s83
      %p87 = scmp.eq.s32.totalorder %s26, 0
      %p88 = por %p86, %p87
      %p89 = scmp.ne.s32.totalorder %s81, %s83
      %p90 = scmp.eq.s32.totalorder %s31, 1
      %p91 = por %p89, %p90
      %p92 = scmp.ne.s32.totalorder %s83, %s84
      %p93 = scmp.eq.s32.totalorder %s31, 0
      %p94 = por %p92, %p93
      %p95 = scmp.ne.s32.totalorder %s83, %s84
      %p96 = scmp.eq.s32.totalorder %s32, 1
      %p97 = por %p95, %p96
      %p99 = scmp.ne.s32.totalorder %s84, %s98
      %p100 = scmp.eq.s32.totalorder %s32, 0
      %p101 = por %p99, %p100
      %s103 = sadd.s32 %s102, 1
      %p106 = scmp.eq.s32.totalorder %s26, 1
      %p107 = scmp.ne.s32.totalorder %s102, %s104
      %p108 = scmp.eq.s32.totalorder %s26, 0
      %p109 = por %p107, %p108
      %p110 = scmp.ne.s32.totalorder %s102, %s104
      %p111 = scmp.eq.s32.totalorder %s31, 1
      %p112 = por %p110, %p111
      %p113 = scmp.ne.s32.totalorder %s104, %s105
      %p114 = scmp.eq.s32.totalorder %s31, 0
      %p115 = por %p113, %p114
      %p116 = scmp.ne.s32.totalorder %s104, %s105
      %p117 = scmp.eq.s32.totalorder %s32, 1
      %p118 = por %p116, %p117
      %p120 = scmp.ne.s32.totalorder %s105, %s119
      %p121 = scmp.eq.s32.totalorder %s32, 0
      %p122 = por %p120, %p121
      %s124 = sadd.s32 %s123, 1
      %p127 = scmp.eq.s32.totalorder %s26, 1
      %p128 = scmp.ne.s32.totalorder %s123, %s125
      %p129 = scmp.eq.s32.totalorder %s26, 0
      %p130 = por %p128, %p129
      %p131 = scmp.ne.s32.totalorder %s123, %s125
      %p132 = scmp.eq.s32.totalorder %s31, 1
      %p133 = por %p131, %p132
      %p134 = scmp.ne.s32.totalorder %s125, %s126
      %p135 = scmp.eq.s32.totalorder %s31, 0
      %p136 = por %p134, %p135
      %p137 = scmp.ne.s32.totalorder %s125, %s126
      %p138 = scmp.eq.s32.totalorder %s32, 1
      %p139 = por %p137, %p138
      %p141 = scmp.ne.s32.totalorder %s126, %s140
      %p142 = scmp.eq.s32.totalorder %s32, 0
      %p143 = por %p141, %p142
      %s145 = sadd.s32 %s144, 1
      %p148 = scmp.eq.s32.totalorder %s26, 1
      %p149 = scmp.ne.s32.totalorder %s144, %s146
      %p150 = scmp.eq.s32.totalorder %s26, 0
      %p151 = por %p149, %p150
      %p152 = scmp.ne.s32.totalorder %s144, %s146
      %p153 = scmp.eq.s32.totalorder %s31, 1
      %p154 = por %p152, %p153
      %p155 = scmp.ne.s32.totalorder %s146, %s147
      %p156 = scmp.eq.s32.totalorder %s31, 0
      %p157 = por %p155, %p156
      %p158 = scmp.ne.s32.totalorder %s146, %s147
      %p159 = scmp.eq.s32.totalorder %s32, 1
      %p160 = por %p158, %p159
      %p162 = scmp.ne.s32.totalorder %s147, %s161
      %p163 = scmp.eq.s32.totalorder %s32, 0
      %p164 = por %p162, %p163
      %s166 = sadd.s32 %s165, 1
      %p169 = scmp.eq.s32.totalorder %s26, 1
      %p170 = scmp.ne.s32.totalorder %s165, %s167
      %p171 = scmp.eq.s32.totalorder %s26, 0
      %p172 = por %p170, %p171
      %p173 = scmp.ne.s32.totalorder %s165, %s167
      %p174 = scmp.eq.s32.totalorder %s31, 1
      %p175 = por %p173, %p174
      %p176 = scmp.ne.s32.totalorder %s167, %s168
      %p177 = scmp.eq.s32.totalorder %s31, 0
      %p178 = por %p176, %p177
      %p179 = scmp.ne.s32.totalorder %s167, %s168
      %p180 = scmp.eq.s32.totalorder %s32, 1
      %p181 = por %p179, %p180
      %p183 = scmp.ne.s32.totalorder %s168, %s182
      %p184 = scmp.eq.s32.totalorder %s32, 0
      %p185 = por %p183, %p184
      %s187 = sadd.s32 %s186, 1
      %p190 = scmp.eq.s32.totalorder %s26, 1
      %p191 = scmp.ne.s32.totalorder %s186, %s188
      %p192 = scmp.eq.s32.totalorder %s26, 0
      %p193 = por %p191, %p192
      %p194 = scmp.ne.s32.totalorder %s186, %s188
      %p195 = scmp.eq.s32.totalorder %s31, 1
      %p196 = por %p194, %p195
      %p197 = scmp.ne.s32.totalorder %s188, %s189
      %p198 = scmp.eq.s32.totalorder %s31, 0
      %p199 = por %p197, %p198
      %p200 = scmp.ne.s32.totalorder %s188, %s189
      %p201 = scmp.eq.s32.totalorder %s32, 1
      %p202 = por %p200, %p201
      %p204 = scmp.ne.s32.totalorder %s189, %s203
      %p205 = scmp.eq.s32.totalorder %s32, 0
      %p206 = por %p204, %p205
      %s208 = sadd.s32 %s207, 1
      %p211 = scmp.eq.s32.totalorder %s26, 1
      %p212 = scmp.ne.s32.totalorder %s207, %s209
      %p213 = scmp.eq.s32.totalorder %s26, 0
      %p214 = por %p212, %p213
      %p215 = scmp.ne.s32.totalorder %s207, %s209
      %p216 = scmp.eq.s32.totalorder %s31, 1
      %p217 = por %p215, %p216
      %p218 = scmp.ne.s32.totalorder %s209, %s210
      %p219 = scmp.eq.s32.totalorder %s31, 0
      %p220 = por %p218, %p219
      %p221 = scmp.ne.s32.totalorder %s209, %s210
      %p222 = scmp.eq.s32.totalorder %s32, 1
      %p223 = por %p221, %p222
      %p225 = scmp.ne.s32.totalorder %s210, %s224
      %p226 = scmp.eq.s32.totalorder %s32, 0
      %p227 = por %p225, %p226
      %s229 = sadd.s32 %s228, 1
      %p232 = scmp.eq.s32.totalorder %s26, 1
      %p233 = scmp.ne.s32.totalorder %s228, %s230
      %p234 = scmp.eq.s32.totalorder %s26, 0
      %p235 = por %p233, %p234
      %p236 = scmp.ne.s32.totalorder %s228, %s230
      %p237 = scmp.eq.s32.totalorder %s31, 1
      %p238 = por %p236, %p237
      %p239 = scmp.ne.s32.totalorder %s230, %s231
      %p240 = scmp.eq.s32.totalorder %s31, 0
      %p241 = por %p239, %p240
      %p242 = scmp.ne.s32.totalorder %s230, %s231
      %p243 = scmp.eq.s32.totalorder %s32, 1
      %p244 = por %p242, %p243
      %p246 = scmp.ne.s32.totalorder %s231, %s245
      %p247 = scmp.eq.s32.totalorder %s32, 0
      %p248 = por %p246, %p247
      %s250 = sadd.s32 %s249, 1
      %p253 = scmp.eq.s32.totalorder %s26, 1
      %p254 = scmp.ne.s32.totalorder %s249, %s251
      %p255 = scmp.eq.s32.totalorder %s26, 0
      %p256 = por %p254, %p255
      %p257 = scmp.ne.s32.totalorder %s249, %s251
      %p258 = scmp.eq.s32.totalorder %s31, 1
      %p259 = por %p257, %p258
      %p260 = scmp.ne.s32.totalorder %s251, %s252
      %p261 = scmp.eq.s32.totalorder %s31, 0
      %p262 = por %p260, %p261
      %p263 = scmp.ne.s32.totalorder %s251, %s252
      %p264 = scmp.eq.s32.totalorder %s32, 1
      %p265 = por %p263, %p264
      %p267 = scmp.ne.s32.totalorder %s252, %s266
      %p268 = scmp.eq.s32.totalorder %s32, 0
      %p269 = por %p267, %p268
      %s271 = sadd.s32 %s270, 1
      %p274 = scmp.eq.s32.totalorder %s26, 1
      %p275 = scmp.ne.s32.totalorder %s270, %s272
      %p276 = scmp.eq.s32.totalorder %s26, 0
      %p277 = por %p275, %p276
      %p278 = scmp.ne.s32.totalorder %s270, %s272
      %p279 = scmp.eq.s32.totalorder %s31, 1
      %p280 = por %p278, %p279
      %p281 = scmp.ne.s32.totalorder %s272, %s273
      %p282 = scmp.eq.s32.totalorder %s31, 0
      %p283 = por %p281, %p282
      %p284 = scmp.ne.s32.totalorder %s272, %s273
      %p285 = scmp.eq.s32.totalorder %s32, 1
      %p286 = por %p284, %p285
      %p288 = scmp.ne.s32.totalorder %s273, %s287
      %p289 = scmp.eq.s32.totalorder %s32, 0
      %p290 = por %p288, %p289
      %s292 = sadd.s32 %s291, 1
      %p295 = scmp.eq.s32.totalorder %s26, 1
      %p296 = scmp.ne.s32.totalorder %s291, %s293
      %p297 = scmp.eq.s32.totalorder %s26, 0
      %p298 = por %p296, %p297
      %p299 = scmp.ne.s32.totalorder %s291, %s293
      %p300 = scmp.eq.s32.totalorder %s31, 1
      %p301 = por %p299, %p300
      %p302 = scmp.ne.s32.totalorder %s293, %s294
      %p303 = scmp.eq.s32.totalorder %s31, 0
      %p304 = por %p302, %p303
      %p305 = scmp.ne.s32.totalorder %s293, %s294
      %p306 = scmp.eq.s32.totalorder %s32, 1
      %p307 = por %p305, %p306
      %p309 = scmp.ne.s32.totalorder %s294, %s308
      %p310 = scmp.eq.s32.totalorder %s32, 0
      %p311 = por %p309, %p310
      %s313 = sadd.s32 %s312, 1
      %p316 = scmp.eq.s32.totalorder %s26, 1
      %p317 = scmp.ne.s32.totalorder %s312, %s314
      %p318 = scmp.eq.s32.totalorder %s26, 0
      %p319 = por %p317, %p318
      %p320 = scmp.ne.s32.totalorder %s312, %s314
      %p321 = scmp.eq.s32.totalorder %s31, 1
      %p322 = por %p320, %p321
      %p323 = scmp.ne.s32.totalorder %s314, %s315
      %p324 = scmp.eq.s32.totalorder %s31, 0
      %p325 = por %p323, %p324
      %p326 = scmp.ne.s32.totalorder %s314, %s315
      %p327 = scmp.eq.s32.totalorder %s32, 1
      %p328 = por %p326, %p327
      %p330 = scmp.ne.s32.totalorder %s315, %s329
      %p331 = scmp.eq.s32.totalorder %s32, 0
      %p332 = por %p330, %p331
      %s334 = sadd.s32 %s333, 1
      %p337 = scmp.eq.s32.totalorder %s26, 1
      %p338 = scmp.ne.s32.totalorder %s333, %s335
      %p339 = scmp.eq.s32.totalorder %s26, 0
      %p340 = por %p338, %p339
      %p341 = scmp.ne.s32.totalorder %s333, %s335
      %p342 = scmp.eq.s32.totalorder %s31, 1
      %p343 = por %p341, %p342
      %p344 = scmp.ne.s32.totalorder %s335, %s336
      %p345 = scmp.eq.s32.totalorder %s31, 0
      %p346 = por %p344, %p345
      %p347 = scmp.ne.s32.totalorder %s335, %s336
      %p348 = scmp.eq.s32.totalorder %s32, 1
      %p349 = por %p347, %p348
      %p351 = scmp.ne.s32.totalorder %s336, %s350
      %p352 = scmp.eq.s32.totalorder %s32, 0
      %p353 = por %p351, %p352
      %s354 = ssub.s32 %s26, %s33
      %p355 = scmp.eq.s32.totalorder %s354, 0
      %s357 = sadd.s32 %s356, 1
      %s358 = scalar_select %p355, %s356, %s357
      %p361 = pneg %p355
      %p362 = scmp.eq.s32.totalorder %s26, 1
      %p363 = por %p361, %p362
      %p364 = scmp.ne.s32.totalorder %s356, %s359
      %p365 = scmp.eq.s32.totalorder %s26, 0
      %p366 = por %p364, %p365
      %p367 = scmp.ne.s32.totalorder %s356, %s359
      %p368 = scmp.eq.s32.totalorder %s31, 1
      %p369 = por %p367, %p368
      %p370 = scmp.ne.s32.totalorder %s359, %s360
      %p371 = scmp.eq.s32.totalorder %s31, 0
      %p372 = por %p370, %p371
      %p373 = scmp.ne.s32.totalorder %s359, %s360
      %p374 = scmp.eq.s32.totalorder %s32, 1
      %p375 = por %p373, %p374
      %p377 = scmp.ne.s32.totalorder %s360, %s376
      %p378 = scmp.eq.s32.totalorder %s32, 0
      %p379 = por %p377, %p378
      %p380 = scmp.le.s32.totalorder 1, %s26
      %p381 = scmp.lt.s32.totalorder %s26, 3
      %p382 = pnand %p380, %p381
      %p383 = pneg %p382
      // Predicated region
      $region9: #{tpu_custom_call.1} parent=5 // pred_check
        _
      $region10: #{tpu_custom_call.1} parent=5 // pred_check_branch
        %385 = sbr.rel (%p382) target = $region12
      $region11: #{tpu_custom_call.1} parent=5 // pred_region
        %s386 = ssub.s32 %s26, 1
        // Predicated region
        $region13: #{tpu_custom_call.1} parent=11 // pred_check
          %p387 = pneg %p73
        $region14: #{tpu_custom_call.1} parent=11 // pred_check_branch
          %389 = sbr.rel (%p387) target = $region16
        $region15: #{tpu_custom_call.1} parent=11 // pred_region
          %s391 = ssub.s32 256, 256
          %392 = vsyncadd [#allocation3], %s391
          %s393 = sshll.u32 [#allocation2], 4
          %s394 = int_to_ptr.vmem [resolvable:$true] %s393
          %399 = dma.hbm_to_vmem [thread:$0]  %s1, 256, %s394, [#allocation3], 64, 64, 4
        $region16: #{tpu_custom_call.1} parent=11 // pred_fallthru
          _
        // Predicated region
        $region17: #{tpu_custom_call.1} parent=11 // pred_check
          %p400 = pneg %p94
        $region18: #{tpu_custom_call.1} parent=11 // pred_check_branch
          %402 = sbr.rel (%p400) target = $region20
        $region19: #{tpu_custom_call.1} parent=11 // pred_region
          _
        $region20: #{tpu_custom_call.1} parent=11 // pred_fallthru
          _
        // Predicated region
        $region21: #{tpu_custom_call.1} parent=11 // pred_check
          %p403 = pneg %p115
        $region22: #{tpu_custom_call.1} parent=11 // pred_check_branch
          %405 = sbr.rel (%p403) target = $region24
        $region23: #{tpu_custom_call.1} parent=11 // pred_region
          _
        $region24: #{tpu_custom_call.1} parent=11 // pred_fallthru
          _
        // Predicated region
        $region25: #{tpu_custom_call.1} parent=11 // pred_check
          %p406 = pneg %p136
        $region26: #{tpu_custom_call.1} parent=11 // pred_check_branch
          %408 = sbr.rel (%p406) target = $region28
        $region27: #{tpu_custom_call.1} parent=11 // pred_region
          _
        $region28: #{tpu_custom_call.1} parent=11 // pred_fallthru
          _
        // Predicated region
        $region29: #{tpu_custom_call.1} parent=11 // pred_check
          %p409 = pneg %p157
        $region30: #{tpu_custom_call.1} parent=11 // pred_check_branch
          %411 = sbr.rel (%p409) target = $region32
        $region31: #{tpu_custom_call.1} parent=11 // pred_region
          _
        $region32: #{tpu_custom_call.1} parent=11 // pred_fallthru
          _
        // Predicated region
        $region33: #{tpu_custom_call.1} parent=11 // pred_check
          %p412 = pneg %p178
        $region34: #{tpu_custom_call.1} parent=11 // pred_check_branch
          %414 = sbr.rel (%p412) target = $region36
        $region35: #{tpu_custom_call.1} parent=11 // pred_region
          _
        $region36: #{tpu_custom_call.1} parent=11 // pred_fallthru
          _
        // Predicated region
        $region37: #{tpu_custom_call.1} parent=11 // pred_check
          %p415 = pneg %p199
        $region38: #{tpu_custom_call.1} parent=11 // pred_check_branch
          %417 = sbr.rel (%p415) target = $region40
        $region39: #{tpu_custom_call.1} parent=11 // pred_region
          _
        $region40: #{tpu_custom_call.1} parent=11 // pred_fallthru
          _
        // Predicated region
        $region41: #{tpu_custom_call.1} parent=11 // pred_check
          %p418 = pneg %p220
        $region42: #{tpu_custom_call.1} parent=11 // pred_check_branch
          %420 = sbr.rel (%p418) target = $region44
        $region43: #{tpu_custom_call.1} parent=11 // pred_region
          _
        $region44: #{tpu_custom_call.1} parent=11 // pred_fallthru
          _
        // Predicated region
        $region45: #{tpu_custom_call.1} parent=11 // pred_check
          %p421 = pneg %p241
        $region46: #{tpu_custom_call.1} parent=11 // pred_check_branch
          %423 = sbr.rel (%p421) target = $region48
        $region47: #{tpu_custom_call.1} parent=11 // pred_region
          _
        $region48: #{tpu_custom_call.1} parent=11 // pred_fallthru
          _
        // Predicated region
        $region49: #{tpu_custom_call.1} parent=11 // pred_check
          %p424 = pneg %p262
        $region50: #{tpu_custom_call.1} parent=11 // pred_check_branch
          %426 = sbr.rel (%p424) target = $region52
        $region51: #{tpu_custom_call.1} parent=11 // pred_region
          _
        $region52: #{tpu_custom_call.1} parent=11 // pred_fallthru
          _
        // Predicated region
        $region53: #{tpu_custom_call.1} parent=11 // pred_check
          %p427 = pneg %p283
        $region54: #{tpu_custom_call.1} parent=11 // pred_check_branch
          %429 = sbr.rel (%p427) target = $region56
        $region55: #{tpu_custom_call.1} parent=11 // pred_region
          _
        $region56: #{tpu_custom_call.1} parent=11 // pred_fallthru
          _
        // Predicated region
        $region57: #{tpu_custom_call.1} parent=11 // pred_check
          %p430 = pneg %p304
        $region58: #{tpu_custom_call.1} parent=11 // pred_check_branch
          %432 = sbr.rel (%p430) target = $region60
        $region59: #{tpu_custom_call.1} parent=11 // pred_region
          _
        $region60: #{tpu_custom_call.1} parent=11 // pred_fallthru
          _
        // Predicated region
        $region61: #{tpu_custom_call.1} parent=11 // pred_check
          %p433 = pneg %p325
        $region62: #{tpu_custom_call.1} parent=11 // pred_check_branch
          %435 = sbr.rel (%p433) target = $region64
        $region63: #{tpu_custom_call.1} parent=11 // pred_region
          %s437 = ssub.s32 1024, 1024
          %438 = vsyncadd [#allocation6], %s437
          %s439 = sshll.u32 [#allocation5], 4
          %s440 = int_to_ptr.vmem [resolvable:$true] %s439
          %445 = dma.hbm_to_vmem [thread:$0]  %s13, 1024, %s440, [#allocation6], 64, 64, 4
        $region64: #{tpu_custom_call.1} parent=11 // pred_fallthru
          _
        // Predicated region
        $region65: #{tpu_custom_call.1} parent=11 // pred_check
          %p446 = pneg %p346
        $region66: #{tpu_custom_call.1} parent=11 // pred_check_branch
          %448 = sbr.rel (%p446) target = $region68
        $region67: #{tpu_custom_call.1} parent=11 // pred_region
          _
        $region68: #{tpu_custom_call.1} parent=11 // pred_fallthru
          _
      $region12: #{tpu_custom_call.1} parent=5 // pred_fallthru
        _
      %p449 = scmp.lt.s32.totalorder %s26, 2
      // Predicated region
      $region69: #{tpu_custom_call.1} parent=5 // pred_check
        %p450 = pneg %p449
      $region70: #{tpu_custom_call.1} parent=5 // pred_check_branch
        %452 = sbr.rel (%p450) target = $region72
      $region71: #{tpu_custom_call.1} parent=5 // pred_region
        // Predicated region
        $region73: #{tpu_custom_call.1} parent=71 // pred_check
          %p453 = pneg %p46
        $region74: #{tpu_custom_call.1} parent=71 // pred_check_branch
          %455 = sbr.rel (%p453) target = $region76
        $region75: #{tpu_custom_call.1} parent=71 // pred_region
          %s456 = smul.u32 32, %s26
          %p457 = scmp.lt.s32.totalorder %s456, 63
          %s458 = scalar_select %p457, %s456, 63
          %s459 = smul.addr %s458, 4
          %s460 = scalar_lea.vmem %s0, %s459
          %s461 = smul.u32 32, %s26
        $region76: #{tpu_custom_call.1} parent=71 // pred_fallthru
          _
      $region72: #{tpu_custom_call.1} parent=5 // pred_fallthru
        _
      %p462 = scmp.le.s32.totalorder 1, %s26
      %p463 = scmp.lt.s32.totalorder %s26, 3
      %p464 = pnand %p462, %p463
      %p465 = pneg %p464
      // Predicated region
      $region77: #{tpu_custom_call.1} parent=5 // pred_check
        _
      $region78: #{tpu_custom_call.1} parent=5 // pred_check_branch
        %467 = sbr.rel (%p464) target = $region80
      $region79: #{tpu_custom_call.1} parent=5 // pred_region
        %s468 = ssub.s32 %s26, 1
        // Predicated region
        $region81: #{tpu_custom_call.1} parent=79 // pred_check
          %p469 = pneg %p73
        $region82: #{tpu_custom_call.1} parent=79 // pred_check_branch
          %471 = sbr.rel (%p469) target = $region84
        $region83: #{tpu_custom_call.1} parent=79 // pred_region
          %472 = dma.done [#allocation3], 256
        $region84: #{tpu_custom_call.1} parent=79 // pred_fallthru
          _
        // Predicated region
        $region85: #{tpu_custom_call.1} parent=79 // pred_check
          %p473 = pneg %p325
        $region86: #{tpu_custom_call.1} parent=79 // pred_check_branch
          %475 = sbr.rel (%p473) target = $region88
        $region87: #{tpu_custom_call.1} parent=79 // pred_region
          %476 = dma.done [#allocation6], 1024
        $region88: #{tpu_custom_call.1} parent=79 // pred_fallthru
          _
        %s477 = smul.u32 32, %s31
        %p478 = scmp.lt.s32.totalorder %s477, 63
        %s479 = scalar_select %p478, %s477, 63
        %s480 = smul.addr %s479, 4
        %s481 = scalar_lea.vmem %s0, %s480
        %p482 = pneg %p52
        %p483 = pneg %p49
        %p484 = pneg %p73
        %p485 = pneg %p70
        %p486 = pneg %p94
        %p487 = pneg %p91
        %p488 = pneg %p115
        %p489 = pneg %p112
        %p490 = pneg %p136
        %p491 = pneg %p133
        %p492 = pneg %p157
        %p493 = pneg %p154
        %p494 = pneg %p178
        %p495 = pneg %p175
        %p496 = pneg %p199
        %p497 = pneg %p196
        %p498 = pneg %p220
        %p499 = pneg %p217
        %p500 = pneg %p241
        %p501 = pneg %p238
        %p502 = pneg %p262
        %p503 = pneg %p259
        %p504 = pneg %p283
        %p505 = pneg %p280
        %p506 = pneg %p304
        %p507 = pneg %p301
        %p508 = pneg %p325
        %p509 = pneg %p322
        %p510 = pneg %p346
        %p511 = pneg %p343
        %p512 = pneg %p372
        %p513 = pneg %p369
        %s514 = sand.u32 %s359, 1
        %s515 = scalar_lea.sflag [#allocation4], %s514
        %s516 = sand.u32 %s359, 1
        %s517 = smul.addr %s516, 256
        %s518 = scalar_lea.vmem [#allocation7], %s517
        %s519 = smul.u32 32, %s31
        %p520 = scmp.lt.s32.totalorder %s519, 63
        %s521 = scalar_select %p520, %s519, 63
        %s522 = smul.addr %s521, 4
        %s523 = scalar_lea.vmem %s0, %s522
        %s524 = smul.u32 32, %s31
        %s525 = smul.u32 32, %s31
        %v527 = vld [vmem:[%s523] sm:$0xf]
        %v528 = vld [vmem:[%s523 + $0x4] sm:$0xf]
        %v529 = vld [vmem:[%s523 + $0x8] sm:$0xf]
        %v530 = vld [vmem:[%s523 + $0xc] sm:$0xf]
        %v531 = vld [vmem:[%s523 + $0x10] sm:$0xf]
        %v532 = vld [vmem:[%s523 + $0x14] sm:$0xf]
        %v533 = vld [vmem:[%s523 + $0x18] sm:$0xf]
        %v534 = vld [vmem:[%s523 + $0x1c] sm:$0xf]
        %v535 = vld [vmem:[%s523 + $0x20] sm:$0xf]
        %v536 = vld [vmem:[%s523 + $0x24] sm:$0xf]
        %v537 = vld [vmem:[%s523 + $0x28] sm:$0xf]
        %v538 = vld [vmem:[%s523 + $0x2c] sm:$0xf]
        %v539 = vld [vmem:[%s523 + $0x30] sm:$0xf]
        %v540 = vld [vmem:[%s523 + $0x34] sm:$0xf]
        %v541 = vld [vmem:[%s523 + $0x38] sm:$0xf]
        %v542 = vld [vmem:[%s523 + $0x3c] sm:$0xf]
        %v543 = vld [vmem:[%s523 + $0x40] sm:$0xf]
        %v544 = vld [vmem:[%s523 + $0x44] sm:$0xf]
        %v545 = vld [vmem:[%s523 + $0x48] sm:$0xf]
        %v546 = vld [vmem:[%s523 + $0x4c] sm:$0xf]
        %v547 = vld [vmem:[%s523 + $0x50] sm:$0xf]
        %v548 = vld [vmem:[%s523 + $0x54] sm:$0xf]
        %v549 = vld [vmem:[%s523 + $0x58] sm:$0xf]
        %v550 = vld [vmem:[%s523 + $0x5c] sm:$0xf]
        %v551 = vld [vmem:[%s523 + $0x60] sm:$0xf]
        %v552 = vld [vmem:[%s523 + $0x64] sm:$0xf]
        %v553 = vld [vmem:[%s523 + $0x68] sm:$0xf]
        %v554 = vld [vmem:[%s523 + $0x6c] sm:$0xf]
        %v555 = vld [vmem:[%s523 + $0x70] sm:$0xf]
        %v556 = vld [vmem:[%s523 + $0x74] sm:$0xf]
        %v557 = vld [vmem:[%s523 + $0x78] sm:$0xf]
        %v558 = vld [vmem:[%s523 + $0x7c] sm:$0xf]
        %v559 = vld [vmem:[#allocation2] sm:$0xf]
        %v560 = vld [vmem:[#allocation2 + $0x4] sm:$0xf]
        %v561 = vld [vmem:[#allocation2 + $0x8] sm:$0xf]
        %v562 = vld [vmem:[#allocation2 + $0xc] sm:$0xf]
        %v563 = vld [vmem:[%s2] sm:$0x1]
        %v565 = vlaneseq
        %v566 = vshrl.u32 %v565, 7
        %v567 = vsub.s32 0, %v566
        %v568 = vrot.slane %v563, %v567
        %v602 = vunpack.c.l.b16 %v527
        %v603 = vunpack.c.l.b16 %v528
        %v604 = vunpack.c.l.b16 %v529
        %v605 = vunpack.c.l.b16 %v530
        %v606 = vunpack.c.l.b16 %v531
        %v607 = vunpack.c.l.b16 %v532
        %v608 = vunpack.c.l.b16 %v533
        %v609 = vunpack.c.l.b16 %v534
        %v610 = vunpack.c.l.b16 %v535
        %v611 = vunpack.c.l.b16 %v536
        %v612 = vunpack.c.l.b16 %v537
        %v613 = vunpack.c.l.b16 %v538
        %v614 = vunpack.c.l.b16 %v539
        %v615 = vunpack.c.l.b16 %v540
        %v616 = vunpack.c.l.b16 %v541
        %v617 = vunpack.c.l.b16 %v542
        %v618 = vunpack.c.l.b16 %v543
        %v619 = vunpack.c.l.b16 %v544
        %v620 = vunpack.c.l.b16 %v545
        %v621 = vunpack.c.l.b16 %v546
        %v622 = vunpack.c.l.b16 %v547
        %v623 = vunpack.c.l.b16 %v548
        %v624 = vunpack.c.l.b16 %v549
        %v625 = vunpack.c.l.b16 %v550
        %v626 = vunpack.c.l.b16 %v551
        %v627 = vunpack.c.l.b16 %v552
        %v628 = vunpack.c.l.b16 %v553
        %v629 = vunpack.c.l.b16 %v554
        %v630 = vunpack.c.l.b16 %v555
        %v631 = vunpack.c.l.b16 %v556
        %v632 = vunpack.c.l.b16 %v557
        %v633 = vunpack.c.l.b16 %v558
        %v634 = vpack.c.b16 %v603, %v602
        %v635 = vpack.c.b16 %v605, %v604
        %v636 = vpack.c.b16 %v607, %v606
        %v637 = vpack.c.b16 %v609, %v608
        %v638 = vpack.c.b16 %v611, %v610
        %v639 = vpack.c.b16 %v613, %v612
        %v640 = vpack.c.b16 %v615, %v614
        %v641 = vpack.c.b16 %v617, %v616
        %v642 = vpack.c.b16 %v619, %v618
        %v643 = vpack.c.b16 %v621, %v620
        %v644 = vpack.c.b16 %v623, %v622
        %v645 = vpack.c.b16 %v625, %v624
        %v646 = vpack.c.b16 %v627, %v626
        %v647 = vpack.c.b16 %v629, %v628
        %v648 = vpack.c.b16 %v631, %v630
        %v649 = vpack.c.b16 %v633, %v632
        %v654 = vunpack.c.l.b16 %v559
        %v655 = vunpack.c.l.b16 %v560
        %v656 = vunpack.c.l.b16 %v561
        %v657 = vunpack.c.l.b16 %v562
        %v658 = vpack.c.b16 %v655, %v654
        %v659 = vpack.c.b16 %v657, %v656
        %vm662 = vcmask 261120
        %v664 = vsel %vm662, %v634, 0
        %v667 = vsel %vm662, %v635, 0
        %v670 = vsel %vm662, %v636, 0
        %v673 = vsel %vm662, %v637, 0
        %v676 = vsel %vm662, %v638, 0
        %v679 = vsel %vm662, %v639, 0
        %v682 = vsel %vm662, %v640, 0
        %v685 = vsel %vm662, %v641, 0
        %v688 = vsel %vm662, %v642, 0
        %v691 = vsel %vm662, %v643, 0
        %v694 = vsel %vm662, %v644, 0
        %v697 = vsel %vm662, %v645, 0
        %v700 = vsel %vm662, %v646, 0
        %v703 = vsel %vm662, %v647, 0
        %v706 = vsel %vm662, %v648, 0
        %v709 = vsel %vm662, %v649, 0
        %711 = vmatprep.subr.bf16.mxu0 0
        %712 = vmatpush1.bf16.msra.mxu0 0
        %713 = vmatprep.subr.bf16.mxu0 0
        %714 = vmatpush1.bf16.msra.mxu0 0
        %715 = vmatprep.subr.bf16.mxu0 0
        %716 = vmatpush1.bf16.msra.mxu0 0
        %717 = vmatprep.subr.bf16.mxu0 0
        %718 = vmatpush1.bf16.msra.mxu0 0
        %719 = vmatprep.subr.bf16.mxu0 0
        %720 = vmatpush1.bf16.msra.mxu0 0
        %721 = vmatprep.subr.bf16.mxu0 0
        %722 = vmatpush1.bf16.msra.mxu0 0
        %723 = vmatprep.subr.bf16.mxu0 0
        %724 = vmatpush1.bf16.msra.mxu0 %v659
        %725 = vmatprep.subr.bf16.mxu0 0
        %726 = vmatpush1.bf16.msra.mxu0 %v658
        %727 = vmatprep.subr.bf16.mxu0 0
        %728 = vmatpush2.bf16.msra.mxu0 0
        %729 = vmatprep.subr.bf16.mxu0 0
        %730 = vmatpush2.bf16.msra.mxu0 0
        %731 = vmatprep.subr.bf16.mxu0 0
        %732 = vmatpush2.bf16.msra.mxu0 0
        %733 = vmatprep.subr.bf16.mxu0 0
        %734 = vmatpush2.bf16.msra.mxu0 0
        %735 = vmatprep.subr.bf16.mxu0 0
        %736 = vmatpush2.bf16.msra.mxu0 0
        %737 = vmatprep.subr.bf16.mxu0 0
        %738 = vmatpush2.bf16.msra.mxu0 0
        %739 = vmatprep.subr.bf16.mxu0 0
        %740 = vmatpush2.bf16.msra.mxu0 0
        %741 = vmatprep.subr.bf16.mxu0 0
        %742 = vmatpush2.bf16.msra.mxu0 0
        %743 = vmatprep.mubr.bf16.mxu0 0
        %744 = vmatmul.mubr.bf16.gmra.mxu0 %v664
        %v745 = vpop.f32.mrf.mxu0
        %v746 = vadd.f32 %v568, %v745
        %v747 = vpop.f32.mrf.mxu0
        %v748 = vpop.f32.mrf.mxu0
        %v749 = vadd.f32 %v568, %v748
        %v750 = vpop.f32.mrf.mxu0
        %751 = vmatprep.mubr.bf16.mxu0 0
        %752 = vmatmul.mubr.bf16.gmra.mxu0 %v667
        %v753 = vpop.f32.mrf.mxu0
        %v754 = vadd.f32 %v568, %v753
        %v755 = vpop.f32.mrf.mxu0
        %v756 = vpop.f32.mrf.mxu0
        %v757 = vadd.f32 %v568, %v756
        %v758 = vpop.f32.mrf.mxu0
        %759 = vmatprep.mubr.bf16.mxu0 0
        %760 = vmatmul.mubr.bf16.gmra.mxu0 %v670
        %v761 = vpop.f32.mrf.mxu0
        %v762 = vadd.f32 %v568, %v761
        %v763 = vpop.f32.mrf.mxu0
        %v764 = vpop.f32.mrf.mxu0
        %v765 = vadd.f32 %v568, %v764
        %v766 = vpop.f32.mrf.mxu0
        %767 = vmatprep.mubr.bf16.mxu0 0
        %768 = vmatmul.mubr.bf16.gmra.mxu0 %v673
        %v769 = vpop.f32.mrf.mxu0
        %v770 = vadd.f32 %v568, %v769
        %v771 = vpop.f32.mrf.mxu0
        %v772 = vpop.f32.mrf.mxu0
        %v773 = vadd.f32 %v568, %v772
        %v774 = vpop.f32.mrf.mxu0
        %775 = vmatprep.mubr.bf16.mxu0 0
        %776 = vmatmul.mubr.bf16.gmra.mxu0 %v676
        %v777 = vpop.f32.mrf.mxu0
        %v778 = vadd.f32 %v568, %v777
        %v779 = vpop.f32.mrf.mxu0
        %v780 = vpop.f32.mrf.mxu0
        %v781 = vadd.f32 %v568, %v780
        %v782 = vpop.f32.mrf.mxu0
        %783 = vmatprep.mubr.bf16.mxu0 0
        %784 = vmatmul.mubr.bf16.gmra.mxu0 %v679
        %v785 = vpop.f32.mrf.mxu0
        %v786 = vadd.f32 %v568, %v785
        %v787 = vpop.f32.mrf.mxu0
        %v788 = vpop.f32.mrf.mxu0
        %v789 = vadd.f32 %v568, %v788
        %v790 = vpop.f32.mrf.mxu0
        %791 = vmatprep.mubr.bf16.mxu0 0
        %792 = vmatmul.mubr.bf16.gmra.mxu0 %v682
        %v793 = vpop.f32.mrf.mxu0
        %v794 = vadd.f32 %v568, %v793
        %v795 = vpop.f32.mrf.mxu0
        %v796 = vpop.f32.mrf.mxu0
        %v797 = vadd.f32 %v568, %v796
        %v798 = vpop.f32.mrf.mxu0
        %799 = vmatprep.mubr.bf16.mxu0 0
        %800 = vmatmul.mubr.bf16.gmra.mxu0 %v685
        %v801 = vpop.f32.mrf.mxu0
        %v802 = vadd.f32 %v568, %v801
        %v803 = vpop.f32.mrf.mxu0
        %v804 = vpop.f32.mrf.mxu0
        %v805 = vadd.f32 %v568, %v804
        %v806 = vpop.f32.mrf.mxu0
        %807 = vmatprep.mubr.bf16.mxu0 0
        %808 = vmatmul.mubr.bf16.gmra.mxu0 %v688
        %v809 = vpop.f32.mrf.mxu0
        %v810 = vadd.f32 %v568, %v809
        %v811 = vpop.f32.mrf.mxu0
        %v812 = vpop.f32.mrf.mxu0
        %v813 = vadd.f32 %v568, %v812
        %v814 = vpop.f32.mrf.mxu0
        %815 = vmatprep.mubr.bf16.mxu0 0
        %816 = vmatmul.mubr.bf16.gmra.mxu0 %v691
        %v817 = vpop.f32.mrf.mxu0
        %v818 = vadd.f32 %v568, %v817
        %v819 = vpop.f32.mrf.mxu0
        %v820 = vpop.f32.mrf.mxu0
        %v821 = vadd.f32 %v568, %v820
        %v822 = vpop.f32.mrf.mxu0
        %823 = vmatprep.mubr.bf16.mxu0 0
        %824 = vmatmul.mubr.bf16.gmra.mxu0 %v694
        %v825 = vpop.f32.mrf.mxu0
        %v826 = vadd.f32 %v568, %v825
        %v827 = vpop.f32.mrf.mxu0
        %v828 = vpop.f32.mrf.mxu0
        %v829 = vadd.f32 %v568, %v828
        %v830 = vpop.f32.mrf.mxu0
        %831 = vmatprep.mubr.bf16.mxu0 0
        %832 = vmatmul.mubr.bf16.gmra.mxu0 %v697
        %v833 = vpop.f32.mrf.mxu0
        %v834 = vadd.f32 %v568, %v833
        %v835 = vpop.f32.mrf.mxu0
        %v836 = vpop.f32.mrf.mxu0
        %v837 = vadd.f32 %v568, %v836
        %v838 = vpop.f32.mrf.mxu0
        %839 = vmatprep.mubr.bf16.mxu0 0
        %840 = vmatmul.mubr.bf16.gmra.mxu0 %v700
        %v841 = vpop.f32.mrf.mxu0
        %v842 = vadd.f32 %v568, %v841
        %v843 = vpop.f32.mrf.mxu0
        %v844 = vpop.f32.mrf.mxu0
        %v845 = vadd.f32 %v568, %v844
        %v846 = vpop.f32.mrf.mxu0
        %847 = vmatprep.mubr.bf16.mxu0 0
        %848 = vmatmul.mubr.bf16.gmra.mxu0 %v703
        %v849 = vpop.f32.mrf.mxu0
        %v850 = vadd.f32 %v568, %v849
        %v851 = vpop.f32.mrf.mxu0
        %v852 = vpop.f32.mrf.mxu0
        %v853 = vadd.f32 %v568, %v852
        %v854 = vpop.f32.mrf.mxu0
        %855 = vmatprep.mubr.bf16.mxu0 0
        %856 = vmatmul.mubr.bf16.gmra.mxu0 %v706
        %v857 = vpop.f32.mrf.mxu0
        %v858 = vadd.f32 %v568, %v857
        %v859 = vpop.f32.mrf.mxu0
        %v860 = vpop.f32.mrf.mxu0
        %v861 = vadd.f32 %v568, %v860
        %v862 = vpop.f32.mrf.mxu0
        %863 = vmatprep.mubr.bf16.mxu0 0
        %864 = vmatmul.mubr.bf16.gmra.mxu0 %v709
        %v865 = vpop.f32.mrf.mxu0
        %v866 = vadd.f32 %v568, %v865
        %v867 = vpop.f32.mrf.mxu0
        %v868 = vpop.f32.mrf.mxu0
        %v869 = vadd.f32 %v568, %v868
        %v870 = vpop.f32.mrf.mxu0
        %871 = vdwg.mxu0
        %v872 = vmax.f32 %v746, 0.0
        %v873 = vmax.f32 %v749, 0.0
        %v874 = vmax.f32 %v754, 0.0
        %v875 = vmax.f32 %v757, 0.0
        %v876 = vmax.f32 %v762, 0.0
        %v877 = vmax.f32 %v765, 0.0
        %v878 = vmax.f32 %v770, 0.0
        %v879 = vmax.f32 %v773, 0.0
        %v880 = vmax.f32 %v778, 0.0
        %v881 = vmax.f32 %v781, 0.0
        %v882 = vmax.f32 %v786, 0.0
        %v883 = vmax.f32 %v789, 0.0
        %v884 = vmax.f32 %v794, 0.0
        %v885 = vmax.f32 %v797, 0.0
        %v886 = vmax.f32 %v802, 0.0
        %v887 = vmax.f32 %v805, 0.0
        %v888 = vmax.f32 %v810, 0.0
        %v889 = vmax.f32 %v813, 0.0
        %v890 = vmax.f32 %v818, 0.0
        %v891 = vmax.f32 %v821, 0.0
        %v892 = vmax.f32 %v826, 0.0
        %v893 = vmax.f32 %v829, 0.0
        %v894 = vmax.f32 %v834, 0.0
        %v895 = vmax.f32 %v837, 0.0
        %v896 = vmax.f32 %v842, 0.0
        %v897 = vmax.f32 %v845, 0.0
        %v898 = vmax.f32 %v850, 0.0
        %v899 = vmax.f32 %v853, 0.0
        %v900 = vmax.f32 %v858, 0.0
        %v901 = vmax.f32 %v861, 0.0
        %v902 = vmax.f32 %v866, 0.0
        %v903 = vmax.f32 %v869, 0.0
        %v904 = vpack.c.bf16 %v873, %v872
        %v905 = vpack.c.bf16 %v875, %v874
        %v906 = vpack.c.bf16 %v877, %v876
        %v907 = vpack.c.bf16 %v879, %v878
        %v908 = vpack.c.bf16 %v881, %v880
        %v909 = vpack.c.bf16 %v883, %v882
        %v910 = vpack.c.bf16 %v885, %v884
        %v911 = vpack.c.bf16 %v887, %v886
        %v912 = vpack.c.bf16 %v889, %v888
        %v913 = vpack.c.bf16 %v891, %v890
        %v914 = vpack.c.bf16 %v893, %v892
        %v915 = vpack.c.bf16 %v895, %v894
        %v916 = vpack.c.bf16 %v897, %v896
        %v917 = vpack.c.bf16 %v899, %v898
        %v918 = vpack.c.bf16 %v901, %v900
        %v919 = vpack.c.bf16 %v903, %v902
        %v920 = vld [vmem:[%s3] sm:$0xf]
        %v921 = vld [vmem:[%s3 + $0x4] sm:$0xf]
        %v922 = vld [vmem:[%s3 + $0x8] sm:$0xf]
        %v923 = vld [vmem:[%s3 + $0xc] sm:$0xf]
        %v924 = vld [vmem:[%s3 + $0x10] sm:$0xf]
        %v925 = vld [vmem:[%s3 + $0x14] sm:$0xf]
        %v926 = vld [vmem:[%s3 + $0x18] sm:$0xf]
        %v927 = vld [vmem:[%s3 + $0x1c] sm:$0xf]
        %v928 = vld [vmem:[%s3 + $0x20] sm:$0xf]
        %v929 = vld [vmem:[%s3 + $0x24] sm:$0xf]
        %v930 = vld [vmem:[%s3 + $0x28] sm:$0xf]
        %v931 = vld [vmem:[%s3 + $0x2c] sm:$0xf]
        %v932 = vld [vmem:[%s3 + $0x30] sm:$0xf]
        %v933 = vld [vmem:[%s3 + $0x34] sm:$0xf]
        %v934 = vld [vmem:[%s3 + $0x38] sm:$0xf]
        %v935 = vld [vmem:[%s3 + $0x3c] sm:$0xf]
        %v936 = vld [vmem:[%s4] sm:$0x1]
        %v938 = vlaneseq
        %v939 = vshrl.u32 %v938, 7
        %v940 = vsub.s32 0, %v939
        %v941 = vrot.slane %v936, %v940
        %v959 = vunpack.c.l.b16 %v920
        %v960 = vunpack.c.l.b16 %v921
        %v961 = vunpack.c.l.b16 %v922
        %v962 = vunpack.c.l.b16 %v923
        %v963 = vunpack.c.l.b16 %v924
        %v964 = vunpack.c.l.b16 %v925
        %v965 = vunpack.c.l.b16 %v926
        %v966 = vunpack.c.l.b16 %v927
        %v967 = vunpack.c.l.b16 %v928
        %v968 = vunpack.c.l.b16 %v929
        %v969 = vunpack.c.l.b16 %v930
        %v970 = vunpack.c.l.b16 %v931
        %v971 = vunpack.c.l.b16 %v932
        %v972 = vunpack.c.l.b16 %v933
        %v973 = vunpack.c.l.b16 %v934
        %v974 = vunpack.c.l.b16 %v935
        %v975 = vpack.c.b16 %v960, %v959
        %v976 = vpack.c.b16 %v962, %v961
        %v977 = vpack.c.b16 %v964, %v963
        %v978 = vpack.c.b16 %v966, %v965
        %v979 = vpack.c.b16 %v968, %v967
        %v980 = vpack.c.b16 %v970, %v969
        %v981 = vpack.c.b16 %v972, %v971
        %v982 = vpack.c.b16 %v974, %v973
        %991 = vmatprep.subr.bf16.mxu0 0
        %992 = vmatpush1.bf16.msra.mxu0 %v982
        %993 = vmatprep.subr.bf16.mxu0 0
        %994 = vmatpush1.bf16.msra.mxu0 %v981
        %995 = vmatprep.subr.bf16.mxu0 0
        %996 = vmatpush1.bf16.msra.mxu0 %v980
        %997 = vmatprep.subr.bf16.mxu0 0
        %998 = vmatpush1.bf16.msra.mxu0 %v979
        %999 = vmatprep.subr.bf16.mxu0 0
        %1000 = vmatpush1.bf16.msra.mxu0 %v978
        %1001 = vmatprep.subr.bf16.mxu0 0
        %1002 = vmatpush1.bf16.msra.mxu0 %v977
        %1003 = vmatprep.subr.bf16.mxu0 0
        %1004 = vmatpush1.bf16.msra.mxu0 %v976
        %1005 = vmatprep.subr.bf16.mxu0 0
        %1006 = vmatpush1.bf16.msra.mxu0 %v975
        %1007 = vmatprep.subr.bf16.mxu0 0
        %1008 = vmatpush2.bf16.msra.mxu0 0
        %1009 = vmatprep.subr.bf16.mxu0 0
        %1010 = vmatpush2.bf16.msra.mxu0 0
        %1011 = vmatprep.subr.bf16.mxu0 0
        %1012 = vmatpush2.bf16.msra.mxu0 0
        %1013 = vmatprep.subr.bf16.mxu0 0
        %1014 = vmatpush2.bf16.msra.mxu0 0
        %1015 = vmatprep.subr.bf16.mxu0 0
        %1016 = vmatpush2.bf16.msra.mxu0 0
        %1017 = vmatprep.subr.bf16.mxu0 0
        %1018 = vmatpush2.bf16.msra.mxu0 0
        %1019 = vmatprep.subr.bf16.mxu0 0
        %1020 = vmatpush2.bf16.msra.mxu0 0
        %1021 = vmatprep.subr.bf16.mxu0 0
        %1022 = vmatpush2.bf16.msra.mxu0 0
        %1023 = vmatprep.mubr.bf16.mxu0 0
        %1024 = vmatmul.mubr.bf16.gmra.mxu0 %v904
        %v1025 = vpop.f32.mrf.mxu0
        %v1026 = vadd.f32 %v941, %v1025
        %v1027 = vpop.f32.mrf.mxu0
        %v1028 = vpop.f32.mrf.mxu0
        %v1029 = vadd.f32 %v941, %v1028
        %v1030 = vpop.f32.mrf.mxu0
        %1031 = vmatprep.mubr.bf16.mxu0 0
        %1032 = vmatmul.mubr.bf16.gmra.mxu0 %v905
        %v1033 = vpop.f32.mrf.mxu0
        %v1034 = vadd.f32 %v941, %v1033
        %v1035 = vpop.f32.mrf.mxu0
        %v1036 = vpop.f32.mrf.mxu0
        %v1037 = vadd.f32 %v941, %v1036
        %v1038 = vpop.f32.mrf.mxu0
        %1039 = vmatprep.mubr.bf16.mxu0 0
        %1040 = vmatmul.mubr.bf16.gmra.mxu0 %v906
        %v1041 = vpop.f32.mrf.mxu0
        %v1042 = vadd.f32 %v941, %v1041
        %v1043 = vpop.f32.mrf.mxu0
        %v1044 = vpop.f32.mrf.mxu0
        %v1045 = vadd.f32 %v941, %v1044
        %v1046 = vpop.f32.mrf.mxu0
        %1047 = vmatprep.mubr.bf16.mxu0 0
        %1048 = vmatmul.mubr.bf16.gmra.mxu0 %v907
        %v1049 = vpop.f32.mrf.mxu0
        %v1050 = vadd.f32 %v941, %v1049
        %v1051 = vpop.f32.mrf.mxu0
        %v1052 = vpop.f32.mrf.mxu0
        %v1053 = vadd.f32 %v941, %v1052
        %v1054 = vpop.f32.mrf.mxu0
        %1055 = vmatprep.mubr.bf16.mxu0 0
        %1056 = vmatmul.mubr.bf16.gmra.mxu0 %v908
        %v1057 = vpop.f32.mrf.mxu0
        %v1058 = vadd.f32 %v941, %v1057
        %v1059 = vpop.f32.mrf.mxu0
        %v1060 = vpop.f32.mrf.mxu0
        %v1061 = vadd.f32 %v941, %v1060
        %v1062 = vpop.f32.mrf.mxu0
        %1063 = vmatprep.mubr.bf16.mxu0 0
        %1064 = vmatmul.mubr.bf16.gmra.mxu0 %v909
        %v1065 = vpop.f32.mrf.mxu0
        %v1066 = vadd.f32 %v941, %v1065
        %v1067 = vpop.f32.mrf.mxu0
        %v1068 = vpop.f32.mrf.mxu0
        %v1069 = vadd.f32 %v941, %v1068
        %v1070 = vpop.f32.mrf.mxu0
        %1071 = vmatprep.mubr.bf16.mxu0 0
        %1072 = vmatmul.mubr.bf16.gmra.mxu0 %v910
        %v1073 = vpop.f32.mrf.mxu0
        %v1074 = vadd.f32 %v941, %v1073
        %v1075 = vpop.f32.mrf.mxu0
        %v1076 = vpop.f32.mrf.mxu0
        %v1077 = vadd.f32 %v941, %v1076
        %v1078 = vpop.f32.mrf.mxu0
        %1079 = vmatprep.mubr.bf16.mxu0 0
        %1080 = vmatmul.mubr.bf16.gmra.mxu0 %v911
        %v1081 = vpop.f32.mrf.mxu0
        %v1082 = vadd.f32 %v941, %v1081
        %v1083 = vpop.f32.mrf.mxu0
        %v1084 = vpop.f32.mrf.mxu0
        %v1085 = vadd.f32 %v941, %v1084
        %v1086 = vpop.f32.mrf.mxu0
        %1087 = vmatprep.mubr.bf16.mxu0 0
        %1088 = vmatmul.mubr.bf16.gmra.mxu0 %v912
        %v1089 = vpop.f32.mrf.mxu0
        %v1090 = vadd.f32 %v941, %v1089
        %v1091 = vpop.f32.mrf.mxu0
        %v1092 = vpop.f32.mrf.mxu0
        %v1093 = vadd.f32 %v941, %v1092
        %v1094 = vpop.f32.mrf.mxu0
        %1095 = vmatprep.mubr.bf16.mxu0 0
        %1096 = vmatmul.mubr.bf16.gmra.mxu0 %v913
        %v1097 = vpop.f32.mrf.mxu0
        %v1098 = vadd.f32 %v941, %v1097
        %v1099 = vpop.f32.mrf.mxu0
        %v1100 = vpop.f32.mrf.mxu0
        %v1101 = vadd.f32 %v941, %v1100
        %v1102 = vpop.f32.mrf.mxu0
        %1103 = vmatprep.mubr.bf16.mxu0 0
        %1104 = vmatmul.mubr.bf16.gmra.mxu0 %v914
        %v1105 = vpop.f32.mrf.mxu0
        %v1106 = vadd.f32 %v941, %v1105
        %v1107 = vpop.f32.mrf.mxu0
        %v1108 = vpop.f32.mrf.mxu0
        %v1109 = vadd.f32 %v941, %v1108
        %v1110 = vpop.f32.mrf.mxu0
        %1111 = vmatprep.mubr.bf16.mxu0 0
        %1112 = vmatmul.mubr.bf16.gmra.mxu0 %v915
        %v1113 = vpop.f32.mrf.mxu0
        %v1114 = vadd.f32 %v941, %v1113
        %v1115 = vpop.f32.mrf.mxu0
        %v1116 = vpop.f32.mrf.mxu0
        %v1117 = vadd.f32 %v941, %v1116
        %v1118 = vpop.f32.mrf.mxu0
        %1119 = vmatprep.mubr.bf16.mxu0 0
        %1120 = vmatmul.mubr.bf16.gmra.mxu0 %v916
        %v1121 = vpop.f32.mrf.mxu0
        %v1122 = vadd.f32 %v941, %v1121
        %v1123 = vpop.f32.mrf.mxu0
        %v1124 = vpop.f32.mrf.mxu0
        %v1125 = vadd.f32 %v941, %v1124
        %v1126 = vpop.f32.mrf.mxu0
        %1127 = vmatprep.mubr.bf16.mxu0 0
        %1128 = vmatmul.mubr.bf16.gmra.mxu0 %v917
        %v1129 = vpop.f32.mrf.mxu0
        %v1130 = vadd.f32 %v941, %v1129
        %v1131 = vpop.f32.mrf.mxu0
        %v1132 = vpop.f32.mrf.mxu0
        %v1133 = vadd.f32 %v941, %v1132
        %v1134 = vpop.f32.mrf.mxu0
        %1135 = vmatprep.mubr.bf16.mxu0 0
        %1136 = vmatmul.mubr.bf16.gmra.mxu0 %v918
        %v1137 = vpop.f32.mrf.mxu0
        %v1138 = vadd.f32 %v941, %v1137
        %v1139 = vpop.f32.mrf.mxu0
        %v1140 = vpop.f32.mrf.mxu0
        %v1141 = vadd.f32 %v941, %v1140
        %v1142 = vpop.f32.mrf.mxu0
        %1143 = vmatprep.mubr.bf16.mxu0 0
        %1144 = vmatmul.mubr.bf16.gmra.mxu0 %v919
        %v1145 = vpop.f32.mrf.mxu0
        %v1146 = vadd.f32 %v941, %v1145
        %v1147 = vpop.f32.mrf.mxu0
        %v1148 = vpop.f32.mrf.mxu0
        %v1149 = vadd.f32 %v941, %v1148
        %v1150 = vpop.f32.mrf.mxu0
        %1151 = vdwg.mxu0
        %v1152 = vmax.f32 %v1026, 0.0
        %v1153 = vmax.f32 %v1029, 0.0
        %v1154 = vmax.f32 %v1034, 0.0
        %v1155 = vmax.f32 %v1037, 0.0
        %v1156 = vmax.f32 %v1042, 0.0
        %v1157 = vmax.f32 %v1045, 0.0
        %v1158 = vmax.f32 %v1050, 0.0
        %v1159 = vmax.f32 %v1053, 0.0
        %v1160 = vmax.f32 %v1058, 0.0
        %v1161 = vmax.f32 %v1061, 0.0
        %v1162 = vmax.f32 %v1066, 0.0
        %v1163 = vmax.f32 %v1069, 0.0
        %v1164 = vmax.f32 %v1074, 0.0
        %v1165 = vmax.f32 %v1077, 0.0
        %v1166 = vmax.f32 %v1082, 0.0
        %v1167 = vmax.f32 %v1085, 0.0
        %v1168 = vmax.f32 %v1090, 0.0
        %v1169 = vmax.f32 %v1093, 0.0
        %v1170 = vmax.f32 %v1098, 0.0
        %v1171 = vmax.f32 %v1101, 0.0
        %v1172 = vmax.f32 %v1106, 0.0
        %v1173 = vmax.f32 %v1109, 0.0
        %v1174 = vmax.f32 %v1114, 0.0
        %v1175 = vmax.f32 %v1117, 0.0
        %v1176 = vmax.f32 %v1122, 0.0
        %v1177 = vmax.f32 %v1125, 0.0
        %v1178 = vmax.f32 %v1130, 0.0
        %v1179 = vmax.f32 %v1133, 0.0
        %v1180 = vmax.f32 %v1138, 0.0
        %v1181 = vmax.f32 %v1141, 0.0
        %v1182 = vmax.f32 %v1146, 0.0
        %v1183 = vmax.f32 %v1149, 0.0
        %v1184 = vpack.c.bf16 %v1153, %v1152
        %v1185 = vpack.c.bf16 %v1155, %v1154
        %v1186 = vpack.c.bf16 %v1157, %v1156
        %v1187 = vpack.c.bf16 %v1159, %v1158
        %v1188 = vpack.c.bf16 %v1161, %v1160
        %v1189 = vpack.c.bf16 %v1163, %v1162
        %v1190 = vpack.c.bf16 %v1165, %v1164
        %v1191 = vpack.c.bf16 %v1167, %v1166
        %v1192 = vpack.c.bf16 %v1169, %v1168
        %v1193 = vpack.c.bf16 %v1171, %v1170
        %v1194 = vpack.c.bf16 %v1173, %v1172
        %v1195 = vpack.c.bf16 %v1175, %v1174
        %v1196 = vpack.c.bf16 %v1177, %v1176
        %v1197 = vpack.c.bf16 %v1179, %v1178
        %v1198 = vpack.c.bf16 %v1181, %v1180
        %v1199 = vpack.c.bf16 %v1183, %v1182
        %v1200 = vld [vmem:[%s5] sm:$0xf]
        %v1201 = vld [vmem:[%s5 + $0x4] sm:$0xf]
        %v1202 = vld [vmem:[%s5 + $0x8] sm:$0xf]
        %v1203 = vld [vmem:[%s5 + $0xc] sm:$0xf]
        %v1204 = vld [vmem:[%s5 + $0x10] sm:$0xf]
        %v1205 = vld [vmem:[%s5 + $0x14] sm:$0xf]
        %v1206 = vld [vmem:[%s5 + $0x18] sm:$0xf]
        %v1207 = vld [vmem:[%s5 + $0x1c] sm:$0xf]
        %v1208 = vld [vmem:[%s5 + $0x20] sm:$0xf]
        %v1209 = vld [vmem:[%s5 + $0x24] sm:$0xf]
        %v1210 = vld [vmem:[%s5 + $0x28] sm:$0xf]
        %v1211 = vld [vmem:[%s5 + $0x2c] sm:$0xf]
        %v1212 = vld [vmem:[%s5 + $0x30] sm:$0xf]
        %v1213 = vld [vmem:[%s5 + $0x34] sm:$0xf]
        %v1214 = vld [vmem:[%s5 + $0x38] sm:$0xf]
        %v1215 = vld [vmem:[%s5 + $0x3c] sm:$0xf]
        %v1216 = vld [vmem:[%s6] sm:$0x1]
        %v1218 = vlaneseq
        %v1219 = vshrl.u32 %v1218, 7
        %v1220 = vsub.s32 0, %v1219
        %v1221 = vrot.slane %v1216, %v1220
        %v1239 = vunpack.c.l.b16 %v1200
        %v1240 = vunpack.c.l.b16 %v1201
        %v1241 = vunpack.c.l.b16 %v1202
        %v1242 = vunpack.c.l.b16 %v1203
        %v1243 = vunpack.c.l.b16 %v1204
        %v1244 = vunpack.c.l.b16 %v1205
        %v1245 = vunpack.c.l.b16 %v1206
        %v1246 = vunpack.c.l.b16 %v1207
        %v1247 = vunpack.c.l.b16 %v1208
        %v1248 = vunpack.c.l.b16 %v1209
        %v1249 = vunpack.c.l.b16 %v1210
        %v1250 = vunpack.c.l.b16 %v1211
        %v1251 = vunpack.c.l.b16 %v1212
        %v1252 = vunpack.c.l.b16 %v1213
        %v1253 = vunpack.c.l.b16 %v1214
        %v1254 = vunpack.c.l.b16 %v1215
        %v1255 = vpack.c.b16 %v1240, %v1239
        %v1256 = vpack.c.b16 %v1242, %v1241
        %v1257 = vpack.c.b16 %v1244, %v1243
        %v1258 = vpack.c.b16 %v1246, %v1245
        %v1259 = vpack.c.b16 %v1248, %v1247
        %v1260 = vpack.c.b16 %v1250, %v1249
        %v1261 = vpack.c.b16 %v1252, %v1251
        %v1262 = vpack.c.b16 %v1254, %v1253
        %1271 = vmatprep.subr.bf16.mxu0 0
        %1272 = vmatpush1.bf16.msra.mxu0 %v1262
        %1273 = vmatprep.subr.bf16.mxu0 0
        %1274 = vmatpush1.bf16.msra.mxu0 %v1261
        %1275 = vmatprep.subr.bf16.mxu0 0
        %1276 = vmatpush1.bf16.msra.mxu0 %v1260
        %1277 = vmatprep.subr.bf16.mxu0 0
        %1278 = vmatpush1.bf16.msra.mxu0 %v1259
        %1279 = vmatprep.subr.bf16.mxu0 0
        %1280 = vmatpush1.bf16.msra.mxu0 %v1258
        %1281 = vmatprep.subr.bf16.mxu0 0
        %1282 = vmatpush1.bf16.msra.mxu0 %v1257
        %1283 = vmatprep.subr.bf16.mxu0 0
        %1284 = vmatpush1.bf16.msra.mxu0 %v1256
        %1285 = vmatprep.subr.bf16.mxu0 0
        %1286 = vmatpush1.bf16.msra.mxu0 %v1255
        %1287 = vmatprep.subr.bf16.mxu0 0
        %1288 = vmatpush2.bf16.msra.mxu0 0
        %1289 = vmatprep.subr.bf16.mxu0 0
        %1290 = vmatpush2.bf16.msra.mxu0 0
        %1291 = vmatprep.subr.bf16.mxu0 0
        %1292 = vmatpush2.bf16.msra.mxu0 0
        %1293 = vmatprep.subr.bf16.mxu0 0
        %1294 = vmatpush2.bf16.msra.mxu0 0
        %1295 = vmatprep.subr.bf16.mxu0 0
        %1296 = vmatpush2.bf16.msra.mxu0 0
        %1297 = vmatprep.subr.bf16.mxu0 0
        %1298 = vmatpush2.bf16.msra.mxu0 0
        %1299 = vmatprep.subr.bf16.mxu0 0
        %1300 = vmatpush2.bf16.msra.mxu0 0
        %1301 = vmatprep.subr.bf16.mxu0 0
        %1302 = vmatpush2.bf16.msra.mxu0 0
        %1303 = vmatprep.mubr.bf16.mxu0 0
        %1304 = vmatmul.mubr.bf16.gmra.mxu0 %v1184
        %v1305 = vpop.f32.mrf.mxu0
        %v1306 = vadd.f32 %v1221, %v1305
        %v1307 = vpop.f32.mrf.mxu0
        %v1308 = vpop.f32.mrf.mxu0
        %v1309 = vadd.f32 %v1221, %v1308
        %v1310 = vpop.f32.mrf.mxu0
        %1311 = vmatprep.mubr.bf16.mxu0 0
        %1312 = vmatmul.mubr.bf16.gmra.mxu0 %v1185
        %v1313 = vpop.f32.mrf.mxu0
        %v1314 = vadd.f32 %v1221, %v1313
        %v1315 = vpop.f32.mrf.mxu0
        %v1316 = vpop.f32.mrf.mxu0
        %v1317 = vadd.f32 %v1221, %v1316
        %v1318 = vpop.f32.mrf.mxu0
        %1319 = vmatprep.mubr.bf16.mxu0 0
        %1320 = vmatmul.mubr.bf16.gmra.mxu0 %v1186
        %v1321 = vpop.f32.mrf.mxu0
        %v1322 = vadd.f32 %v1221, %v1321
        %v1323 = vpop.f32.mrf.mxu0
        %v1324 = vpop.f32.mrf.mxu0
        %v1325 = vadd.f32 %v1221, %v1324
        %v1326 = vpop.f32.mrf.mxu0
        %1327 = vmatprep.mubr.bf16.mxu0 0
        %1328 = vmatmul.mubr.bf16.gmra.mxu0 %v1187
        %v1329 = vpop.f32.mrf.mxu0
        %v1330 = vadd.f32 %v1221, %v1329
        %v1331 = vpop.f32.mrf.mxu0
        %v1332 = vpop.f32.mrf.mxu0
        %v1333 = vadd.f32 %v1221, %v1332
        %v1334 = vpop.f32.mrf.mxu0
        %1335 = vmatprep.mubr.bf16.mxu0 0
        %1336 = vmatmul.mubr.bf16.gmra.mxu0 %v1188
        %v1337 = vpop.f32.mrf.mxu0
        %v1338 = vadd.f32 %v1221, %v1337
        %v1339 = vpop.f32.mrf.mxu0
        %v1340 = vpop.f32.mrf.mxu0
        %v1341 = vadd.f32 %v1221, %v1340
        %v1342 = vpop.f32.mrf.mxu0
        %1343 = vmatprep.mubr.bf16.mxu0 0
        %1344 = vmatmul.mubr.bf16.gmra.mxu0 %v1189
        %v1345 = vpop.f32.mrf.mxu0
        %v1346 = vadd.f32 %v1221, %v1345
        %v1347 = vpop.f32.mrf.mxu0
        %v1348 = vpop.f32.mrf.mxu0
        %v1349 = vadd.f32 %v1221, %v1348
        %v1350 = vpop.f32.mrf.mxu0
        %1351 = vmatprep.mubr.bf16.mxu0 0
        %1352 = vmatmul.mubr.bf16.gmra.mxu0 %v1190
        %v1353 = vpop.f32.mrf.mxu0
        %v1354 = vadd.f32 %v1221, %v1353
        %v1355 = vpop.f32.mrf.mxu0
        %v1356 = vpop.f32.mrf.mxu0
        %v1357 = vadd.f32 %v1221, %v1356
        %v1358 = vpop.f32.mrf.mxu0
        %1359 = vmatprep.mubr.bf16.mxu0 0
        %1360 = vmatmul.mubr.bf16.gmra.mxu0 %v1191
        %v1361 = vpop.f32.mrf.mxu0
        %v1362 = vadd.f32 %v1221, %v1361
        %v1363 = vpop.f32.mrf.mxu0
        %v1364 = vpop.f32.mrf.mxu0
        %v1365 = vadd.f32 %v1221, %v1364
        %v1366 = vpop.f32.mrf.mxu0
        %1367 = vmatprep.mubr.bf16.mxu0 0
        %1368 = vmatmul.mubr.bf16.gmra.mxu0 %v1192
        %v1369 = vpop.f32.mrf.mxu0
        %v1370 = vadd.f32 %v1221, %v1369
        %v1371 = vpop.f32.mrf.mxu0
        %v1372 = vpop.f32.mrf.mxu0
        %v1373 = vadd.f32 %v1221, %v1372
        %v1374 = vpop.f32.mrf.mxu0
        %1375 = vmatprep.mubr.bf16.mxu0 0
        %1376 = vmatmul.mubr.bf16.gmra.mxu0 %v1193
        %v1377 = vpop.f32.mrf.mxu0
        %v1378 = vadd.f32 %v1221, %v1377
        %v1379 = vpop.f32.mrf.mxu0
        %v1380 = vpop.f32.mrf.mxu0
        %v1381 = vadd.f32 %v1221, %v1380
        %v1382 = vpop.f32.mrf.mxu0
        %1383 = vmatprep.mubr.bf16.mxu0 0
        %1384 = vmatmul.mubr.bf16.gmra.mxu0 %v1194
        %v1385 = vpop.f32.mrf.mxu0
        %v1386 = vadd.f32 %v1221, %v1385
        %v1387 = vpop.f32.mrf.mxu0
        %v1388 = vpop.f32.mrf.mxu0
        %v1389 = vadd.f32 %v1221, %v1388
        %v1390 = vpop.f32.mrf.mxu0
        %1391 = vmatprep.mubr.bf16.mxu0 0
        %1392 = vmatmul.mubr.bf16.gmra.mxu0 %v1195
        %v1393 = vpop.f32.mrf.mxu0
        %v1394 = vadd.f32 %v1221, %v1393
        %v1395 = vpop.f32.mrf.mxu0
        %v1396 = vpop.f32.mrf.mxu0
        %v1397 = vadd.f32 %v1221, %v1396
        %v1398 = vpop.f32.mrf.mxu0
        %1399 = vmatprep.mubr.bf16.mxu0 0
        %1400 = vmatmul.mubr.bf16.gmra.mxu0 %v1196
        %v1401 = vpop.f32.mrf.mxu0
        %v1402 = vadd.f32 %v1221, %v1401
        %v1403 = vpop.f32.mrf.mxu0
        %v1404 = vpop.f32.mrf.mxu0
        %v1405 = vadd.f32 %v1221, %v1404
        %v1406 = vpop.f32.mrf.mxu0
        %1407 = vmatprep.mubr.bf16.mxu0 0
        %1408 = vmatmul.mubr.bf16.gmra.mxu0 %v1197
        %v1409 = vpop.f32.mrf.mxu0
        %v1410 = vadd.f32 %v1221, %v1409
        %v1411 = vpop.f32.mrf.mxu0
        %v1412 = vpop.f32.mrf.mxu0
        %v1413 = vadd.f32 %v1221, %v1412
        %v1414 = vpop.f32.mrf.mxu0
        %1415 = vmatprep.mubr.bf16.mxu0 0
        %1416 = vmatmul.mubr.bf16.gmra.mxu0 %v1198
        %v1417 = vpop.f32.mrf.mxu0
        %v1418 = vadd.f32 %v1221, %v1417
        %v1419 = vpop.f32.mrf.mxu0
        %v1420 = vpop.f32.mrf.mxu0
        %v1421 = vadd.f32 %v1221, %v1420
        %v1422 = vpop.f32.mrf.mxu0
        %1423 = vmatprep.mubr.bf16.mxu0 0
        %1424 = vmatmul.mubr.bf16.gmra.mxu0 %v1199
        %v1425 = vpop.f32.mrf.mxu0
        %v1426 = vadd.f32 %v1221, %v1425
        %v1427 = vpop.f32.mrf.mxu0
        %v1428 = vpop.f32.mrf.mxu0
        %v1429 = vadd.f32 %v1221, %v1428
        %v1430 = vpop.f32.mrf.mxu0
        %1431 = vdwg.mxu0
        %v1432 = vmax.f32 %v1306, 0.0
        %v1433 = vmax.f32 %v1309, 0.0
        %v1434 = vmax.f32 %v1314, 0.0
        %v1435 = vmax.f32 %v1317, 0.0
        %v1436 = vmax.f32 %v1322, 0.0
        %v1437 = vmax.f32 %v1325, 0.0
        %v1438 = vmax.f32 %v1330, 0.0
        %v1439 = vmax.f32 %v1333, 0.0
        %v1440 = vmax.f32 %v1338, 0.0
        %v1441 = vmax.f32 %v1341, 0.0
        %v1442 = vmax.f32 %v1346, 0.0
        %v1443 = vmax.f32 %v1349, 0.0
        %v1444 = vmax.f32 %v1354, 0.0
        %v1445 = vmax.f32 %v1357, 0.0
        %v1446 = vmax.f32 %v1362, 0.0
        %v1447 = vmax.f32 %v1365, 0.0
        %v1448 = vmax.f32 %v1370, 0.0
        %v1449 = vmax.f32 %v1373, 0.0
        %v1450 = vmax.f32 %v1378, 0.0
        %v1451 = vmax.f32 %v1381, 0.0
        %v1452 = vmax.f32 %v1386, 0.0
        %v1453 = vmax.f32 %v1389, 0.0
        %v1454 = vmax.f32 %v1394, 0.0
        %v1455 = vmax.f32 %v1397, 0.0
        %v1456 = vmax.f32 %v1402, 0.0
        %v1457 = vmax.f32 %v1405, 0.0
        %v1458 = vmax.f32 %v1410, 0.0
        %v1459 = vmax.f32 %v1413, 0.0
        %v1460 = vmax.f32 %v1418, 0.0
        %v1461 = vmax.f32 %v1421, 0.0
        %v1462 = vmax.f32 %v1426, 0.0
        %v1463 = vmax.f32 %v1429, 0.0
        %v1464 = vpack.c.bf16 %v1433, %v1432
        %v1465 = vpack.c.bf16 %v1435, %v1434
        %v1466 = vpack.c.bf16 %v1437, %v1436
        %v1467 = vpack.c.bf16 %v1439, %v1438
        %v1468 = vpack.c.bf16 %v1441, %v1440
        %v1469 = vpack.c.bf16 %v1443, %v1442
        %v1470 = vpack.c.bf16 %v1445, %v1444
        %v1471 = vpack.c.bf16 %v1447, %v1446
        %v1472 = vpack.c.bf16 %v1449, %v1448
        %v1473 = vpack.c.bf16 %v1451, %v1450
        %v1474 = vpack.c.bf16 %v1453, %v1452
        %v1475 = vpack.c.bf16 %v1455, %v1454
        %v1476 = vpack.c.bf16 %v1457, %v1456
        %v1477 = vpack.c.bf16 %v1459, %v1458
        %v1478 = vpack.c.bf16 %v1461, %v1460
        %v1479 = vpack.c.bf16 %v1463, %v1462
        %v1480 = vld [vmem:[%s7] sm:$0xf]
        %v1481 = vld [vmem:[%s7 + $0x4] sm:$0xf]
        %v1482 = vld [vmem:[%s7 + $0x8] sm:$0xf]
        %v1483 = vld [vmem:[%s7 + $0xc] sm:$0xf]
        %v1484 = vld [vmem:[%s7 + $0x10] sm:$0xf]
        %v1485 = vld [vmem:[%s7 + $0x14] sm:$0xf]
        %v1486 = vld [vmem:[%s7 + $0x18] sm:$0xf]
        %v1487 = vld [vmem:[%s7 + $0x1c] sm:$0xf]
        %v1488 = vld [vmem:[%s7 + $0x20] sm:$0xf]
        %v1489 = vld [vmem:[%s7 + $0x24] sm:$0xf]
        %v1490 = vld [vmem:[%s7 + $0x28] sm:$0xf]
        %v1491 = vld [vmem:[%s7 + $0x2c] sm:$0xf]
        %v1492 = vld [vmem:[%s7 + $0x30] sm:$0xf]
        %v1493 = vld [vmem:[%s7 + $0x34] sm:$0xf]
        %v1494 = vld [vmem:[%s7 + $0x38] sm:$0xf]
        %v1495 = vld [vmem:[%s7 + $0x3c] sm:$0xf]
        %v1496 = vld [vmem:[%s8] sm:$0x1]
        %v1498 = vlaneseq
        %v1499 = vshrl.u32 %v1498, 7
        %v1500 = vsub.s32 0, %v1499
        %v1501 = vrot.slane %v1496, %v1500
        %v1519 = vunpack.c.l.b16 %v1480
        %v1520 = vunpack.c.l.b16 %v1481
        %v1521 = vunpack.c.l.b16 %v1482
        %v1522 = vunpack.c.l.b16 %v1483
        %v1523 = vunpack.c.l.b16 %v1484
        %v1524 = vunpack.c.l.b16 %v1485
        %v1525 = vunpack.c.l.b16 %v1486
        %v1526 = vunpack.c.l.b16 %v1487
        %v1527 = vunpack.c.l.b16 %v1488
        %v1528 = vunpack.c.l.b16 %v1489
        %v1529 = vunpack.c.l.b16 %v1490
        %v1530 = vunpack.c.l.b16 %v1491
        %v1531 = vunpack.c.l.b16 %v1492
        %v1532 = vunpack.c.l.b16 %v1493
        %v1533 = vunpack.c.l.b16 %v1494
        %v1534 = vunpack.c.l.b16 %v1495
        %v1535 = vpack.c.b16 %v1520, %v1519
        %v1536 = vpack.c.b16 %v1522, %v1521
        %v1537 = vpack.c.b16 %v1524, %v1523
        %v1538 = vpack.c.b16 %v1526, %v1525
        %v1539 = vpack.c.b16 %v1528, %v1527
        %v1540 = vpack.c.b16 %v1530, %v1529
        %v1541 = vpack.c.b16 %v1532, %v1531
        %v1542 = vpack.c.b16 %v1534, %v1533
        %1551 = vmatprep.subr.bf16.mxu0 0
        %1552 = vmatpush1.bf16.msra.mxu0 %v1542
        %1553 = vmatprep.subr.bf16.mxu0 0
        %1554 = vmatpush1.bf16.msra.mxu0 %v1541
        %1555 = vmatprep.subr.bf16.mxu0 0
        %1556 = vmatpush1.bf16.msra.mxu0 %v1540
        %1557 = vmatprep.subr.bf16.mxu0 0
        %1558 = vmatpush1.bf16.msra.mxu0 %v1539
        %1559 = vmatprep.subr.bf16.mxu0 0
        %1560 = vmatpush1.bf16.msra.mxu0 %v1538
        %1561 = vmatprep.subr.bf16.mxu0 0
        %1562 = vmatpush1.bf16.msra.mxu0 %v1537
        %1563 = vmatprep.subr.bf16.mxu0 0
        %1564 = vmatpush1.bf16.msra.mxu0 %v1536
        %1565 = vmatprep.subr.bf16.mxu0 0
        %1566 = vmatpush1.bf16.msra.mxu0 %v1535
        %1567 = vmatprep.subr.bf16.mxu0 0
        %1568 = vmatpush2.bf16.msra.mxu0 0
        %1569 = vmatprep.subr.bf16.mxu0 0
        %1570 = vmatpush2.bf16.msra.mxu0 0
        %1571 = vmatprep.subr.bf16.mxu0 0
        %1572 = vmatpush2.bf16.msra.mxu0 0
        %1573 = vmatprep.subr.bf16.mxu0 0
        %1574 = vmatpush2.bf16.msra.mxu0 0
        %1575 = vmatprep.subr.bf16.mxu0 0
        %1576 = vmatpush2.bf16.msra.mxu0 0
        %1577 = vmatprep.subr.bf16.mxu0 0
        %1578 = vmatpush2.bf16.msra.mxu0 0
        %1579 = vmatprep.subr.bf16.mxu0 0
        %1580 = vmatpush2.bf16.msra.mxu0 0
        %1581 = vmatprep.subr.bf16.mxu0 0
        %1582 = vmatpush2.bf16.msra.mxu0 0
        %1583 = vmatprep.mubr.bf16.mxu0 0
        %1584 = vmatmul.mubr.bf16.gmra.mxu0 %v1464
        %v1585 = vpop.f32.mrf.mxu0
        %v1586 = vadd.f32 %v1501, %v1585
        %v1587 = vpop.f32.mrf.mxu0
        %v1588 = vpop.f32.mrf.mxu0
        %v1589 = vadd.f32 %v1501, %v1588
        %v1590 = vpop.f32.mrf.mxu0
        %1591 = vmatprep.mubr.bf16.mxu0 0
        %1592 = vmatmul.mubr.bf16.gmra.mxu0 %v1465
        %v1593 = vpop.f32.mrf.mxu0
        %v1594 = vadd.f32 %v1501, %v1593
        %v1595 = vpop.f32.mrf.mxu0
        %v1596 = vpop.f32.mrf.mxu0
        %v1597 = vadd.f32 %v1501, %v1596
        %v1598 = vpop.f32.mrf.mxu0
        %1599 = vmatprep.mubr.bf16.mxu0 0
        %1600 = vmatmul.mubr.bf16.gmra.mxu0 %v1466
        %v1601 = vpop.f32.mrf.mxu0
        %v1602 = vadd.f32 %v1501, %v1601
        %v1603 = vpop.f32.mrf.mxu0
        %v1604 = vpop.f32.mrf.mxu0
        %v1605 = vadd.f32 %v1501, %v1604
        %v1606 = vpop.f32.mrf.mxu0
        %1607 = vmatprep.mubr.bf16.mxu0 0
        %1608 = vmatmul.mubr.bf16.gmra.mxu0 %v1467
        %v1609 = vpop.f32.mrf.mxu0
        %v1610 = vadd.f32 %v1501, %v1609
        %v1611 = vpop.f32.mrf.mxu0
        %v1612 = vpop.f32.mrf.mxu0
        %v1613 = vadd.f32 %v1501, %v1612
        %v1614 = vpop.f32.mrf.mxu0
        %1615 = vmatprep.mubr.bf16.mxu0 0
        %1616 = vmatmul.mubr.bf16.gmra.mxu0 %v1468
        %v1617 = vpop.f32.mrf.mxu0
        %v1618 = vadd.f32 %v1501, %v1617
        %v1619 = vpop.f32.mrf.mxu0
        %v1620 = vpop.f32.mrf.mxu0
        %v1621 = vadd.f32 %v1501, %v1620
        %v1622 = vpop.f32.mrf.mxu0
        %1623 = vmatprep.mubr.bf16.mxu0 0
        %1624 = vmatmul.mubr.bf16.gmra.mxu0 %v1469
        %v1625 = vpop.f32.mrf.mxu0
        %v1626 = vadd.f32 %v1501, %v1625
        %v1627 = vpop.f32.mrf.mxu0
        %v1628 = vpop.f32.mrf.mxu0
        %v1629 = vadd.f32 %v1501, %v1628
        %v1630 = vpop.f32.mrf.mxu0
        %1631 = vmatprep.mubr.bf16.mxu0 0
        %1632 = vmatmul.mubr.bf16.gmra.mxu0 %v1470
        %v1633 = vpop.f32.mrf.mxu0
        %v1634 = vadd.f32 %v1501, %v1633
        %v1635 = vpop.f32.mrf.mxu0
        %v1636 = vpop.f32.mrf.mxu0
        %v1637 = vadd.f32 %v1501, %v1636
        %v1638 = vpop.f32.mrf.mxu0
        %1639 = vmatprep.mubr.bf16.mxu0 0
        %1640 = vmatmul.mubr.bf16.gmra.mxu0 %v1471
        %v1641 = vpop.f32.mrf.mxu0
        %v1642 = vadd.f32 %v1501, %v1641
        %v1643 = vpop.f32.mrf.mxu0
        %v1644 = vpop.f32.mrf.mxu0
        %v1645 = vadd.f32 %v1501, %v1644
        %v1646 = vpop.f32.mrf.mxu0
        %1647 = vmatprep.mubr.bf16.mxu0 0
        %1648 = vmatmul.mubr.bf16.gmra.mxu0 %v1472
        %v1649 = vpop.f32.mrf.mxu0
        %v1650 = vadd.f32 %v1501, %v1649
        %v1651 = vpop.f32.mrf.mxu0
        %v1652 = vpop.f32.mrf.mxu0
        %v1653 = vadd.f32 %v1501, %v1652
        %v1654 = vpop.f32.mrf.mxu0
        %1655 = vmatprep.mubr.bf16.mxu0 0
        %1656 = vmatmul.mubr.bf16.gmra.mxu0 %v1473
        %v1657 = vpop.f32.mrf.mxu0
        %v1658 = vadd.f32 %v1501, %v1657
        %v1659 = vpop.f32.mrf.mxu0
        %v1660 = vpop.f32.mrf.mxu0
        %v1661 = vadd.f32 %v1501, %v1660
        %v1662 = vpop.f32.mrf.mxu0
        %1663 = vmatprep.mubr.bf16.mxu0 0
        %1664 = vmatmul.mubr.bf16.gmra.mxu0 %v1474
        %v1665 = vpop.f32.mrf.mxu0
        %v1666 = vadd.f32 %v1501, %v1665
        %v1667 = vpop.f32.mrf.mxu0
        %v1668 = vpop.f32.mrf.mxu0
        %v1669 = vadd.f32 %v1501, %v1668
        %v1670 = vpop.f32.mrf.mxu0
        %1671 = vmatprep.mubr.bf16.mxu0 0
        %1672 = vmatmul.mubr.bf16.gmra.mxu0 %v1475
        %v1673 = vpop.f32.mrf.mxu0
        %v1674 = vadd.f32 %v1501, %v1673
        %v1675 = vpop.f32.mrf.mxu0
        %v1676 = vpop.f32.mrf.mxu0
        %v1677 = vadd.f32 %v1501, %v1676
        %v1678 = vpop.f32.mrf.mxu0
        %1679 = vmatprep.mubr.bf16.mxu0 0
        %1680 = vmatmul.mubr.bf16.gmra.mxu0 %v1476
        %v1681 = vpop.f32.mrf.mxu0
        %v1682 = vadd.f32 %v1501, %v1681
        %v1683 = vpop.f32.mrf.mxu0
        %v1684 = vpop.f32.mrf.mxu0
        %v1685 = vadd.f32 %v1501, %v1684
        %v1686 = vpop.f32.mrf.mxu0
        %1687 = vmatprep.mubr.bf16.mxu0 0
        %1688 = vmatmul.mubr.bf16.gmra.mxu0 %v1477
        %v1689 = vpop.f32.mrf.mxu0
        %v1690 = vadd.f32 %v1501, %v1689
        %v1691 = vpop.f32.mrf.mxu0
        %v1692 = vpop.f32.mrf.mxu0
        %v1693 = vadd.f32 %v1501, %v1692
        %v1694 = vpop.f32.mrf.mxu0
        %1695 = vmatprep.mubr.bf16.mxu0 0
        %1696 = vmatmul.mubr.bf16.gmra.mxu0 %v1478
        %v1697 = vpop.f32.mrf.mxu0
        %v1698 = vadd.f32 %v1501, %v1697
        %v1699 = vpop.f32.mrf.mxu0
        %v1700 = vpop.f32.mrf.mxu0
        %v1701 = vadd.f32 %v1501, %v1700
        %v1702 = vpop.f32.mrf.mxu0
        %1703 = vmatprep.mubr.bf16.mxu0 0
        %1704 = vmatmul.mubr.bf16.gmra.mxu0 %v1479
        %v1705 = vpop.f32.mrf.mxu0
        %v1706 = vadd.f32 %v1501, %v1705
        %v1707 = vpop.f32.mrf.mxu0
        %v1708 = vpop.f32.mrf.mxu0
        %v1709 = vadd.f32 %v1501, %v1708
        %v1710 = vpop.f32.mrf.mxu0
        %1711 = vdwg.mxu0
        %v1712 = vmax.f32 %v1586, 0.0
        %v1713 = vmax.f32 %v1589, 0.0
        %v1714 = vmax.f32 %v1594, 0.0
        %v1715 = vmax.f32 %v1597, 0.0
        %v1716 = vmax.f32 %v1602, 0.0
        %v1717 = vmax.f32 %v1605, 0.0
        %v1718 = vmax.f32 %v1610, 0.0
        %v1719 = vmax.f32 %v1613, 0.0
        %v1720 = vmax.f32 %v1618, 0.0
        %v1721 = vmax.f32 %v1621, 0.0
        %v1722 = vmax.f32 %v1626, 0.0
        %v1723 = vmax.f32 %v1629, 0.0
        %v1724 = vmax.f32 %v1634, 0.0
        %v1725 = vmax.f32 %v1637, 0.0
        %v1726 = vmax.f32 %v1642, 0.0
        %v1727 = vmax.f32 %v1645, 0.0
        %v1728 = vmax.f32 %v1650, 0.0
        %v1729 = vmax.f32 %v1653, 0.0
        %v1730 = vmax.f32 %v1658, 0.0
        %v1731 = vmax.f32 %v1661, 0.0
        %v1732 = vmax.f32 %v1666, 0.0
        %v1733 = vmax.f32 %v1669, 0.0
        %v1734 = vmax.f32 %v1674, 0.0
        %v1735 = vmax.f32 %v1677, 0.0
        %v1736 = vmax.f32 %v1682, 0.0
        %v1737 = vmax.f32 %v1685, 0.0
        %v1738 = vmax.f32 %v1690, 0.0
        %v1739 = vmax.f32 %v1693, 0.0
        %v1740 = vmax.f32 %v1698, 0.0
        %v1741 = vmax.f32 %v1701, 0.0
        %v1742 = vmax.f32 %v1706, 0.0
        %v1743 = vmax.f32 %v1709, 0.0
        %v1744 = vpack.c.bf16 %v1713, %v1712
        %v1745 = vpack.c.bf16 %v1715, %v1714
        %v1746 = vpack.c.bf16 %v1717, %v1716
        %v1747 = vpack.c.bf16 %v1719, %v1718
        %v1748 = vpack.c.bf16 %v1721, %v1720
        %v1749 = vpack.c.bf16 %v1723, %v1722
        %v1750 = vpack.c.bf16 %v1725, %v1724
        %v1751 = vpack.c.bf16 %v1727, %v1726
        %v1752 = vpack.c.bf16 %v1729, %v1728
        %v1753 = vpack.c.bf16 %v1731, %v1730
        %v1754 = vpack.c.bf16 %v1733, %v1732
        %v1755 = vpack.c.bf16 %v1735, %v1734
        %v1756 = vpack.c.bf16 %v1737, %v1736
        %v1757 = vpack.c.bf16 %v1739, %v1738
        %v1758 = vpack.c.bf16 %v1741, %v1740
        %v1759 = vpack.c.bf16 %v1743, %v1742
        %v1760 = vld [vmem:[%s9] sm:$0xf]
        %v1761 = vld [vmem:[%s9 + $0x4] sm:$0xf]
        %v1762 = vld [vmem:[%s9 + $0x8] sm:$0xf]
        %v1763 = vld [vmem:[%s9 + $0xc] sm:$0xf]
        %v1764 = vld [vmem:[%s9 + $0x10] sm:$0xf]
        %v1765 = vld [vmem:[%s9 + $0x14] sm:$0xf]
        %v1766 = vld [vmem:[%s9 + $0x18] sm:$0xf]
        %v1767 = vld [vmem:[%s9 + $0x1c] sm:$0xf]
        %v1768 = vld [vmem:[%s9 + $0x20] sm:$0xf]
        %v1769 = vld [vmem:[%s9 + $0x24] sm:$0xf]
        %v1770 = vld [vmem:[%s9 + $0x28] sm:$0xf]
        %v1771 = vld [vmem:[%s9 + $0x2c] sm:$0xf]
        %v1772 = vld [vmem:[%s9 + $0x30] sm:$0xf]
        %v1773 = vld [vmem:[%s9 + $0x34] sm:$0xf]
        %v1774 = vld [vmem:[%s9 + $0x38] sm:$0xf]
        %v1775 = vld [vmem:[%s9 + $0x3c] sm:$0xf]
        %v1776 = vld [vmem:[%s10] sm:$0x1]
        %v1778 = vlaneseq
        %v1779 = vshrl.u32 %v1778, 7
        %v1780 = vsub.s32 0, %v1779
        %v1781 = vrot.slane %v1776, %v1780
        %v1799 = vunpack.c.l.b16 %v1760
        %v1800 = vunpack.c.l.b16 %v1761
        %v1801 = vunpack.c.l.b16 %v1762
        %v1802 = vunpack.c.l.b16 %v1763
        %v1803 = vunpack.c.l.b16 %v1764
        %v1804 = vunpack.c.l.b16 %v1765
        %v1805 = vunpack.c.l.b16 %v1766
        %v1806 = vunpack.c.l.b16 %v1767
        %v1807 = vunpack.c.l.b16 %v1768
        %v1808 = vunpack.c.l.b16 %v1769
        %v1809 = vunpack.c.l.b16 %v1770
        %v1810 = vunpack.c.l.b16 %v1771
        %v1811 = vunpack.c.l.b16 %v1772
        %v1812 = vunpack.c.l.b16 %v1773
        %v1813 = vunpack.c.l.b16 %v1774
        %v1814 = vunpack.c.l.b16 %v1775
        %v1815 = vpack.c.b16 %v1800, %v1799
        %v1816 = vpack.c.b16 %v1802, %v1801
        %v1817 = vpack.c.b16 %v1804, %v1803
        %v1818 = vpack.c.b16 %v1806, %v1805
        %v1819 = vpack.c.b16 %v1808, %v1807
        %v1820 = vpack.c.b16 %v1810, %v1809
        %v1821 = vpack.c.b16 %v1812, %v1811
        %v1822 = vpack.c.b16 %v1814, %v1813
        %1831 = vmatprep.subr.bf16.mxu0 0
        %1832 = vmatpush1.bf16.msra.mxu0 %v1822
        %1833 = vmatprep.subr.bf16.mxu0 0
        %1834 = vmatpush1.bf16.msra.mxu0 %v1821
        %1835 = vmatprep.subr.bf16.mxu0 0
        %1836 = vmatpush1.bf16.msra.mxu0 %v1820
        %1837 = vmatprep.subr.bf16.mxu0 0
        %1838 = vmatpush1.bf16.msra.mxu0 %v1819
        %1839 = vmatprep.subr.bf16.mxu0 0
        %1840 = vmatpush1.bf16.msra.mxu0 %v1818
        %1841 = vmatprep.subr.bf16.mxu0 0
        %1842 = vmatpush1.bf16.msra.mxu0 %v1817
        %1843 = vmatprep.subr.bf16.mxu0 0
        %1844 = vmatpush1.bf16.msra.mxu0 %v1816
        %1845 = vmatprep.subr.bf16.mxu0 0
        %1846 = vmatpush1.bf16.msra.mxu0 %v1815
        %1847 = vmatprep.subr.bf16.mxu0 0
        %1848 = vmatpush2.bf16.msra.mxu0 0
        %1849 = vmatprep.subr.bf16.mxu0 0
        %1850 = vmatpush2.bf16.msra.mxu0 0
        %1851 = vmatprep.subr.bf16.mxu0 0
        %1852 = vmatpush2.bf16.msra.mxu0 0
        %1853 = vmatprep.subr.bf16.mxu0 0
        %1854 = vmatpush2.bf16.msra.mxu0 0
        %1855 = vmatprep.subr.bf16.mxu0 0
        %1856 = vmatpush2.bf16.msra.mxu0 0
        %1857 = vmatprep.subr.bf16.mxu0 0
        %1858 = vmatpush2.bf16.msra.mxu0 0
        %1859 = vmatprep.subr.bf16.mxu0 0
        %1860 = vmatpush2.bf16.msra.mxu0 0
        %1861 = vmatprep.subr.bf16.mxu0 0
        %1862 = vmatpush2.bf16.msra.mxu0 0
        %1863 = vmatprep.mubr.bf16.mxu0 0
        %1864 = vmatmul.mubr.bf16.gmra.mxu0 %v1744
        %v1865 = vpop.f32.mrf.mxu0
        %v1866 = vadd.f32 %v1781, %v1865
        %v1867 = vpop.f32.mrf.mxu0
        %v1868 = vpop.f32.mrf.mxu0
        %v1869 = vadd.f32 %v1781, %v1868
        %v1870 = vpop.f32.mrf.mxu0
        %1871 = vmatprep.mubr.bf16.mxu0 0
        %1872 = vmatmul.mubr.bf16.gmra.mxu0 %v1745
        %v1873 = vpop.f32.mrf.mxu0
        %v1874 = vadd.f32 %v1781, %v1873
        %v1875 = vpop.f32.mrf.mxu0
        %v1876 = vpop.f32.mrf.mxu0
        %v1877 = vadd.f32 %v1781, %v1876
        %v1878 = vpop.f32.mrf.mxu0
        %1879 = vmatprep.mubr.bf16.mxu0 0
        %1880 = vmatmul.mubr.bf16.gmra.mxu0 %v1746
        %v1881 = vpop.f32.mrf.mxu0
        %v1882 = vadd.f32 %v1781, %v1881
        %v1883 = vpop.f32.mrf.mxu0
        %v1884 = vpop.f32.mrf.mxu0
        %v1885 = vadd.f32 %v1781, %v1884
        %v1886 = vpop.f32.mrf.mxu0
        %1887 = vmatprep.mubr.bf16.mxu0 0
        %1888 = vmatmul.mubr.bf16.gmra.mxu0 %v1747
        %v1889 = vpop.f32.mrf.mxu0
        %v1890 = vadd.f32 %v1781, %v1889
        %v1891 = vpop.f32.mrf.mxu0
        %v1892 = vpop.f32.mrf.mxu0
        %v1893 = vadd.f32 %v1781, %v1892
        %v1894 = vpop.f32.mrf.mxu0
        %1895 = vmatprep.mubr.bf16.mxu0 0
        %1896 = vmatmul.mubr.bf16.gmra.mxu0 %v1748
        %v1897 = vpop.f32.mrf.mxu0
        %v1898 = vadd.f32 %v1781, %v1897
        %v1899 = vpop.f32.mrf.mxu0
        %v1900 = vpop.f32.mrf.mxu0
        %v1901 = vadd.f32 %v1781, %v1900
        %v1902 = vpop.f32.mrf.mxu0
        %1903 = vmatprep.mubr.bf16.mxu0 0
        %1904 = vmatmul.mubr.bf16.gmra.mxu0 %v1749
        %v1905 = vpop.f32.mrf.mxu0
        %v1906 = vadd.f32 %v1781, %v1905
        %v1907 = vpop.f32.mrf.mxu0
        %v1908 = vpop.f32.mrf.mxu0
        %v1909 = vadd.f32 %v1781, %v1908
        %v1910 = vpop.f32.mrf.mxu0
        %1911 = vmatprep.mubr.bf16.mxu0 0
        %1912 = vmatmul.mubr.bf16.gmra.mxu0 %v1750
        %v1913 = vpop.f32.mrf.mxu0
        %v1914 = vadd.f32 %v1781, %v1913
        %v1915 = vpop.f32.mrf.mxu0
        %v1916 = vpop.f32.mrf.mxu0
        %v1917 = vadd.f32 %v1781, %v1916
        %v1918 = vpop.f32.mrf.mxu0
        %1919 = vmatprep.mubr.bf16.mxu0 0
        %1920 = vmatmul.mubr.bf16.gmra.mxu0 %v1751
        %v1921 = vpop.f32.mrf.mxu0
        %v1922 = vadd.f32 %v1781, %v1921
        %v1923 = vpop.f32.mrf.mxu0
        %v1924 = vpop.f32.mrf.mxu0
        %v1925 = vadd.f32 %v1781, %v1924
        %v1926 = vpop.f32.mrf.mxu0
        %1927 = vmatprep.mubr.bf16.mxu0 0
        %1928 = vmatmul.mubr.bf16.gmra.mxu0 %v1752
        %v1929 = vpop.f32.mrf.mxu0
        %v1930 = vadd.f32 %v1781, %v1929
        %v1931 = vpop.f32.mrf.mxu0
        %v1932 = vpop.f32.mrf.mxu0
        %v1933 = vadd.f32 %v1781, %v1932
        %v1934 = vpop.f32.mrf.mxu0
        %1935 = vmatprep.mubr.bf16.mxu0 0
        %1936 = vmatmul.mubr.bf16.gmra.mxu0 %v1753
        %v1937 = vpop.f32.mrf.mxu0
        %v1938 = vadd.f32 %v1781, %v1937
        %v1939 = vpop.f32.mrf.mxu0
        %v1940 = vpop.f32.mrf.mxu0
        %v1941 = vadd.f32 %v1781, %v1940
        %v1942 = vpop.f32.mrf.mxu0
        %1943 = vmatprep.mubr.bf16.mxu0 0
        %1944 = vmatmul.mubr.bf16.gmra.mxu0 %v1754
        %v1945 = vpop.f32.mrf.mxu0
        %v1946 = vadd.f32 %v1781, %v1945
        %v1947 = vpop.f32.mrf.mxu0
        %v1948 = vpop.f32.mrf.mxu0
        %v1949 = vadd.f32 %v1781, %v1948
        %v1950 = vpop.f32.mrf.mxu0
        %1951 = vmatprep.mubr.bf16.mxu0 0
        %1952 = vmatmul.mubr.bf16.gmra.mxu0 %v1755
        %v1953 = vpop.f32.mrf.mxu0
        %v1954 = vadd.f32 %v1781, %v1953
        %v1955 = vpop.f32.mrf.mxu0
        %v1956 = vpop.f32.mrf.mxu0
        %v1957 = vadd.f32 %v1781, %v1956
        %v1958 = vpop.f32.mrf.mxu0
        %1959 = vmatprep.mubr.bf16.mxu0 0
        %1960 = vmatmul.mubr.bf16.gmra.mxu0 %v1756
        %v1961 = vpop.f32.mrf.mxu0
        %v1962 = vadd.f32 %v1781, %v1961
        %v1963 = vpop.f32.mrf.mxu0
        %v1964 = vpop.f32.mrf.mxu0
        %v1965 = vadd.f32 %v1781, %v1964
        %v1966 = vpop.f32.mrf.mxu0
        %1967 = vmatprep.mubr.bf16.mxu0 0
        %1968 = vmatmul.mubr.bf16.gmra.mxu0 %v1757
        %v1969 = vpop.f32.mrf.mxu0
        %v1970 = vadd.f32 %v1781, %v1969
        %v1971 = vpop.f32.mrf.mxu0
        %v1972 = vpop.f32.mrf.mxu0
        %v1973 = vadd.f32 %v1781, %v1972
        %v1974 = vpop.f32.mrf.mxu0
        %1975 = vmatprep.mubr.bf16.mxu0 0
        %1976 = vmatmul.mubr.bf16.gmra.mxu0 %v1758
        %v1977 = vpop.f32.mrf.mxu0
        %v1978 = vadd.f32 %v1781, %v1977
        %v1979 = vpop.f32.mrf.mxu0
        %v1980 = vpop.f32.mrf.mxu0
        %v1981 = vadd.f32 %v1781, %v1980
        %v1982 = vpop.f32.mrf.mxu0
        %1983 = vmatprep.mubr.bf16.mxu0 0
        %1984 = vmatmul.mubr.bf16.gmra.mxu0 %v1759
        %v1985 = vpop.f32.mrf.mxu0
        %v1986 = vadd.f32 %v1781, %v1985
        %v1987 = vpop.f32.mrf.mxu0
        %v1988 = vpop.f32.mrf.mxu0
        %v1989 = vadd.f32 %v1781, %v1988
        %v1990 = vpop.f32.mrf.mxu0
        %1991 = vdwg.mxu0
        %v1992 = vmax.f32 %v1866, 0.0
        %v1993 = vmax.f32 %v1869, 0.0
        %v1994 = vmax.f32 %v1874, 0.0
        %v1995 = vmax.f32 %v1877, 0.0
        %v1996 = vmax.f32 %v1882, 0.0
        %v1997 = vmax.f32 %v1885, 0.0
        %v1998 = vmax.f32 %v1890, 0.0
        %v1999 = vmax.f32 %v1893, 0.0
        %v2000 = vmax.f32 %v1898, 0.0
        %v2001 = vmax.f32 %v1901, 0.0
        %v2002 = vmax.f32 %v1906, 0.0
        %v2003 = vmax.f32 %v1909, 0.0
        %v2004 = vmax.f32 %v1914, 0.0
        %v2005 = vmax.f32 %v1917, 0.0
        %v2006 = vmax.f32 %v1922, 0.0
        %v2007 = vmax.f32 %v1925, 0.0
        %v2008 = vmax.f32 %v1930, 0.0
        %v2009 = vmax.f32 %v1933, 0.0
        %v2010 = vmax.f32 %v1938, 0.0
        %v2011 = vmax.f32 %v1941, 0.0
        %v2012 = vmax.f32 %v1946, 0.0
        %v2013 = vmax.f32 %v1949, 0.0
        %v2014 = vmax.f32 %v1954, 0.0
        %v2015 = vmax.f32 %v1957, 0.0
        %v2016 = vmax.f32 %v1962, 0.0
        %v2017 = vmax.f32 %v1965, 0.0
        %v2018 = vmax.f32 %v1970, 0.0
        %v2019 = vmax.f32 %v1973, 0.0
        %v2020 = vmax.f32 %v1978, 0.0
        %v2021 = vmax.f32 %v1981, 0.0
        %v2022 = vmax.f32 %v1986, 0.0
        %v2023 = vmax.f32 %v1989, 0.0
        %v2024 = vpack.c.bf16 %v1993, %v1992
        %v2025 = vpack.c.bf16 %v1995, %v1994
        %v2026 = vpack.c.bf16 %v1997, %v1996
        %v2027 = vpack.c.bf16 %v1999, %v1998
        %v2028 = vpack.c.bf16 %v2001, %v2000
        %v2029 = vpack.c.bf16 %v2003, %v2002
        %v2030 = vpack.c.bf16 %v2005, %v2004
        %v2031 = vpack.c.bf16 %v2007, %v2006
        %v2032 = vpack.c.bf16 %v2009, %v2008
        %v2033 = vpack.c.bf16 %v2011, %v2010
        %v2034 = vpack.c.bf16 %v2013, %v2012
        %v2035 = vpack.c.bf16 %v2015, %v2014
        %v2036 = vpack.c.bf16 %v2017, %v2016
        %v2037 = vpack.c.bf16 %v2019, %v2018
        %v2038 = vpack.c.bf16 %v2021, %v2020
        %v2039 = vpack.c.bf16 %v2023, %v2022
        %v2040 = vld [vmem:[%s11] sm:$0xf]
        %v2041 = vld [vmem:[%s11 + $0x4] sm:$0xf]
        %v2042 = vld [vmem:[%s11 + $0x8] sm:$0xf]
        %v2043 = vld [vmem:[%s11 + $0xc] sm:$0xf]
        %v2044 = vld [vmem:[%s11 + $0x10] sm:$0xf]
        %v2045 = vld [vmem:[%s11 + $0x14] sm:$0xf]
        %v2046 = vld [vmem:[%s11 + $0x18] sm:$0xf]
        %v2047 = vld [vmem:[%s11 + $0x1c] sm:$0xf]
        %v2048 = vld [vmem:[%s11 + $0x20] sm:$0xf]
        %v2049 = vld [vmem:[%s11 + $0x24] sm:$0xf]
        %v2050 = vld [vmem:[%s11 + $0x28] sm:$0xf]
        %v2051 = vld [vmem:[%s11 + $0x2c] sm:$0xf]
        %v2052 = vld [vmem:[%s11 + $0x30] sm:$0xf]
        %v2053 = vld [vmem:[%s11 + $0x34] sm:$0xf]
        %v2054 = vld [vmem:[%s11 + $0x38] sm:$0xf]
        %v2055 = vld [vmem:[%s11 + $0x3c] sm:$0xf]
        %v2056 = vld [vmem:[%s12] sm:$0x1]
        %v2058 = vlaneseq
        %v2059 = vshrl.u32 %v2058, 7
        %v2060 = vsub.s32 0, %v2059
        %v2061 = vrot.slane %v2056, %v2060
        %v2079 = vunpack.c.l.b16 %v2040
        %v2080 = vunpack.c.l.b16 %v2041
        %v2081 = vunpack.c.l.b16 %v2042
        %v2082 = vunpack.c.l.b16 %v2043
        %v2083 = vunpack.c.l.b16 %v2044
        %v2084 = vunpack.c.l.b16 %v2045
        %v2085 = vunpack.c.l.b16 %v2046
        %v2086 = vunpack.c.l.b16 %v2047
        %v2087 = vunpack.c.l.b16 %v2048
        %v2088 = vunpack.c.l.b16 %v2049
        %v2089 = vunpack.c.l.b16 %v2050
        %v2090 = vunpack.c.l.b16 %v2051
        %v2091 = vunpack.c.l.b16 %v2052
        %v2092 = vunpack.c.l.b16 %v2053
        %v2093 = vunpack.c.l.b16 %v2054
        %v2094 = vunpack.c.l.b16 %v2055
        %v2095 = vpack.c.b16 %v2080, %v2079
        %v2096 = vpack.c.b16 %v2082, %v2081
        %v2097 = vpack.c.b16 %v2084, %v2083
        %v2098 = vpack.c.b16 %v2086, %v2085
        %v2099 = vpack.c.b16 %v2088, %v2087
        %v2100 = vpack.c.b16 %v2090, %v2089
        %v2101 = vpack.c.b16 %v2092, %v2091
        %v2102 = vpack.c.b16 %v2094, %v2093
        %2111 = vmatprep.subr.bf16.mxu0 0
        %2112 = vmatpush1.bf16.msra.mxu0 %v2102
        %2113 = vmatprep.subr.bf16.mxu0 0
        %2114 = vmatpush1.bf16.msra.mxu0 %v2101
        %2115 = vmatprep.subr.bf16.mxu0 0
        %2116 = vmatpush1.bf16.msra.mxu0 %v2100
        %2117 = vmatprep.subr.bf16.mxu0 0
        %2118 = vmatpush1.bf16.msra.mxu0 %v2099
        %2119 = vmatprep.subr.bf16.mxu0 0
        %2120 = vmatpush1.bf16.msra.mxu0 %v2098
        %2121 = vmatprep.subr.bf16.mxu0 0
        %2122 = vmatpush1.bf16.msra.mxu0 %v2097
        %2123 = vmatprep.subr.bf16.mxu0 0
        %2124 = vmatpush1.bf16.msra.mxu0 %v2096
        %2125 = vmatprep.subr.bf16.mxu0 0
        %2126 = vmatpush1.bf16.msra.mxu0 %v2095
        %2127 = vmatprep.subr.bf16.mxu0 0
        %2128 = vmatpush2.bf16.msra.mxu0 0
        %2129 = vmatprep.subr.bf16.mxu0 0
        %2130 = vmatpush2.bf16.msra.mxu0 0
        %2131 = vmatprep.subr.bf16.mxu0 0
        %2132 = vmatpush2.bf16.msra.mxu0 0
        %2133 = vmatprep.subr.bf16.mxu0 0
        %2134 = vmatpush2.bf16.msra.mxu0 0
        %2135 = vmatprep.subr.bf16.mxu0 0
        %2136 = vmatpush2.bf16.msra.mxu0 0
        %2137 = vmatprep.subr.bf16.mxu0 0
        %2138 = vmatpush2.bf16.msra.mxu0 0
        %2139 = vmatprep.subr.bf16.mxu0 0
        %2140 = vmatpush2.bf16.msra.mxu0 0
        %2141 = vmatprep.subr.bf16.mxu0 0
        %2142 = vmatpush2.bf16.msra.mxu0 0
        %2143 = vmatprep.mubr.bf16.mxu0 0
        %2144 = vmatmul.mubr.bf16.gmra.mxu0 %v2024
        %v2145 = vpop.f32.mrf.mxu0
        %v2146 = vadd.f32 %v2061, %v2145
        %v2147 = vpop.f32.mrf.mxu0
        %v2148 = vpop.f32.mrf.mxu0
        %v2149 = vadd.f32 %v2061, %v2148
        %v2150 = vpop.f32.mrf.mxu0
        %2151 = vmatprep.mubr.bf16.mxu0 0
        %2152 = vmatmul.mubr.bf16.gmra.mxu0 %v2025
        %v2153 = vpop.f32.mrf.mxu0
        %v2154 = vadd.f32 %v2061, %v2153
        %v2155 = vpop.f32.mrf.mxu0
        %v2156 = vpop.f32.mrf.mxu0
        %v2157 = vadd.f32 %v2061, %v2156
        %v2158 = vpop.f32.mrf.mxu0
        %2159 = vmatprep.mubr.bf16.mxu0 0
        %2160 = vmatmul.mubr.bf16.gmra.mxu0 %v2026
        %v2161 = vpop.f32.mrf.mxu0
        %v2162 = vadd.f32 %v2061, %v2161
        %v2163 = vpop.f32.mrf.mxu0
        %v2164 = vpop.f32.mrf.mxu0
        %v2165 = vadd.f32 %v2061, %v2164
        %v2166 = vpop.f32.mrf.mxu0
        %2167 = vmatprep.mubr.bf16.mxu0 0
        %2168 = vmatmul.mubr.bf16.gmra.mxu0 %v2027
        %v2169 = vpop.f32.mrf.mxu0
        %v2170 = vadd.f32 %v2061, %v2169
        %v2171 = vpop.f32.mrf.mxu0
        %v2172 = vpop.f32.mrf.mxu0
        %v2173 = vadd.f32 %v2061, %v2172
        %v2174 = vpop.f32.mrf.mxu0
        %2175 = vmatprep.mubr.bf16.mxu0 0
        %2176 = vmatmul.mubr.bf16.gmra.mxu0 %v2028
        %v2177 = vpop.f32.mrf.mxu0
        %v2178 = vadd.f32 %v2061, %v2177
        %v2179 = vpop.f32.mrf.mxu0
        %v2180 = vpop.f32.mrf.mxu0
        %v2181 = vadd.f32 %v2061, %v2180
        %v2182 = vpop.f32.mrf.mxu0
        %2183 = vmatprep.mubr.bf16.mxu0 0
        %2184 = vmatmul.mubr.bf16.gmra.mxu0 %v2029
        %v2185 = vpop.f32.mrf.mxu0
        %v2186 = vadd.f32 %v2061, %v2185
        %v2187 = vpop.f32.mrf.mxu0
        %v2188 = vpop.f32.mrf.mxu0
        %v2189 = vadd.f32 %v2061, %v2188
        %v2190 = vpop.f32.mrf.mxu0
        %2191 = vmatprep.mubr.bf16.mxu0 0
        %2192 = vmatmul.mubr.bf16.gmra.mxu0 %v2030
        %v2193 = vpop.f32.mrf.mxu0
        %v2194 = vadd.f32 %v2061, %v2193
        %v2195 = vpop.f32.mrf.mxu0
        %v2196 = vpop.f32.mrf.mxu0
        %v2197 = vadd.f32 %v2061, %v2196
        %v2198 = vpop.f32.mrf.mxu0
        %2199 = vmatprep.mubr.bf16.mxu0 0
        %2200 = vmatmul.mubr.bf16.gmra.mxu0 %v2031
        %v2201 = vpop.f32.mrf.mxu0
        %v2202 = vadd.f32 %v2061, %v2201
        %v2203 = vpop.f32.mrf.mxu0
        %v2204 = vpop.f32.mrf.mxu0
        %v2205 = vadd.f32 %v2061, %v2204
        %v2206 = vpop.f32.mrf.mxu0
        %2207 = vmatprep.mubr.bf16.mxu0 0
        %2208 = vmatmul.mubr.bf16.gmra.mxu0 %v2032
        %v2209 = vpop.f32.mrf.mxu0
        %v2210 = vadd.f32 %v2061, %v2209
        %v2211 = vpop.f32.mrf.mxu0
        %v2212 = vpop.f32.mrf.mxu0
        %v2213 = vadd.f32 %v2061, %v2212
        %v2214 = vpop.f32.mrf.mxu0
        %2215 = vmatprep.mubr.bf16.mxu0 0
        %2216 = vmatmul.mubr.bf16.gmra.mxu0 %v2033
        %v2217 = vpop.f32.mrf.mxu0
        %v2218 = vadd.f32 %v2061, %v2217
        %v2219 = vpop.f32.mrf.mxu0
        %v2220 = vpop.f32.mrf.mxu0
        %v2221 = vadd.f32 %v2061, %v2220
        %v2222 = vpop.f32.mrf.mxu0
        %2223 = vmatprep.mubr.bf16.mxu0 0
        %2224 = vmatmul.mubr.bf16.gmra.mxu0 %v2034
        %v2225 = vpop.f32.mrf.mxu0
        %v2226 = vadd.f32 %v2061, %v2225
        %v2227 = vpop.f32.mrf.mxu0
        %v2228 = vpop.f32.mrf.mxu0
        %v2229 = vadd.f32 %v2061, %v2228
        %v2230 = vpop.f32.mrf.mxu0
        %2231 = vmatprep.mubr.bf16.mxu0 0
        %2232 = vmatmul.mubr.bf16.gmra.mxu0 %v2035
        %v2233 = vpop.f32.mrf.mxu0
        %v2234 = vadd.f32 %v2061, %v2233
        %v2235 = vpop.f32.mrf.mxu0
        %v2236 = vpop.f32.mrf.mxu0
        %v2237 = vadd.f32 %v2061, %v2236
        %v2238 = vpop.f32.mrf.mxu0
        %2239 = vmatprep.mubr.bf16.mxu0 0
        %2240 = vmatmul.mubr.bf16.gmra.mxu0 %v2036
        %v2241 = vpop.f32.mrf.mxu0
        %v2242 = vadd.f32 %v2061, %v2241
        %v2243 = vpop.f32.mrf.mxu0
        %v2244 = vpop.f32.mrf.mxu0
        %v2245 = vadd.f32 %v2061, %v2244
        %v2246 = vpop.f32.mrf.mxu0
        %2247 = vmatprep.mubr.bf16.mxu0 0
        %2248 = vmatmul.mubr.bf16.gmra.mxu0 %v2037
        %v2249 = vpop.f32.mrf.mxu0
        %v2250 = vadd.f32 %v2061, %v2249
        %v2251 = vpop.f32.mrf.mxu0
        %v2252 = vpop.f32.mrf.mxu0
        %v2253 = vadd.f32 %v2061, %v2252
        %v2254 = vpop.f32.mrf.mxu0
        %2255 = vmatprep.mubr.bf16.mxu0 0
        %2256 = vmatmul.mubr.bf16.gmra.mxu0 %v2038
        %v2257 = vpop.f32.mrf.mxu0
        %v2258 = vadd.f32 %v2061, %v2257
        %v2259 = vpop.f32.mrf.mxu0
        %v2260 = vpop.f32.mrf.mxu0
        %v2261 = vadd.f32 %v2061, %v2260
        %v2262 = vpop.f32.mrf.mxu0
        %2263 = vmatprep.mubr.bf16.mxu0 0
        %2264 = vmatmul.mubr.bf16.gmra.mxu0 %v2039
        %v2265 = vpop.f32.mrf.mxu0
        %v2266 = vadd.f32 %v2061, %v2265
        %v2267 = vpop.f32.mrf.mxu0
        %v2268 = vpop.f32.mrf.mxu0
        %v2269 = vadd.f32 %v2061, %v2268
        %v2270 = vpop.f32.mrf.mxu0
        %2271 = vdwg.mxu0
        %v2272 = vmax.f32 %v2146, 0.0
        %v2273 = vmax.f32 %v2149, 0.0
        %v2274 = vmax.f32 %v2154, 0.0
        %v2275 = vmax.f32 %v2157, 0.0
        %v2276 = vmax.f32 %v2162, 0.0
        %v2277 = vmax.f32 %v2165, 0.0
        %v2278 = vmax.f32 %v2170, 0.0
        %v2279 = vmax.f32 %v2173, 0.0
        %v2280 = vmax.f32 %v2178, 0.0
        %v2281 = vmax.f32 %v2181, 0.0
        %v2282 = vmax.f32 %v2186, 0.0
        %v2283 = vmax.f32 %v2189, 0.0
        %v2284 = vmax.f32 %v2194, 0.0
        %v2285 = vmax.f32 %v2197, 0.0
        %v2286 = vmax.f32 %v2202, 0.0
        %v2287 = vmax.f32 %v2205, 0.0
        %v2288 = vmax.f32 %v2210, 0.0
        %v2289 = vmax.f32 %v2213, 0.0
        %v2290 = vmax.f32 %v2218, 0.0
        %v2291 = vmax.f32 %v2221, 0.0
        %v2292 = vmax.f32 %v2226, 0.0
        %v2293 = vmax.f32 %v2229, 0.0
        %v2294 = vmax.f32 %v2234, 0.0
        %v2295 = vmax.f32 %v2237, 0.0
        %v2296 = vmax.f32 %v2242, 0.0
        %v2297 = vmax.f32 %v2245, 0.0
        %v2298 = vmax.f32 %v2250, 0.0
        %v2299 = vmax.f32 %v2253, 0.0
        %v2300 = vmax.f32 %v2258, 0.0
        %v2301 = vmax.f32 %v2261, 0.0
        %v2302 = vmax.f32 %v2266, 0.0
        %v2303 = vmax.f32 %v2269, 0.0
        %v2304 = vpack.c.bf16 %v2273, %v2272
        %v2305 = vpack.c.bf16 %v2275, %v2274
        %v2306 = vpack.c.bf16 %v2277, %v2276
        %v2307 = vpack.c.bf16 %v2279, %v2278
        %v2308 = vpack.c.bf16 %v2281, %v2280
        %v2309 = vpack.c.bf16 %v2283, %v2282
        %v2310 = vpack.c.bf16 %v2285, %v2284
        %v2311 = vpack.c.bf16 %v2287, %v2286
        %v2312 = vpack.c.bf16 %v2289, %v2288
        %v2313 = vpack.c.bf16 %v2291, %v2290
        %v2314 = vpack.c.bf16 %v2293, %v2292
        %v2315 = vpack.c.bf16 %v2295, %v2294
        %v2316 = vpack.c.bf16 %v2297, %v2296
        %v2317 = vpack.c.bf16 %v2299, %v2298
        %v2318 = vpack.c.bf16 %v2301, %v2300
        %v2319 = vpack.c.bf16 %v2303, %v2302
        %v2320 = vld [vmem:[#allocation5] sm:$0xf]
        %v2321 = vld [vmem:[#allocation5 + $0x4] sm:$0xf]
        %v2322 = vld [vmem:[#allocation5 + $0x8] sm:$0xf]
        %v2323 = vld [vmem:[#allocation5 + $0xc] sm:$0xf]
        %v2324 = vld [vmem:[#allocation5 + $0x10] sm:$0xf]
        %v2325 = vld [vmem:[#allocation5 + $0x14] sm:$0xf]
        %v2326 = vld [vmem:[#allocation5 + $0x18] sm:$0xf]
        %v2327 = vld [vmem:[#allocation5 + $0x1c] sm:$0xf]
        %v2328 = vld [vmem:[#allocation5 + $0x20] sm:$0xf]
        %v2329 = vld [vmem:[#allocation5 + $0x24] sm:$0xf]
        %v2330 = vld [vmem:[#allocation5 + $0x28] sm:$0xf]
        %v2331 = vld [vmem:[#allocation5 + $0x2c] sm:$0xf]
        %v2332 = vld [vmem:[#allocation5 + $0x30] sm:$0xf]
        %v2333 = vld [vmem:[#allocation5 + $0x34] sm:$0xf]
        %v2334 = vld [vmem:[#allocation5 + $0x38] sm:$0xf]
        %v2335 = vld [vmem:[#allocation5 + $0x3c] sm:$0xf]
        %v2336 = vld [vmem:[%s14] sm:$0x1]
        %v2338 = vlaneseq
        %v2339 = vshrl.u32 %v2338, 7
        %v2340 = vsub.s32 0, %v2339
        %v2341 = vrot.slane %v2336, %v2340
        %v2359 = vunpack.c.l.b16 %v2320
        %v2360 = vunpack.c.l.b16 %v2321
        %v2361 = vunpack.c.l.b16 %v2322
        %v2362 = vunpack.c.l.b16 %v2323
        %v2363 = vunpack.c.l.b16 %v2324
        %v2364 = vunpack.c.l.b16 %v2325
        %v2365 = vunpack.c.l.b16 %v2326
        %v2366 = vunpack.c.l.b16 %v2327
        %v2367 = vunpack.c.l.b16 %v2328
        %v2368 = vunpack.c.l.b16 %v2329
        %v2369 = vunpack.c.l.b16 %v2330
        %v2370 = vunpack.c.l.b16 %v2331
        %v2371 = vunpack.c.l.b16 %v2332
        %v2372 = vunpack.c.l.b16 %v2333
        %v2373 = vunpack.c.l.b16 %v2334
        %v2374 = vunpack.c.l.b16 %v2335
        %v2375 = vpack.c.b16 %v2360, %v2359
        %v2376 = vpack.c.b16 %v2362, %v2361
        %v2377 = vpack.c.b16 %v2364, %v2363
        %v2378 = vpack.c.b16 %v2366, %v2365
        %v2379 = vpack.c.b16 %v2368, %v2367
        %v2380 = vpack.c.b16 %v2370, %v2369
        %v2381 = vpack.c.b16 %v2372, %v2371
        %v2382 = vpack.c.b16 %v2374, %v2373
        %2391 = vmatprep.subr.bf16.mxu0 0
        %2392 = vmatpush1.bf16.msra.mxu0 %v2382
        %2393 = vmatprep.subr.bf16.mxu0 0
        %2394 = vmatpush1.bf16.msra.mxu0 %v2381
        %2395 = vmatprep.subr.bf16.mxu0 0
        %2396 = vmatpush1.bf16.msra.mxu0 %v2380
        %2397 = vmatprep.subr.bf16.mxu0 0
        %2398 = vmatpush1.bf16.msra.mxu0 %v2379
        %2399 = vmatprep.subr.bf16.mxu0 0
        %2400 = vmatpush1.bf16.msra.mxu0 %v2378
        %2401 = vmatprep.subr.bf16.mxu0 0
        %2402 = vmatpush1.bf16.msra.mxu0 %v2377
        %2403 = vmatprep.subr.bf16.mxu0 0
        %2404 = vmatpush1.bf16.msra.mxu0 %v2376
        %2405 = vmatprep.subr.bf16.mxu0 0
        %2406 = vmatpush1.bf16.msra.mxu0 %v2375
        %2407 = vmatprep.subr.bf16.mxu0 0
        %2408 = vmatpush2.bf16.msra.mxu0 0
        %2409 = vmatprep.subr.bf16.mxu0 0
        %2410 = vmatpush2.bf16.msra.mxu0 0
        %2411 = vmatprep.subr.bf16.mxu0 0
        %2412 = vmatpush2.bf16.msra.mxu0 0
        %2413 = vmatprep.subr.bf16.mxu0 0
        %2414 = vmatpush2.bf16.msra.mxu0 0
        %2415 = vmatprep.subr.bf16.mxu0 0
        %2416 = vmatpush2.bf16.msra.mxu0 0
        %2417 = vmatprep.subr.bf16.mxu0 0
        %2418 = vmatpush2.bf16.msra.mxu0 0
        %2419 = vmatprep.subr.bf16.mxu0 0
        %2420 = vmatpush2.bf16.msra.mxu0 0
        %2421 = vmatprep.subr.bf16.mxu0 0
        %2422 = vmatpush2.bf16.msra.mxu0 0
        %2423 = vmatprep.mubr.bf16.mxu0 0
        %2424 = vmatmul.mubr.bf16.gmra.mxu0 %v2304
        %v2425 = vpop.f32.mrf.mxu0
        %v2426 = vadd.f32 %v2341, %v2425
        %v2427 = vpop.f32.mrf.mxu0
        %v2428 = vpop.f32.mrf.mxu0
        %v2429 = vadd.f32 %v2341, %v2428
        %v2430 = vpop.f32.mrf.mxu0
        %2431 = vmatprep.mubr.bf16.mxu0 0
        %2432 = vmatmul.mubr.bf16.gmra.mxu0 %v2305
        %v2433 = vpop.f32.mrf.mxu0
        %v2434 = vadd.f32 %v2341, %v2433
        %v2435 = vpop.f32.mrf.mxu0
        %v2436 = vpop.f32.mrf.mxu0
        %v2437 = vadd.f32 %v2341, %v2436
        %v2438 = vpop.f32.mrf.mxu0
        %2439 = vmatprep.mubr.bf16.mxu0 0
        %2440 = vmatmul.mubr.bf16.gmra.mxu0 %v2306
        %v2441 = vpop.f32.mrf.mxu0
        %v2442 = vadd.f32 %v2341, %v2441
        %v2443 = vpop.f32.mrf.mxu0
        %v2444 = vpop.f32.mrf.mxu0
        %v2445 = vadd.f32 %v2341, %v2444
        %v2446 = vpop.f32.mrf.mxu0
        %2447 = vmatprep.mubr.bf16.mxu0 0
        %2448 = vmatmul.mubr.bf16.gmra.mxu0 %v2307
        %v2449 = vpop.f32.mrf.mxu0
        %v2450 = vadd.f32 %v2341, %v2449
        %v2451 = vpop.f32.mrf.mxu0
        %v2452 = vpop.f32.mrf.mxu0
        %v2453 = vadd.f32 %v2341, %v2452
        %v2454 = vpop.f32.mrf.mxu0
        %2455 = vmatprep.mubr.bf16.mxu0 0
        %2456 = vmatmul.mubr.bf16.gmra.mxu0 %v2308
        %v2457 = vpop.f32.mrf.mxu0
        %v2458 = vadd.f32 %v2341, %v2457
        %v2459 = vpop.f32.mrf.mxu0
        %v2460 = vpop.f32.mrf.mxu0
        %v2461 = vadd.f32 %v2341, %v2460
        %v2462 = vpop.f32.mrf.mxu0
        %2463 = vmatprep.mubr.bf16.mxu0 0
        %2464 = vmatmul.mubr.bf16.gmra.mxu0 %v2309
        %v2465 = vpop.f32.mrf.mxu0
        %v2466 = vadd.f32 %v2341, %v2465
        %v2467 = vpop.f32.mrf.mxu0
        %v2468 = vpop.f32.mrf.mxu0
        %v2469 = vadd.f32 %v2341, %v2468
        %v2470 = vpop.f32.mrf.mxu0
        %2471 = vmatprep.mubr.bf16.mxu0 0
        %2472 = vmatmul.mubr.bf16.gmra.mxu0 %v2310
        %v2473 = vpop.f32.mrf.mxu0
        %v2474 = vadd.f32 %v2341, %v2473
        %v2475 = vpop.f32.mrf.mxu0
        %v2476 = vpop.f32.mrf.mxu0
        %v2477 = vadd.f32 %v2341, %v2476
        %v2478 = vpop.f32.mrf.mxu0
        %2479 = vmatprep.mubr.bf16.mxu0 0
        %2480 = vmatmul.mubr.bf16.gmra.mxu0 %v2311
        %v2481 = vpop.f32.mrf.mxu0
        %v2482 = vadd.f32 %v2341, %v2481
        %v2483 = vpop.f32.mrf.mxu0
        %v2484 = vpop.f32.mrf.mxu0
        %v2485 = vadd.f32 %v2341, %v2484
        %v2486 = vpop.f32.mrf.mxu0
        %2487 = vmatprep.mubr.bf16.mxu0 0
        %2488 = vmatmul.mubr.bf16.gmra.mxu0 %v2312
        %v2489 = vpop.f32.mrf.mxu0
        %v2490 = vadd.f32 %v2341, %v2489
        %v2491 = vpop.f32.mrf.mxu0
        %v2492 = vpop.f32.mrf.mxu0
        %v2493 = vadd.f32 %v2341, %v2492
        %v2494 = vpop.f32.mrf.mxu0
        %2495 = vmatprep.mubr.bf16.mxu0 0
        %2496 = vmatmul.mubr.bf16.gmra.mxu0 %v2313
        %v2497 = vpop.f32.mrf.mxu0
        %v2498 = vadd.f32 %v2341, %v2497
        %v2499 = vpop.f32.mrf.mxu0
        %v2500 = vpop.f32.mrf.mxu0
        %v2501 = vadd.f32 %v2341, %v2500
        %v2502 = vpop.f32.mrf.mxu0
        %2503 = vmatprep.mubr.bf16.mxu0 0
        %2504 = vmatmul.mubr.bf16.gmra.mxu0 %v2314
        %v2505 = vpop.f32.mrf.mxu0
        %v2506 = vadd.f32 %v2341, %v2505
        %v2507 = vpop.f32.mrf.mxu0
        %v2508 = vpop.f32.mrf.mxu0
        %v2509 = vadd.f32 %v2341, %v2508
        %v2510 = vpop.f32.mrf.mxu0
        %2511 = vmatprep.mubr.bf16.mxu0 0
        %2512 = vmatmul.mubr.bf16.gmra.mxu0 %v2315
        %v2513 = vpop.f32.mrf.mxu0
        %v2514 = vadd.f32 %v2341, %v2513
        %v2515 = vpop.f32.mrf.mxu0
        %v2516 = vpop.f32.mrf.mxu0
        %v2517 = vadd.f32 %v2341, %v2516
        %v2518 = vpop.f32.mrf.mxu0
        %2519 = vmatprep.mubr.bf16.mxu0 0
        %2520 = vmatmul.mubr.bf16.gmra.mxu0 %v2316
        %v2521 = vpop.f32.mrf.mxu0
        %v2522 = vadd.f32 %v2341, %v2521
        %v2523 = vpop.f32.mrf.mxu0
        %v2524 = vpop.f32.mrf.mxu0
        %v2525 = vadd.f32 %v2341, %v2524
        %v2526 = vpop.f32.mrf.mxu0
        %2527 = vmatprep.mubr.bf16.mxu0 0
        %2528 = vmatmul.mubr.bf16.gmra.mxu0 %v2317
        %v2529 = vpop.f32.mrf.mxu0
        %v2530 = vadd.f32 %v2341, %v2529
        %v2531 = vpop.f32.mrf.mxu0
        %v2532 = vpop.f32.mrf.mxu0
        %v2533 = vadd.f32 %v2341, %v2532
        %v2534 = vpop.f32.mrf.mxu0
        %2535 = vmatprep.mubr.bf16.mxu0 0
        %2536 = vmatmul.mubr.bf16.gmra.mxu0 %v2318
        %v2537 = vpop.f32.mrf.mxu0
        %v2538 = vadd.f32 %v2341, %v2537
        %v2539 = vpop.f32.mrf.mxu0
        %v2540 = vpop.f32.mrf.mxu0
        %v2541 = vadd.f32 %v2341, %v2540
        %v2542 = vpop.f32.mrf.mxu0
        %2543 = vmatprep.mubr.bf16.mxu0 0
        %2544 = vmatmul.mubr.bf16.gmra.mxu0 %v2319
        %v2545 = vpop.f32.mrf.mxu0
        %v2546 = vadd.f32 %v2341, %v2545
        %v2547 = vpop.f32.mrf.mxu0
        %v2548 = vpop.f32.mrf.mxu0
        %v2549 = vadd.f32 %v2341, %v2548
        %v2550 = vpop.f32.mrf.mxu0
        %2551 = vdwg.mxu0
        %2552 = vst [vmem:[%s518] sm:$0xff] %v2426
        %2553 = vst [vmem:[%s518 + $0x8] sm:$0xff] %v2429
        %2554 = vst [vmem:[%s518 + $0x10] sm:$0xff] %v2434
        %2555 = vst [vmem:[%s518 + $0x18] sm:$0xff] %v2437
        %2556 = vst [vmem:[%s518 + $0x20] sm:$0xff] %v2442
        %2557 = vst [vmem:[%s518 + $0x28] sm:$0xff] %v2445
        %2558 = vst [vmem:[%s518 + $0x30] sm:$0xff] %v2450
        %2559 = vst [vmem:[%s518 + $0x38] sm:$0xff] %v2453
        %2560 = vst [vmem:[%s518 + $0x40] sm:$0xff] %v2458
        %2561 = vst [vmem:[%s518 + $0x48] sm:$0xff] %v2461
        %2562 = vst [vmem:[%s518 + $0x50] sm:$0xff] %v2466
        %2563 = vst [vmem:[%s518 + $0x58] sm:$0xff] %v2469
        %2564 = vst [vmem:[%s518 + $0x60] sm:$0xff] %v2474
        %2565 = vst [vmem:[%s518 + $0x68] sm:$0xff] %v2477
        %2566 = vst [vmem:[%s518 + $0x70] sm:$0xff] %v2482
        %2567 = vst [vmem:[%s518 + $0x78] sm:$0xff] %v2485
        %2568 = vst [vmem:[%s518 + $0x80] sm:$0xff] %v2490
        %2569 = vst [vmem:[%s518 + $0x88] sm:$0xff] %v2493
        %2570 = vst [vmem:[%s518 + $0x90] sm:$0xff] %v2498
        %2571 = vst [vmem:[%s518 + $0x98] sm:$0xff] %v2501
        %2572 = vst [vmem:[%s518 + $0xa0] sm:$0xff] %v2506
        %2573 = vst [vmem:[%s518 + $0xa8] sm:$0xff] %v2509
        %2574 = vst [vmem:[%s518 + $0xb0] sm:$0xff] %v2514
        %2575 = vst [vmem:[%s518 + $0xb8] sm:$0xff] %v2517
        %2576 = vst [vmem:[%s518 + $0xc0] sm:$0xff] %v2522
        %2577 = vst [vmem:[%s518 + $0xc8] sm:$0xff] %v2525
        %2578 = vst [vmem:[%s518 + $0xd0] sm:$0xff] %v2530
        %2579 = vst [vmem:[%s518 + $0xd8] sm:$0xff] %v2533
        %2580 = vst [vmem:[%s518 + $0xe0] sm:$0xff] %v2538
        %2581 = vst [vmem:[%s518 + $0xe8] sm:$0xff] %v2541
        %2582 = vst [vmem:[%s518 + $0xf0] sm:$0xff] %v2546
        %2583 = vst [vmem:[%s518 + $0xf8] sm:$0xff] %v2549
        %s2584 = sand.u32 %s359, 1
        %s2585 = scalar_lea.sflag [#allocation4], %s2584
        %s2586 = sand.u32 %s359, 1
        %s2587 = smul.addr %s2586, 256
        %s2588 = scalar_lea.vmem [#allocation7], %s2587
        // Predicated region
        $region89: #{tpu_custom_call.1} parent=79 // pred_check
          %p2589 = pneg %p369
        $region90: #{tpu_custom_call.1} parent=79 // pred_check_branch
          %2591 = sbr.rel (%p2589) target = $region92
        $region91: #{tpu_custom_call.1} parent=79 // pred_region
          %s2592 = smul.u32 32, %s31
          %s2594 = ssub.s32 4096, 4096
          %2595 = vsyncadd %s2585, %s2594
          %s2596 = smul.addr %s2592, 128
          %s2597 = scalar_lea.hbm %s15, %s2596
          %s2598 = sshll.u32 %s2588, 4
          %s2599 = int_to_ptr.vmem [resolvable:$true] %s2598
          %2604 = dma.vmem_to_hbm [thread:$0]  %s2599, 4096, %s2597, %s2585, 128, 128, 8
        $region92: #{tpu_custom_call.1} parent=79 // pred_fallthru
          _
      $region80: #{tpu_custom_call.1} parent=5 // pred_fallthru
        _
      %p2605 = scmp.le.s32.totalorder 2, %s26
      // Predicated region
      $region93: #{tpu_custom_call.1} parent=5 // pred_check
        %p2606 = pneg %p2605
      $region94: #{tpu_custom_call.1} parent=5 // pred_check_branch
        %2608 = sbr.rel (%p2606) target = $region96
      $region95: #{tpu_custom_call.1} parent=5 // pred_region
        %s2609 = ssub.s32 %s26, 2
        // Predicated region
        $region97: #{tpu_custom_call.1} parent=95 // pred_check
          %p2610 = pneg %p375
        $region98: #{tpu_custom_call.1} parent=95 // pred_check_branch
          %2612 = sbr.rel (%p2610) target = $region100
        $region99: #{tpu_custom_call.1} parent=95 // pred_region
          %s2613 = sand.u32 %s360, 1
          %s2614 = scalar_lea.sflag [#allocation4], %s2613
          %s2615 = sand.u32 %s360, 1
          %s2616 = smul.addr %s2615, 256
          %s2617 = scalar_lea.vmem [#allocation7], %s2616
          %2618 = dma.done %s2614, 4096
        $region100: #{tpu_custom_call.1} parent=95 // pred_fallthru
          _
      $region96: #{tpu_custom_call.1} parent=5 // pred_fallthru
        _
    $region6: #{tpu_custom_call.1} parent=1 // loop_footer
      %s30 = sadd.s32 1, %s26
    $region7: #{tpu_custom_call.1} parent=1 // loop_footer_branch
      %25 = sbr.rel target = $region3
    $region8: #{tpu_custom_call.1} parent=1 // loop_exit
      _
    %2619 = vsyncpa [#allocation3], 1
    %s2620 = scalar_lea.sflag [#allocation3], 1
    %2621 = vsyncpa %s2620, 1
    %2622 = vsyncpa [#allocation6], 1
    %2623 = vsyncpa [#allocation4], 1
    %s2624 = scalar_lea.sflag [#allocation4], 1
    %2625 = vsyncpa %s2624, 1

// kernel: tpu_custom_call.1
$region0: #{tpu_custom_call.1}
  #allocation0 [shape = 'u32[]', space=smem, size = 0x4, offset = 0x4, fixed_abs, tag = 'smem constant byte address 0x4 - core index']
  #allocation1 [shape = 'u32[144,128]{1,0:T(1,128)}', space=vmem, size = 0x12000, scoped, tag = 'internal scratch']
  %s0 = inlined_call_operand.vmem [shape: bf16[512,32], index: 0, kind: input, shape index: {}]
  %s1 = inlined_call_operand.hbm [shape: bf16[32,128], index: 1, kind: input, shape index: {}]
  %s2 = inlined_call_operand.vmem [shape: f32[1,128], index: 2, kind: input, shape index: {}]
  %s3 = inlined_call_operand.vmem [shape: bf16[128,128], index: 3, kind: input, shape index: {}]
  %s4 = inlined_call_operand.vmem [shape: f32[1,128], index: 4, kind: input, shape index: {}]
  %s5 = inlined_call_operand.vmem [shape: bf16[128,128], index: 5, kind: input, shape index: {}]
  %s6 = inlined_call_operand.vmem [shape: f32[1,128], index: 6, kind: input, shape index: {}]
  %s7 = inlined_call_operand.vmem [shape: bf16[128,128], index: 7, kind: input, shape index: {}]
  %s8 = inlined_call_operand.vmem [shape: f32[1,128], index: 8, kind: input, shape index: {}]
  %s9 = inlined_call_operand.vmem [shape: bf16[128,128], index: 9, kind: input, shape index: {}]
  %s10 = inlined_call_operand.vmem [shape: f32[1,128], index: 10, kind: input, shape index: {}]
  %s11 = inlined_call_operand.vmem [shape: bf16[128,128], index: 11, kind: input, shape index: {}]
  %s12 = inlined_call_operand.vmem [shape: f32[1,128], index: 12, kind: input, shape index: {}]
  %s13 = inlined_call_operand.hbm [shape: bf16[128,128], index: 13, kind: input, shape index: {}]
  %s14 = inlined_call_operand.vmem [shape: f32[1,128], index: 14, kind: input, shape index: {}]
  %s15 = inlined_call_operand.hbm [shape: f32[512,128], index: 15, kind: output, shape index: {}]
  %s16 = sld [smem:[#allocation0]]
  $region101: #{tpu_custom_call.1} parent=0
    _
  %s18 = ssub.s32 1, %s16
  %s19 = scalar_select 0, %s18, %s16
  $region1: #{tpu_custom_call.1} parent=0
    #allocation2 [shape = 'u8[8192]{0}', space=vmem, size = 0x2000, scoped, tag = 'input window, operand 1, single buffered']
    #allocation3 [shape = 's32[2]{0}', space=sflag, size = 0x8, scoped, tag = 'scoped memory for tpu_custom_call.1']
    #allocation4 [shape = 's32[2]{0}', space=sflag, size = 0x8, scoped, tag = 'scoped memory for tpu_custom_call.1']
    #allocation5 [shape = 'u8[32768]{0}', space=vmem, size = 0x8000, scoped, tag = 'input window, operand 13, single buffered']
    #allocation6 [shape = 's32[1]{0}', space=sflag, size = 0x4, scoped, tag = 'scoped memory for tpu_custom_call.1']
    #allocation7 [shape = 'u8[262144]{0}', space=vmem, size = 0x40000, scoped, tag = 'output window, operand 0']
    %20 = vsyncpa [#allocation3], 0
    %21 = vsyncpa [#allocation6], 0
    %22 = vsyncpa [#allocation4], 0
    %s23 = scalar_lea.sflag [#allocation4], 1
    %24 = vsyncpa %s23, 0
    loop: start=0, step=1, limit=4
    $region2: #{tpu_custom_call.1} parent=1 // loop_pre_header
      _
    $region3: #{tpu_custom_call.1} parent=1 // loop_header
      %s26 = sphi 0, %s30
      %p27 = scmp.ge.s32.totalorder %s26, 4
      %s36 = sphi 0, %s38
      %s39 = sphi 0, %s36
      %s40 = sphi 0, %s39
      %s56 = sphi 0, %s40
      %s60 = sphi 0, %s60
      %s62 = sphi 0, %s60
      %s63 = sphi 0, %s62
      %s77 = sphi 0, %s63
      %s81 = sphi 0, %s81
      %s83 = sphi 0, %s81
      %s84 = sphi 0, %s83
      %s98 = sphi 0, %s84
      %s102 = sphi 0, %s102
      %s104 = sphi 0, %s102
      %s105 = sphi 0, %s104
      %s119 = sphi 0, %s105
      %s123 = sphi 0, %s123
      %s125 = sphi 0, %s123
      %s126 = sphi 0, %s125
      %s140 = sphi 0, %s126
      %s144 = sphi 0, %s144
      %s146 = sphi 0, %s144
      %s147 = sphi 0, %s146
      %s161 = sphi 0, %s147
      %s165 = sphi 0, %s165
      %s167 = sphi 0, %s165
      %s168 = sphi 0, %s167
      %s182 = sphi 0, %s168
      %s186 = sphi 0, %s186
      %s188 = sphi 0, %s186
      %s189 = sphi 0, %s188
      %s203 = sphi 0, %s189
      %s207 = sphi 0, %s207
      %s209 = sphi 0, %s207
      %s210 = sphi 0, %s209
      %s224 = sphi 0, %s210
      %s228 = sphi 0, %s228
      %s230 = sphi 0, %s228
      %s231 = sphi 0, %s230
      %s245 = sphi 0, %s231
      %s249 = sphi 0, %s249
      %s251 = sphi 0, %s249
      %s252 = sphi 0, %s251
      %s266 = sphi 0, %s252
      %s270 = sphi 0, %s270
      %s272 = sphi 0, %s270
      %s273 = sphi 0, %s272
      %s287 = sphi 0, %s273
      %s291 = sphi 0, %s291
      %s293 = sphi 0, %s291
      %s294 = sphi 0, %s293
      %s308 = sphi 0, %s294
      %s312 = sphi 0, %s312
      %s314 = sphi 0, %s312
      %s315 = sphi 0, %s314
      %s329 = sphi 0, %s315
      %s333 = sphi 0, %s333
      %s335 = sphi 0, %s333
      %s336 = sphi 0, %s335
      %s350 = sphi 0, %s336
      %s356 = sphi 0, %s358
      %s359 = sphi 0, %s356
      %s360 = sphi 0, %s359
      %s376 = sphi 0, %s360
    $region4: #{tpu_custom_call.1} parent=1 // loop_header_branch
      %29 = sbr.rel (%p27) target = $region8
    $region5: #{tpu_custom_call.1} parent=1 // loop_body
      %s31 = ssub.s32 %s26, 1
      %s32 = ssub.s32 %s26, 2
      %s33 = sadd.s32 %s26, 1
      %s34 = ssub.s32 %s26, %s33
      %p35 = scmp.eq.s32.totalorder %s34, 0
      %s37 = sadd.s32 %s36, 1
      %s38 = scalar_select %p35, %s36, %s37
      %p41 = pneg %p35
      %p42 = scmp.eq.s32.totalorder %s26, 1
      %p43 = por %p41, %p42
      %p44 = scmp.ne.s32.totalorder %s36, %s39
      %p45 = scmp.eq.s32.totalorder %s26, 0
      %p46 = por %p44, %p45
      %p47 = scmp.ne.s32.totalorder %s36, %s39
      %p48 = scmp.eq.s32.totalorder %s31, 1
      %p49 = por %p47, %p48
      %p50 = scmp.ne.s32.totalorder %s39, %s40
      %p51 = scmp.eq.s32.totalorder %s31, 0
      %p52 = por %p50, %p51
      %p53 = scmp.ne.s32.totalorder %s39, %s40
      %p54 = scmp.eq.s32.totalorder %s32, 1
      %p55 = por %p53, %p54
      %p57 = scmp.ne.s32.totalorder %s40, %s56
      %p58 = scmp.eq.s32.totalorder %s32, 0
      %p59 = por %p57, %p58
      %s61 = sadd.s32 %s60, 1
      %p64 = scmp.eq.s32.totalorder %s26, 1
      %p65 = scmp.ne.s32.totalorder %s60, %s62
      %p66 = scmp.eq.s32.totalorder %s26, 0
      %p67 = por %p65, %p66
      %p68 = scmp.ne.s32.totalorder %s60, %s62
      %p69 = scmp.eq.s32.totalorder %s31, 1
      %p70 = por %p68, %p69
      %p71 = scmp.ne.s32.totalorder %s62, %s63
      %p72 = scmp.eq.s32.totalorder %s31, 0
      %p73 = por %p71, %p72
      %p74 = scmp.ne.s32.totalorder %s62, %s63
      %p75 = scmp.eq.s32.totalorder %s32, 1
      %p76 = por %p74, %p75
      %p78 = scmp.ne.s32.totalorder %s63, %s77
      %p79 = scmp.eq.s32.totalorder %s32, 0
      %p80 = por %p78, %p79
      %s82 = sadd.s32 %s81, 1
      %p85 = scmp.eq.s32.totalorder %s26, 1
      %p86 = scmp.ne.s32.totalorder %s81, %s83
      %p87 = scmp.eq.s32.totalorder %s26, 0
      %p88 = por %p86, %p87
      %p89 = scmp.ne.s32.totalorder %s81, %s83
      %p90 = scmp.eq.s32.totalorder %s31, 1
      %p91 = por %p89, %p90
      %p92 = scmp.ne.s32.totalorder %s83, %s84
      %p93 = scmp.eq.s32.totalorder %s31, 0
      %p94 = por %p92, %p93
      %p95 = scmp.ne.s32.totalorder %s83, %s84
      %p96 = scmp.eq.s32.totalorder %s32, 1
      %p97 = por %p95, %p96
      %p99 = scmp.ne.s32.totalorder %s84, %s98
      %p100 = scmp.eq.s32.totalorder %s32, 0
      %p101 = por %p99, %p100
      %s103 = sadd.s32 %s102, 1
      %p106 = scmp.eq.s32.totalorder %s26, 1
      %p107 = scmp.ne.s32.totalorder %s102, %s104
      %p108 = scmp.eq.s32.totalorder %s26, 0
      %p109 = por %p107, %p108
      %p110 = scmp.ne.s32.totalorder %s102, %s104
      %p111 = scmp.eq.s32.totalorder %s31, 1
      %p112 = por %p110, %p111
      %p113 = scmp.ne.s32.totalorder %s104, %s105
      %p114 = scmp.eq.s32.totalorder %s31, 0
      %p115 = por %p113, %p114
      %p116 = scmp.ne.s32.totalorder %s104, %s105
      %p117 = scmp.eq.s32.totalorder %s32, 1
      %p118 = por %p116, %p117
      %p120 = scmp.ne.s32.totalorder %s105, %s119
      %p121 = scmp.eq.s32.totalorder %s32, 0
      %p122 = por %p120, %p121
      %s124 = sadd.s32 %s123, 1
      %p127 = scmp.eq.s32.totalorder %s26, 1
      %p128 = scmp.ne.s32.totalorder %s123, %s125
      %p129 = scmp.eq.s32.totalorder %s26, 0
      %p130 = por %p128, %p129
      %p131 = scmp.ne.s32.totalorder %s123, %s125
      %p132 = scmp.eq.s32.totalorder %s31, 1
      %p133 = por %p131, %p132
      %p134 = scmp.ne.s32.totalorder %s125, %s126
      %p135 = scmp.eq.s32.totalorder %s31, 0
      %p136 = por %p134, %p135
      %p137 = scmp.ne.s32.totalorder %s125, %s126
      %p138 = scmp.eq.s32.totalorder %s32, 1
      %p139 = por %p137, %p138
      %p141 = scmp.ne.s32.totalorder %s126, %s140
      %p142 = scmp.eq.s32.totalorder %s32, 0
      %p143 = por %p141, %p142
      %s145 = sadd.s32 %s144, 1
      %p148 = scmp.eq.s32.totalorder %s26, 1
      %p149 = scmp.ne.s32.totalorder %s144, %s146
      %p150 = scmp.eq.s32.totalorder %s26, 0
      %p151 = por %p149, %p150
      %p152 = scmp.ne.s32.totalorder %s144, %s146
      %p153 = scmp.eq.s32.totalorder %s31, 1
      %p154 = por %p152, %p153
      %p155 = scmp.ne.s32.totalorder %s146, %s147
      %p156 = scmp.eq.s32.totalorder %s31, 0
      %p157 = por %p155, %p156
      %p158 = scmp.ne.s32.totalorder %s146, %s147
      %p159 = scmp.eq.s32.totalorder %s32, 1
      %p160 = por %p158, %p159
      %p162 = scmp.ne.s32.totalorder %s147, %s161
      %p163 = scmp.eq.s32.totalorder %s32, 0
      %p164 = por %p162, %p163
      %s166 = sadd.s32 %s165, 1
      %p169 = scmp.eq.s32.totalorder %s26, 1
      %p170 = scmp.ne.s32.totalorder %s165, %s167
      %p171 = scmp.eq.s32.totalorder %s26, 0
      %p172 = por %p170, %p171
      %p173 = scmp.ne.s32.totalorder %s165, %s167
      %p174 = scmp.eq.s32.totalorder %s31, 1
      %p175 = por %p173, %p174
      %p176 = scmp.ne.s32.totalorder %s167, %s168
      %p177 = scmp.eq.s32.totalorder %s31, 0
      %p178 = por %p176, %p177
      %p179 = scmp.ne.s32.totalorder %s167, %s168
      %p180 = scmp.eq.s32.totalorder %s32, 1
      %p181 = por %p179, %p180
      %p183 = scmp.ne.s32.totalorder %s168, %s182
      %p184 = scmp.eq.s32.totalorder %s32, 0
      %p185 = por %p183, %p184
      %s187 = sadd.s32 %s186, 1
      %p190 = scmp.eq.s32.totalorder %s26, 1
      %p191 = scmp.ne.s32.totalorder %s186, %s188
      %p192 = scmp.eq.s32.totalorder %s26, 0
      %p193 = por %p191, %p192
      %p194 = scmp.ne.s32.totalorder %s186, %s188
      %p195 = scmp.eq.s32.totalorder %s31, 1
      %p196 = por %p194, %p195
      %p197 = scmp.ne.s32.totalorder %s188, %s189
      %p198 = scmp.eq.s32.totalorder %s31, 0
      %p199 = por %p197, %p198
      %p200 = scmp.ne.s32.totalorder %s188, %s189
      %p201 = scmp.eq.s32.totalorder %s32, 1
      %p202 = por %p200, %p201
      %p204 = scmp.ne.s32.totalorder %s189, %s203
      %p205 = scmp.eq.s32.totalorder %s32, 0
      %p206 = por %p204, %p205
      %s208 = sadd.s32 %s207, 1
      %p211 = scmp.eq.s32.totalorder %s26, 1
      %p212 = scmp.ne.s32.totalorder %s207, %s209
      %p213 = scmp.eq.s32.totalorder %s26, 0
      %p214 = por %p212, %p213
      %p215 = scmp.ne.s32.totalorder %s207, %s209
      %p216 = scmp.eq.s32.totalorder %s31, 1
      %p217 = por %p215, %p216
      %p218 = scmp.ne.s32.totalorder %s209, %s210
      %p219 = scmp.eq.s32.totalorder %s31, 0
      %p220 = por %p218, %p219
      %p221 = scmp.ne.s32.totalorder %s209, %s210
      %p222 = scmp.eq.s32.totalorder %s32, 1
      %p223 = por %p221, %p222
      %p225 = scmp.ne.s32.totalorder %s210, %s224
      %p226 = scmp.eq.s32.totalorder %s32, 0
      %p227 = por %p225, %p226
      %s229 = sadd.s32 %s228, 1
      %p232 = scmp.eq.s32.totalorder %s26, 1
      %p233 = scmp.ne.s32.totalorder %s228, %s230
      %p234 = scmp.eq.s32.totalorder %s26, 0
      %p235 = por %p233, %p234
      %p236 = scmp.ne.s32.totalorder %s228, %s230
      %p237 = scmp.eq.s32.totalorder %s31, 1
      %p238 = por %p236, %p237
      %p239 = scmp.ne.s32.totalorder %s230, %s231
      %p240 = scmp.eq.s32.totalorder %s31, 0
      %p241 = por %p239, %p240
      %p242 = scmp.ne.s32.totalorder %s230, %s231
      %p243 = scmp.eq.s32.totalorder %s32, 1
      %p244 = por %p242, %p243
      %p246 = scmp.ne.s32.totalorder %s231, %s245
      %p247 = scmp.eq.s32.totalorder %s32, 0
      %p248 = por %p246, %p247
      %s250 = sadd.s32 %s249, 1
      %p253 = scmp.eq.s32.totalorder %s26, 1
      %p254 = scmp.ne.s32.totalorder %s249, %s251
      %p255 = scmp.eq.s32.totalorder %s26, 0
      %p256 = por %p254, %p255
      %p257 = scmp.ne.s32.totalorder %s249, %s251
      %p258 = scmp.eq.s32.totalorder %s31, 1
      %p259 = por %p257, %p258
      %p260 = scmp.ne.s32.totalorder %s251, %s252
      %p261 = scmp.eq.s32.totalorder %s31, 0
      %p262 = por %p260, %p261
      %p263 = scmp.ne.s32.totalorder %s251, %s252
      %p264 = scmp.eq.s32.totalorder %s32, 1
      %p265 = por %p263, %p264
      %p267 = scmp.ne.s32.totalorder %s252, %s266
      %p268 = scmp.eq.s32.totalorder %s32, 0
      %p269 = por %p267, %p268
      %s271 = sadd.s32 %s270, 1
      %p274 = scmp.eq.s32.totalorder %s26, 1
      %p275 = scmp.ne.s32.totalorder %s270, %s272
      %p276 = scmp.eq.s32.totalorder %s26, 0
      %p277 = por %p275, %p276
      %p278 = scmp.ne.s32.totalorder %s270, %s272
      %p279 = scmp.eq.s32.totalorder %s31, 1
      %p280 = por %p278, %p279
      %p281 = scmp.ne.s32.totalorder %s272, %s273
      %p282 = scmp.eq.s32.totalorder %s31, 0
      %p283 = por %p281, %p282
      %p284 = scmp.ne.s32.totalorder %s272, %s273
      %p285 = scmp.eq.s32.totalorder %s32, 1
      %p286 = por %p284, %p285
      %p288 = scmp.ne.s32.totalorder %s273, %s287
      %p289 = scmp.eq.s32.totalorder %s32, 0
      %p290 = por %p288, %p289
      %s292 = sadd.s32 %s291, 1
      %p295 = scmp.eq.s32.totalorder %s26, 1
      %p296 = scmp.ne.s32.totalorder %s291, %s293
      %p297 = scmp.eq.s32.totalorder %s26, 0
      %p298 = por %p296, %p297
      %p299 = scmp.ne.s32.totalorder %s291, %s293
      %p300 = scmp.eq.s32.totalorder %s31, 1
      %p301 = por %p299, %p300
      %p302 = scmp.ne.s32.totalorder %s293, %s294
      %p303 = scmp.eq.s32.totalorder %s31, 0
      %p304 = por %p302, %p303
      %p305 = scmp.ne.s32.totalorder %s293, %s294
      %p306 = scmp.eq.s32.totalorder %s32, 1
      %p307 = por %p305, %p306
      %p309 = scmp.ne.s32.totalorder %s294, %s308
      %p310 = scmp.eq.s32.totalorder %s32, 0
      %p311 = por %p309, %p310
      %s313 = sadd.s32 %s312, 1
      %p316 = scmp.eq.s32.totalorder %s26, 1
      %p317 = scmp.ne.s32.totalorder %s312, %s314
      %p318 = scmp.eq.s32.totalorder %s26, 0
      %p319 = por %p317, %p318
      %p320 = scmp.ne.s32.totalorder %s312, %s314
      %p321 = scmp.eq.s32.totalorder %s31, 1
      %p322 = por %p320, %p321
      %p323 = scmp.ne.s32.totalorder %s314, %s315
      %p324 = scmp.eq.s32.totalorder %s31, 0
      %p325 = por %p323, %p324
      %p326 = scmp.ne.s32.totalorder %s314, %s315
      %p327 = scmp.eq.s32.totalorder %s32, 1
      %p328 = por %p326, %p327
      %p330 = scmp.ne.s32.totalorder %s315, %s329
      %p331 = scmp.eq.s32.totalorder %s32, 0
      %p332 = por %p330, %p331
      %s334 = sadd.s32 %s333, 1
      %p337 = scmp.eq.s32.totalorder %s26, 1
      %p338 = scmp.ne.s32.totalorder %s333, %s335
      %p339 = scmp.eq.s32.totalorder %s26, 0
      %p340 = por %p338, %p339
      %p341 = scmp.ne.s32.totalorder %s333, %s335
      %p342 = scmp.eq.s32.totalorder %s31, 1
      %p343 = por %p341, %p342
      %p344 = scmp.ne.s32.totalorder %s335, %s336
      %p345 = scmp.eq.s32.totalorder %s31, 0
      %p346 = por %p344, %p345
      %p347 = scmp.ne.s32.totalorder %s335, %s336
      %p348 = scmp.eq.s32.totalorder %s32, 1
      %p349 = por %p347, %p348
      %p351 = scmp.ne.s32.totalorder %s336, %s350
      %p352 = scmp.eq.s32.totalorder %s32, 0
      %p353 = por %p351, %p352
      %s354 = ssub.s32 %s26, %s33
      %p355 = scmp.eq.s32.totalorder %s354, 0
      %s357 = sadd.s32 %s356, 1
      %s358 = scalar_select %p355, %s356, %s357
      %p361 = pneg %p355
      %p362 = scmp.eq.s32.totalorder %s26, 1
      %p363 = por %p361, %p362
      %p364 = scmp.ne.s32.totalorder %s356, %s359
      %p365 = scmp.eq.s32.totalorder %s26, 0
      %p366 = por %p364, %p365
      %p367 = scmp.ne.s32.totalorder %s356, %s359
      %p368 = scmp.eq.s32.totalorder %s31, 1
      %p369 = por %p367, %p368
      %p370 = scmp.ne.s32.totalorder %s359, %s360
      %p371 = scmp.eq.s32.totalorder %s31, 0
      %p372 = por %p370, %p371
      %p373 = scmp.ne.s32.totalorder %s359, %s360
      %p374 = scmp.eq.s32.totalorder %s32, 1
      %p375 = por %p373, %p374
      %p377 = scmp.ne.s32.totalorder %s360, %s376
      %p378 = scmp.eq.s32.totalorder %s32, 0
      %p379 = por %p377, %p378
      %p380 = scmp.le.s32.totalorder 1, %s26
      %p381 = scmp.lt.s32.totalorder %s26, 3
      %p382 = pnand %p380, %p381
      %p383 = pneg %p382
      // Predicated region
      $region9: #{tpu_custom_call.1} parent=5 // pred_check
        _
      $region10: #{tpu_custom_call.1} parent=5 // pred_check_branch
        %385 = sbr.rel (%p382) target = $region12
      $region11: #{tpu_custom_call.1} parent=5 // pred_region
        %s386 = ssub.s32 %s26, 1
        // Predicated region
        $region13: #{tpu_custom_call.1} parent=11 // pred_check
          %p387 = pneg %p73
        $region14: #{tpu_custom_call.1} parent=11 // pred_check_branch
          %389 = sbr.rel (%p387) target = $region16
        $region15: #{tpu_custom_call.1} parent=11 // pred_region
          %s391 = ssub.s32 256, 256
          %392 = vsyncadd [#allocation3], %s391
          %s393 = sshll.u32 [#allocation2], 4
          %s394 = int_to_ptr.vmem [resolvable:$true] %s393
          %399 = dma.hbm_to_vmem [thread:$0]  %s1, 256, %s394, [#allocation3], 64, 64, 4
        $region16: #{tpu_custom_call.1} parent=11 // pred_fallthru
          _
        // Predicated region
        $region17: #{tpu_custom_call.1} parent=11 // pred_check
          %p400 = pneg %p94
        $region18: #{tpu_custom_call.1} parent=11 // pred_check_branch
          %402 = sbr.rel (%p400) target = $region20
        $region19: #{tpu_custom_call.1} parent=11 // pred_region
          _
        $region20: #{tpu_custom_call.1} parent=11 // pred_fallthru
          _
        // Predicated region
        $region21: #{tpu_custom_call.1} parent=11 // pred_check
          %p403 = pneg %p115
        $region22: #{tpu_custom_call.1} parent=11 // pred_check_branch
          %405 = sbr.rel (%p403) target = $region24
        $region23: #{tpu_custom_call.1} parent=11 // pred_region
          _
        $region24: #{tpu_custom_call.1} parent=11 // pred_fallthru
          _
        // Predicated region
        $region25: #{tpu_custom_call.1} parent=11 // pred_check
          %p406 = pneg %p136
        $region26: #{tpu_custom_call.1} parent=11 // pred_check_branch
          %408 = sbr.rel (%p406) target = $region28
        $region27: #{tpu_custom_call.1} parent=11 // pred_region
          _
        $region28: #{tpu_custom_call.1} parent=11 // pred_fallthru
          _
        // Predicated region
        $region29: #{tpu_custom_call.1} parent=11 // pred_check
          %p409 = pneg %p157
        $region30: #{tpu_custom_call.1} parent=11 // pred_check_branch
          %411 = sbr.rel (%p409) target = $region32
        $region31: #{tpu_custom_call.1} parent=11 // pred_region
          _
        $region32: #{tpu_custom_call.1} parent=11 // pred_fallthru
          _
        // Predicated region
        $region33: #{tpu_custom_call.1} parent=11 // pred_check
          %p412 = pneg %p178
        $region34: #{tpu_custom_call.1} parent=11 // pred_check_branch
          %414 = sbr.rel (%p412) target = $region36
        $region35: #{tpu_custom_call.1} parent=11 // pred_region
          _
        $region36: #{tpu_custom_call.1} parent=11 // pred_fallthru
          _
        // Predicated region
        $region37: #{tpu_custom_call.1} parent=11 // pred_check
          %p415 = pneg %p199
        $region38: #{tpu_custom_call.1} parent=11 // pred_check_branch
          %417 = sbr.rel (%p415) target = $region40
        $region39: #{tpu_custom_call.1} parent=11 // pred_region
          _
        $region40: #{tpu_custom_call.1} parent=11 // pred_fallthru
          _
        // Predicated region
        $region41: #{tpu_custom_call.1} parent=11 // pred_check
          %p418 = pneg %p220
        $region42: #{tpu_custom_call.1} parent=11 // pred_check_branch
          %420 = sbr.rel (%p418) target = $region44
        $region43: #{tpu_custom_call.1} parent=11 // pred_region
          _
        $region44: #{tpu_custom_call.1} parent=11 // pred_fallthru
          _
        // Predicated region
        $region45: #{tpu_custom_call.1} parent=11 // pred_check
          %p421 = pneg %p241
        $region46: #{tpu_custom_call.1} parent=11 // pred_check_branch
          %423 = sbr.rel (%p421) target = $region48
        $region47: #{tpu_custom_call.1} parent=11 // pred_region
          _
        $region48: #{tpu_custom_call.1} parent=11 // pred_fallthru
          _
        // Predicated region
        $region49: #{tpu_custom_call.1} parent=11 // pred_check
          %p424 = pneg %p262
        $region50: #{tpu_custom_call.1} parent=11 // pred_check_branch
          %426 = sbr.rel (%p424) target = $region52
        $region51: #{tpu_custom_call.1} parent=11 // pred_region
          _
        $region52: #{tpu_custom_call.1} parent=11 // pred_fallthru
          _
        // Predicated region
        $region53: #{tpu_custom_call.1} parent=11 // pred_check
          %p427 = pneg %p283
        $region54: #{tpu_custom_call.1} parent=11 // pred_check_branch
          %429 = sbr.rel (%p427) target = $region56
        $region55: #{tpu_custom_call.1} parent=11 // pred_region
          _
        $region56: #{tpu_custom_call.1} parent=11 // pred_fallthru
          _
        // Predicated region
        $region57: #{tpu_custom_call.1} parent=11 // pred_check
          %p430 = pneg %p304
        $region58: #{tpu_custom_call.1} parent=11 // pred_check_branch
          %432 = sbr.rel (%p430) target = $region60
        $region59: #{tpu_custom_call.1} parent=11 // pred_region
          _
        $region60: #{tpu_custom_call.1} parent=11 // pred_fallthru
          _
        // Predicated region
        $region61: #{tpu_custom_call.1} parent=11 // pred_check
          %p433 = pneg %p325
        $region62: #{tpu_custom_call.1} parent=11 // pred_check_branch
          %435 = sbr.rel (%p433) target = $region64
        $region63: #{tpu_custom_call.1} parent=11 // pred_region
          %s437 = ssub.s32 1024, 1024
          %438 = vsyncadd [#allocation6], %s437
          %s439 = sshll.u32 [#allocation5], 4
          %s440 = int_to_ptr.vmem [resolvable:$true] %s439
          %445 = dma.hbm_to_vmem [thread:$0]  %s13, 1024, %s440, [#allocation6], 64, 64, 4
        $region64: #{tpu_custom_call.1} parent=11 // pred_fallthru
          _
        // Predicated region
        $region65: #{tpu_custom_call.1} parent=11 // pred_check
          %p446 = pneg %p346
        $region66: #{tpu_custom_call.1} parent=11 // pred_check_branch
          %448 = sbr.rel (%p446) target = $region68
        $region67: #{tpu_custom_call.1} parent=11 // pred_region
          _
        $region68: #{tpu_custom_call.1} parent=11 // pred_fallthru
          _
      $region12: #{tpu_custom_call.1} parent=5 // pred_fallthru
        _
      %p449 = scmp.lt.s32.totalorder %s26, 2
      // Predicated region
      $region69: #{tpu_custom_call.1} parent=5 // pred_check
        %p450 = pneg %p449
      $region70: #{tpu_custom_call.1} parent=5 // pred_check_branch
        %452 = sbr.rel (%p450) target = $region72
      $region71: #{tpu_custom_call.1} parent=5 // pred_region
        // Predicated region
        $region73: #{tpu_custom_call.1} parent=71 // pred_check
          %p453 = pneg %p46
        $region74: #{tpu_custom_call.1} parent=71 // pred_check_branch
          %455 = sbr.rel (%p453) target = $region76
        $region75: #{tpu_custom_call.1} parent=71 // pred_region
          %s456 = smul.u32 32, %s26
          %p457 = scmp.lt.s32.totalorder %s456, 63
          %s458 = scalar_select %p457, %s456, 63
          %s459 = smul.addr %s458, 4
          %s460 = scalar_lea.vmem %s0, %s459
          %s461 = smul.u32 32, %s26
        $region76: #{tpu_custom_call.1} parent=71 // pred_fallthru
          _
      $region72: #{tpu_custom_call.1} parent=5 // pred_fallthru
        _
      %p462 = scmp.le.s32.totalorder 1, %s26
      %p463 = scmp.lt.s32.totalorder %s26, 3
      %p464 = pnand %p462, %p463
      %p465 = pneg %p464
      // Predicated region
      $region77: #{tpu_custom_call.1} parent=5 // pred_check
        _
      $region78: #{tpu_custom_call.1} parent=5 // pred_check_branch
        %467 = sbr.rel (%p464) target = $region80
      $region79: #{tpu_custom_call.1} parent=5 // pred_region
        %s468 = ssub.s32 %s26, 1
        // Predicated region
        $region81: #{tpu_custom_call.1} parent=79 // pred_check
          %p469 = pneg %p73
        $region82: #{tpu_custom_call.1} parent=79 // pred_check_branch
          %471 = sbr.rel (%p469) target = $region84
        $region83: #{tpu_custom_call.1} parent=79 // pred_region
          %472 = dma.done [#allocation3], 256
        $region84: #{tpu_custom_call.1} parent=79 // pred_fallthru
          _
        // Predicated region
        $region85: #{tpu_custom_call.1} parent=79 // pred_check
          %p473 = pneg %p325
        $region86: #{tpu_custom_call.1} parent=79 // pred_check_branch
          %475 = sbr.rel (%p473) target = $region88
        $region87: #{tpu_custom_call.1} parent=79 // pred_region
          %476 = dma.done [#allocation6], 1024
        $region88: #{tpu_custom_call.1} parent=79 // pred_fallthru
          _
        %s477 = smul.u32 32, %s31
        %p478 = scmp.lt.s32.totalorder %s477, 63
        %s479 = scalar_select %p478, %s477, 63
        %s480 = smul.addr %s479, 4
        %s481 = scalar_lea.vmem %s0, %s480
        %p482 = pneg %p52
        %p483 = pneg %p49
        %p484 = pneg %p73
        %p485 = pneg %p70
        %p486 = pneg %p94
        %p487 = pneg %p91
        %p488 = pneg %p115
        %p489 = pneg %p112
        %p490 = pneg %p136
        %p491 = pneg %p133
        %p492 = pneg %p157
        %p493 = pneg %p154
        %p494 = pneg %p178
        %p495 = pneg %p175
        %p496 = pneg %p199
        %p497 = pneg %p196
        %p498 = pneg %p220
        %p499 = pneg %p217
        %p500 = pneg %p241
        %p501 = pneg %p238
        %p502 = pneg %p262
        %p503 = pneg %p259
        %p504 = pneg %p283
        %p505 = pneg %p280
        %p506 = pneg %p304
        %p507 = pneg %p301
        %p508 = pneg %p325
        %p509 = pneg %p322
        %p510 = pneg %p346
        %p511 = pneg %p343
        %p512 = pneg %p372
        %p513 = pneg %p369
        %s514 = sand.u32 %s359, 1
        %s515 = scalar_lea.sflag [#allocation4], %s514
        %s516 = sand.u32 %s359, 1
        %s517 = smul.addr %s516, 256
        %s518 = scalar_lea.vmem [#allocation7], %s517
        %s519 = smul.u32 32, %s31
        %p520 = scmp.lt.s32.totalorder %s519, 63
        %s521 = scalar_select %p520, %s519, 63
        %s522 = smul.addr %s521, 4
        %s523 = scalar_lea.vmem %s0, %s522
        %s524 = smul.u32 32, %s31
        %s525 = smul.u32 32, %s31
        %v527 = vld [vmem:[%s523] sm:$0xf]
        %v528 = vld [vmem:[%s523 + $0x4] sm:$0xf]
        %v529 = vld [vmem:[%s523 + $0x8] sm:$0xf]
        %v530 = vld [vmem:[%s523 + $0xc] sm:$0xf]
        %v531 = vld [vmem:[%s523 + $0x10] sm:$0xf]
        %v532 = vld [vmem:[%s523 + $0x14] sm:$0xf]
        %v533 = vld [vmem:[%s523 + $0x18] sm:$0xf]
        %v534 = vld [vmem:[%s523 + $0x1c] sm:$0xf]
        %v535 = vld [vmem:[%s523 + $0x20] sm:$0xf]
        %v536 = vld [vmem:[%s523 + $0x24] sm:$0xf]
        %v537 = vld [vmem:[%s523 + $0x28] sm:$0xf]
        %v538 = vld [vmem:[%s523 + $0x2c] sm:$0xf]
        %v539 = vld [vmem:[%s523 + $0x30] sm:$0xf]
        %v540 = vld [vmem:[%s523 + $0x34] sm:$0xf]
        %v541 = vld [vmem:[%s523 + $0x38] sm:$0xf]
        %v542 = vld [vmem:[%s523 + $0x3c] sm:$0xf]
        %v543 = vld [vmem:[%s523 + $0x40] sm:$0xf]
        %v544 = vld [vmem:[%s523 + $0x44] sm:$0xf]
        %v545 = vld [vmem:[%s523 + $0x48] sm:$0xf]
        %v546 = vld [vmem:[%s523 + $0x4c] sm:$0xf]
        %v547 = vld [vmem:[%s523 + $0x50] sm:$0xf]
        %v548 = vld [vmem:[%s523 + $0x54] sm:$0xf]
        %v549 = vld [vmem:[%s523 + $0x58] sm:$0xf]
        %v550 = vld [vmem:[%s523 + $0x5c] sm:$0xf]
        %v551 = vld [vmem:[%s523 + $0x60] sm:$0xf]
        %v552 = vld [vmem:[%s523 + $0x64] sm:$0xf]
        %v553 = vld [vmem:[%s523 + $0x68] sm:$0xf]
        %v554 = vld [vmem:[%s523 + $0x6c] sm:$0xf]
        %v555 = vld [vmem:[%s523 + $0x70] sm:$0xf]
        %v556 = vld [vmem:[%s523 + $0x74] sm:$0xf]
        %v557 = vld [vmem:[%s523 + $0x78] sm:$0xf]
        %v558 = vld [vmem:[%s523 + $0x7c] sm:$0xf]
        %v559 = vld [vmem:[#allocation2] sm:$0xf]
        %v560 = vld [vmem:[#allocation2 + $0x4] sm:$0xf]
        %v561 = vld [vmem:[#allocation2 + $0x8] sm:$0xf]
        %v562 = vld [vmem:[#allocation2 + $0xc] sm:$0xf]
        %v563 = vld [vmem:[%s2] sm:$0x1]
        %v565 = vlaneseq
        %v566 = vshrl.u32 %v565, 7
        %v567 = vsub.s32 0, %v566
        %v568 = vrot.slane %v563, %v567
        %v602 = vunpack.c.l.b16 %v527
        %v603 = vunpack.c.l.b16 %v528
        %v604 = vunpack.c.l.b16 %v529
        %v605 = vunpack.c.l.b16 %v530
        %v606 = vunpack.c.l.b16 %v531
        %v607 = vunpack.c.l.b16 %v532
        %v608 = vunpack.c.l.b16 %v533
        %v609 = vunpack.c.l.b16 %v534
        %v610 = vunpack.c.l.b16 %v535
        %v611 = vunpack.c.l.b16 %v536
        %v612 = vunpack.c.l.b16 %v537
        %v613 = vunpack.c.l.b16 %v538
        %v614 = vunpack.c.l.b16 %v539
        %v615 = vunpack.c.l.b16 %v540
        %v616 = vunpack.c.l.b16 %v541
        %v617 = vunpack.c.l.b16 %v542
        %v618 = vunpack.c.l.b16 %v543
        %v619 = vunpack.c.l.b16 %v544
        %v620 = vunpack.c.l.b16 %v545
        %v621 = vunpack.c.l.b16 %v546
        %v622 = vunpack.c.l.b16 %v547
        %v623 = vunpack.c.l.b16 %v548
        %v624 = vunpack.c.l.b16 %v549
        %v625 = vunpack.c.l.b16 %v550
        %v626 = vunpack.c.l.b16 %v551
        %v627 = vunpack.c.l.b16 %v552
        %v628 = vunpack.c.l.b16 %v553
        %v629 = vunpack.c.l.b16 %v554
        %v630 = vunpack.c.l.b16 %v555
        %v631 = vunpack.c.l.b16 %v556
        %v632 = vunpack.c.l.b16 %v557
        %v633 = vunpack.c.l.b16 %v558
        %v634 = vpack.c.b16 %v603, %v602
        %v635 = vpack.c.b16 %v605, %v604
        %v636 = vpack.c.b16 %v607, %v606
        %v637 = vpack.c.b16 %v609, %v608
        %v638 = vpack.c.b16 %v611, %v610
        %v639 = vpack.c.b16 %v613, %v612
        %v640 = vpack.c.b16 %v615, %v614
        %v641 = vpack.c.b16 %v617, %v616
        %v642 = vpack.c.b16 %v619, %v618
        %v643 = vpack.c.b16 %v621, %v620
        %v644 = vpack.c.b16 %v623, %v622
        %v645 = vpack.c.b16 %v625, %v624
        %v646 = vpack.c.b16 %v627, %v626
        %v647 = vpack.c.b16 %v629, %v628
        %v648 = vpack.c.b16 %v631, %v630
        %v649 = vpack.c.b16 %v633, %v632
        %v654 = vunpack.c.l.b16 %v559
        %v655 = vunpack.c.l.b16 %v560
        %v656 = vunpack.c.l.b16 %v561
        %v657 = vunpack.c.l.b16 %v562
        %v658 = vpack.c.b16 %v655, %v654
        %v659 = vpack.c.b16 %v657, %v656
        %vm662 = vcmask 261120
        %v664 = vsel %vm662, %v634, 0
        %v667 = vsel %vm662, %v635, 0
        %v670 = vsel %vm662, %v636, 0
        %v673 = vsel %vm662, %v637, 0
        %v676 = vsel %vm662, %v638, 0
        %v679 = vsel %vm662, %v639, 0
        %v682 = vsel %vm662, %v640, 0
        %v685 = vsel %vm662, %v641, 0
        %v688 = vsel %vm662, %v642, 0
        %v691 = vsel %vm662, %v643, 0
        %v694 = vsel %vm662, %v644, 0
        %v697 = vsel %vm662, %v645, 0
        %v700 = vsel %vm662, %v646, 0
        %v703 = vsel %vm662, %v647, 0
        %v706 = vsel %vm662, %v648, 0
        %v709 = vsel %vm662, %v649, 0
        %711 = vmatprep.subr.bf16.mxu0 0
        %712 = vmatpush1.bf16.msra.mxu0 0
        %713 = vmatprep.subr.bf16.mxu0 0
        %714 = vmatpush1.bf16.msra.mxu0 0
        %715 = vmatprep.subr.bf16.mxu0 0
        %716 = vmatpush1.bf16.msra.mxu0 0
        %717 = vmatprep.subr.bf16.mxu0 0
        %718 = vmatpush1.bf16.msra.mxu0 0
        %719 = vmatprep.subr.bf16.mxu0 0
        %720 = vmatpush1.bf16.msra.mxu0 0
        %721 = vmatprep.subr.bf16.mxu0 0
        %722 = vmatpush1.bf16.msra.mxu0 0
        %723 = vmatprep.subr.bf16.mxu0 0
        %724 = vmatpush1.bf16.msra.mxu0 %v659
        %725 = vmatprep.subr.bf16.mxu0 0
        %726 = vmatpush1.bf16.msra.mxu0 %v658
        %727 = vmatprep.subr.bf16.mxu0 0
        %728 = vmatpush2.bf16.msra.mxu0 0
        %729 = vmatprep.subr.bf16.mxu0 0
        %730 = vmatpush2.bf16.msra.mxu0 0
        %731 = vmatprep.subr.bf16.mxu0 0
        %732 = vmatpush2.bf16.msra.mxu0 0
        %733 = vmatprep.subr.bf16.mxu0 0
        %734 = vmatpush2.bf16.msra.mxu0 0
        %735 = vmatprep.subr.bf16.mxu0 0
        %736 = vmatpush2.bf16.msra.mxu0 0
        %737 = vmatprep.subr.bf16.mxu0 0
        %738 = vmatpush2.bf16.msra.mxu0 0
        %739 = vmatprep.subr.bf16.mxu0 0
        %740 = vmatpush2.bf16.msra.mxu0 0
        %741 = vmatprep.subr.bf16.mxu0 0
        %742 = vmatpush2.bf16.msra.mxu0 0
        %743 = vmatprep.mubr.bf16.mxu0 0
        %744 = vmatmul.mubr.bf16.gmra.mxu0 %v664
        %v745 = vpop.f32.mrf.mxu0
        %v746 = vadd.f32 %v568, %v745
        %v747 = vpop.f32.mrf.mxu0
        %v748 = vpop.f32.mrf.mxu0
        %v749 = vadd.f32 %v568, %v748
        %v750 = vpop.f32.mrf.mxu0
        %751 = vmatprep.mubr.bf16.mxu0 0
        %752 = vmatmul.mubr.bf16.gmra.mxu0 %v667
        %v753 = vpop.f32.mrf.mxu0
        %v754 = vadd.f32 %v568, %v753
        %v755 = vpop.f32.mrf.mxu0
        %v756 = vpop.f32.mrf.mxu0
        %v757 = vadd.f32 %v568, %v756
        %v758 = vpop.f32.mrf.mxu0
        %759 = vmatprep.mubr.bf16.mxu0 0
        %760 = vmatmul.mubr.bf16.gmra.mxu0 %v670
        %v761 = vpop.f32.mrf.mxu0
        %v762 = vadd.f32 %v568, %v761
        %v763 = vpop.f32.mrf.mxu0
        %v764 = vpop.f32.mrf.mxu0
        %v765 = vadd.f32 %v568, %v764
        %v766 = vpop.f32.mrf.mxu0
        %767 = vmatprep.mubr.bf16.mxu0 0
        %768 = vmatmul.mubr.bf16.gmra.mxu0 %v673
        %v769 = vpop.f32.mrf.mxu0
        %v770 = vadd.f32 %v568, %v769
        %v771 = vpop.f32.mrf.mxu0
        %v772 = vpop.f32.mrf.mxu0
        %v773 = vadd.f32 %v568, %v772
        %v774 = vpop.f32.mrf.mxu0
        %775 = vmatprep.mubr.bf16.mxu0 0
        %776 = vmatmul.mubr.bf16.gmra.mxu0 %v676
        %v777 = vpop.f32.mrf.mxu0
        %v778 = vadd.f32 %v568, %v777
        %v779 = vpop.f32.mrf.mxu0
        %v780 = vpop.f32.mrf.mxu0
        %v781 = vadd.f32 %v568, %v780
        %v782 = vpop.f32.mrf.mxu0
        %783 = vmatprep.mubr.bf16.mxu0 0
        %784 = vmatmul.mubr.bf16.gmra.mxu0 %v679
        %v785 = vpop.f32.mrf.mxu0
        %v786 = vadd.f32 %v568, %v785
        %v787 = vpop.f32.mrf.mxu0
        %v788 = vpop.f32.mrf.mxu0
        %v789 = vadd.f32 %v568, %v788
        %v790 = vpop.f32.mrf.mxu0
        %791 = vmatprep.mubr.bf16.mxu0 0
        %792 = vmatmul.mubr.bf16.gmra.mxu0 %v682
        %v793 = vpop.f32.mrf.mxu0
        %v794 = vadd.f32 %v568, %v793
        %v795 = vpop.f32.mrf.mxu0
        %v796 = vpop.f32.mrf.mxu0
        %v797 = vadd.f32 %v568, %v796
        %v798 = vpop.f32.mrf.mxu0
        %799 = vmatprep.mubr.bf16.mxu0 0
        %800 = vmatmul.mubr.bf16.gmra.mxu0 %v685
        %v801 = vpop.f32.mrf.mxu0
        %v802 = vadd.f32 %v568, %v801
        %v803 = vpop.f32.mrf.mxu0
        %v804 = vpop.f32.mrf.mxu0
        %v805 = vadd.f32 %v568, %v804
        %v806 = vpop.f32.mrf.mxu0
        %807 = vmatprep.mubr.bf16.mxu0 0
        %808 = vmatmul.mubr.bf16.gmra.mxu0 %v688
        %v809 = vpop.f32.mrf.mxu0
        %v810 = vadd.f32 %v568, %v809
        %v811 = vpop.f32.mrf.mxu0
        %v812 = vpop.f32.mrf.mxu0
        %v813 = vadd.f32 %v568, %v812
        %v814 = vpop.f32.mrf.mxu0
        %815 = vmatprep.mubr.bf16.mxu0 0
        %816 = vmatmul.mubr.bf16.gmra.mxu0 %v691
        %v817 = vpop.f32.mrf.mxu0
        %v818 = vadd.f32 %v568, %v817
        %v819 = vpop.f32.mrf.mxu0
        %v820 = vpop.f32.mrf.mxu0
        %v821 = vadd.f32 %v568, %v820
        %v822 = vpop.f32.mrf.mxu0
        %823 = vmatprep.mubr.bf16.mxu0 0
        %824 = vmatmul.mubr.bf16.gmra.mxu0 %v694
        %v825 = vpop.f32.mrf.mxu0
        %v826 = vadd.f32 %v568, %v825
        %v827 = vpop.f32.mrf.mxu0
        %v828 = vpop.f32.mrf.mxu0
        %v829 = vadd.f32 %v568, %v828
        %v830 = vpop.f32.mrf.mxu0
        %831 = vmatprep.mubr.bf16.mxu0 0
        %832 = vmatmul.mubr.bf16.gmra.mxu0 %v697
        %v833 = vpop.f32.mrf.mxu0
        %v834 = vadd.f32 %v568, %v833
        %v835 = vpop.f32.mrf.mxu0
        %v836 = vpop.f32.mrf.mxu0
        %v837 = vadd.f32 %v568, %v836
        %v838 = vpop.f32.mrf.mxu0
        %839 = vmatprep.mubr.bf16.mxu0 0
        %840 = vmatmul.mubr.bf16.gmra.mxu0 %v700
        %v841 = vpop.f32.mrf.mxu0
        %v842 = vadd.f32 %v568, %v841
        %v843 = vpop.f32.mrf.mxu0
        %v844 = vpop.f32.mrf.mxu0
        %v845 = vadd.f32 %v568, %v844
        %v846 = vpop.f32.mrf.mxu0
        %847 = vmatprep.mubr.bf16.mxu0 0
        %848 = vmatmul.mubr.bf16.gmra.mxu0 %v703
        %v849 = vpop.f32.mrf.mxu0
        %v850 = vadd.f32 %v568, %v849
        %v851 = vpop.f32.mrf.mxu0
        %v852 = vpop.f32.mrf.mxu0
        %v853 = vadd.f32 %v568, %v852
        %v854 = vpop.f32.mrf.mxu0
        %855 = vmatprep.mubr.bf16.mxu0 0
        %856 = vmatmul.mubr.bf16.gmra.mxu0 %v706
        %v857 = vpop.f32.mrf.mxu0
        %v858 = vadd.f32 %v568, %v857
        %v859 = vpop.f32.mrf.mxu0
        %v860 = vpop.f32.mrf.mxu0
        %v861 = vadd.f32 %v568, %v860
        %v862 = vpop.f32.mrf.mxu0
        %863 = vmatprep.mubr.bf16.mxu0 0
        %864 = vmatmul.mubr.bf16.gmra.mxu0 %v709
        %v865 = vpop.f32.mrf.mxu0
        %v866 = vadd.f32 %v568, %v865
        %v867 = vpop.f32.mrf.mxu0
        %v868 = vpop.f32.mrf.mxu0
        %v869 = vadd.f32 %v568, %v868
        %v870 = vpop.f32.mrf.mxu0
        %871 = vdwg.mxu0
        %v872 = vmax.f32 %v746, 0.0
        %v873 = vmax.f32 %v749, 0.0
        %v874 = vmax.f32 %v754, 0.0
        %v875 = vmax.f32 %v757, 0.0
        %v876 = vmax.f32 %v762, 0.0
        %v877 = vmax.f32 %v765, 0.0
        %v878 = vmax.f32 %v770, 0.0
        %v879 = vmax.f32 %v773, 0.0
        %v880 = vmax.f32 %v778, 0.0
        %v881 = vmax.f32 %v781, 0.0
        %v882 = vmax.f32 %v786, 0.0
        %v883 = vmax.f32 %v789, 0.0
        %v884 = vmax.f32 %v794, 0.0
        %v885 = vmax.f32 %v797, 0.0
        %v886 = vmax.f32 %v802, 0.0
        %v887 = vmax.f32 %v805, 0.0
        %v888 = vmax.f32 %v810, 0.0
        %v889 = vmax.f32 %v813, 0.0
        %v890 = vmax.f32 %v818, 0.0
        %v891 = vmax.f32 %v821, 0.0
        %v892 = vmax.f32 %v826, 0.0
        %v893 = vmax.f32 %v829, 0.0
        %v894 = vmax.f32 %v834, 0.0
        %v895 = vmax.f32 %v837, 0.0
        %v896 = vmax.f32 %v842, 0.0
        %v897 = vmax.f32 %v845, 0.0
        %v898 = vmax.f32 %v850, 0.0
        %v899 = vmax.f32 %v853, 0.0
        %v900 = vmax.f32 %v858, 0.0
        %v901 = vmax.f32 %v861, 0.0
        %v902 = vmax.f32 %v866, 0.0
        %v903 = vmax.f32 %v869, 0.0
        %v904 = vpack.c.bf16 %v873, %v872
        %v905 = vpack.c.bf16 %v875, %v874
        %v906 = vpack.c.bf16 %v877, %v876
        %v907 = vpack.c.bf16 %v879, %v878
        %v908 = vpack.c.bf16 %v881, %v880
        %v909 = vpack.c.bf16 %v883, %v882
        %v910 = vpack.c.bf16 %v885, %v884
        %v911 = vpack.c.bf16 %v887, %v886
        %v912 = vpack.c.bf16 %v889, %v888
        %v913 = vpack.c.bf16 %v891, %v890
        %v914 = vpack.c.bf16 %v893, %v892
        %v915 = vpack.c.bf16 %v895, %v894
        %v916 = vpack.c.bf16 %v897, %v896
        %v917 = vpack.c.bf16 %v899, %v898
        %v918 = vpack.c.bf16 %v901, %v900
        %v919 = vpack.c.bf16 %v903, %v902
        %v920 = vld [vmem:[%s3] sm:$0xf]
        %v921 = vld [vmem:[%s3 + $0x4] sm:$0xf]
        %v922 = vld [vmem:[%s3 + $0x8] sm:$0xf]
        %v923 = vld [vmem:[%s3 + $0xc] sm:$0xf]
        %v924 = vld [vmem:[%s3 + $0x10] sm:$0xf]
        %v925 = vld [vmem:[%s3 + $0x14] sm:$0xf]
        %v926 = vld [vmem:[%s3 + $0x18] sm:$0xf]
        %v927 = vld [vmem:[%s3 + $0x1c] sm:$0xf]
        %v928 = vld [vmem:[%s3 + $0x20] sm:$0xf]
        %v929 = vld [vmem:[%s3 + $0x24] sm:$0xf]
        %v930 = vld [vmem:[%s3 + $0x28] sm:$0xf]
        %v931 = vld [vmem:[%s3 + $0x2c] sm:$0xf]
        %v932 = vld [vmem:[%s3 + $0x30] sm:$0xf]
        %v933 = vld [vmem:[%s3 + $0x34] sm:$0xf]
        %v934 = vld [vmem:[%s3 + $0x38] sm:$0xf]
        %v935 = vld [vmem:[%s3 + $0x3c] sm:$0xf]
        %v936 = vld [vmem:[%s4] sm:$0x1]
        %v938 = vlaneseq
        %v939 = vshrl.u32 %v938, 7
        %v940 = vsub.s32 0, %v939
        %v941 = vrot.slane %v936, %v940
        %v959 = vunpack.c.l.b16 %v920
        %v960 = vunpack.c.l.b16 %v921
        %v961 = vunpack.c.l.b16 %v922
        %v962 = vunpack.c.l.b16 %v923
        %v963 = vunpack.c.l.b16 %v924
        %v964 = vunpack.c.l.b16 %v925
        %v965 = vunpack.c.l.b16 %v926
        %v966 = vunpack.c.l.b16 %v927
        %v967 = vunpack.c.l.b16 %v928
        %v968 = vunpack.c.l.b16 %v929
        %v969 = vunpack.c.l.b16 %v930
        %v970 = vunpack.c.l.b16 %v931
        %v971 = vunpack.c.l.b16 %v932
        %v972 = vunpack.c.l.b16 %v933
        %v973 = vunpack.c.l.b16 %v934
        %v974 = vunpack.c.l.b16 %v935
        %v975 = vpack.c.b16 %v960, %v959
        %v976 = vpack.c.b16 %v962, %v961
        %v977 = vpack.c.b16 %v964, %v963
        %v978 = vpack.c.b16 %v966, %v965
        %v979 = vpack.c.b16 %v968, %v967
        %v980 = vpack.c.b16 %v970, %v969
        %v981 = vpack.c.b16 %v972, %v971
        %v982 = vpack.c.b16 %v974, %v973
        %991 = vmatprep.subr.bf16.mxu0 0
        %992 = vmatpush1.bf16.msra.mxu0 %v982
        %993 = vmatprep.subr.bf16.mxu0 0
        %994 = vmatpush1.bf16.msra.mxu0 %v981
        %995 = vmatprep.subr.bf16.mxu0 0
        %996 = vmatpush1.bf16.msra.mxu0 %v980
        %997 = vmatprep.subr.bf16.mxu0 0
        %998 = vmatpush1.bf16.msra.mxu0 %v979
        %999 = vmatprep.subr.bf16.mxu0 0
        %1000 = vmatpush1.bf16.msra.mxu0 %v978
        %1001 = vmatprep.subr.bf16.mxu0 0
        %1002 = vmatpush1.bf16.msra.mxu0 %v977
        %1003 = vmatprep.subr.bf16.mxu0 0
        %1004 = vmatpush1.bf16.msra.mxu0 %v976
        %1005 = vmatprep.subr.bf16.mxu0 0
        %1006 = vmatpush1.bf16.msra.mxu0 %v975
        %1007 = vmatprep.subr.bf16.mxu0 0
        %1008 = vmatpush2.bf16.msra.mxu0 0
        %1009 = vmatprep.subr.bf16.mxu0 0
        %1010 = vmatpush2.bf16.msra.mxu0 0
        %1011 = vmatprep.subr.bf16.mxu0 0
        %1012 = vmatpush2.bf16.msra.mxu0 0
        %1013 = vmatprep.subr.bf16.mxu0 0
        %1014 = vmatpush2.bf16.msra.mxu0 0
        %1015 = vmatprep.subr.bf16.mxu0 0
        %1016 = vmatpush2.bf16.msra.mxu0 0
        %1017 = vmatprep.subr.bf16.mxu0 0
        %1018 = vmatpush2.bf16.msra.mxu0 0
        %1019 = vmatprep.subr.bf16.mxu0 0
        %1020 = vmatpush2.bf16.msra.mxu0 0
        %1021 = vmatprep.subr.bf16.mxu0 0
        %1022 = vmatpush2.bf16.msra.mxu0 0
        %1023 = vmatprep.mubr.bf16.mxu0 0
        %1024 = vmatmul.mubr.bf16.gmra.mxu0 %v904
        %v1025 = vpop.f32.mrf.mxu0
        %v1026 = vadd.f32 %v941, %v1025
        %v1027 = vpop.f32.mrf.mxu0
        %v1028 = vpop.f32.mrf.mxu0
        %v1029 = vadd.f32 %v941, %v1028
        %v1030 = vpop.f32.mrf.mxu0
        %1031 = vmatprep.mubr.bf16.mxu0 0
        %1032 = vmatmul.mubr.bf16.gmra.mxu0 %v905
        %v1033 = vpop.f32.mrf.mxu0
        %v1034 = vadd.f32 %v941, %v1033
        %v1035 = vpop.f32.mrf.mxu0
        %v1036 = vpop.f32.mrf.mxu0
        %v1037 = vadd.f32 %v941, %v1036
        %v1038 = vpop.f32.mrf.mxu0
        %1039 = vmatprep.mubr.bf16.mxu0 0
        %1040 = vmatmul.mubr.bf16.gmra.mxu0 %v906
        %v1041 = vpop.f32.mrf.mxu0
        %v1042 = vadd.f32 %v941, %v1041
        %v1043 = vpop.f32.mrf.mxu0
        %v1044 = vpop.f32.mrf.mxu0
        %v1045 = vadd.f32 %v941, %v1044
        %v1046 = vpop.f32.mrf.mxu0
        %1047 = vmatprep.mubr.bf16.mxu0 0
        %1048 = vmatmul.mubr.bf16.gmra.mxu0 %v907
        %v1049 = vpop.f32.mrf.mxu0
        %v1050 = vadd.f32 %v941, %v1049
        %v1051 = vpop.f32.mrf.mxu0
        %v1052 = vpop.f32.mrf.mxu0
        %v1053 = vadd.f32 %v941, %v1052
        %v1054 = vpop.f32.mrf.mxu0
        %1055 = vmatprep.mubr.bf16.mxu0 0
        %1056 = vmatmul.mubr.bf16.gmra.mxu0 %v908
        %v1057 = vpop.f32.mrf.mxu0
        %v1058 = vadd.f32 %v941, %v1057
        %v1059 = vpop.f32.mrf.mxu0
        %v1060 = vpop.f32.mrf.mxu0
        %v1061 = vadd.f32 %v941, %v1060
        %v1062 = vpop.f32.mrf.mxu0
        %1063 = vmatprep.mubr.bf16.mxu0 0
        %1064 = vmatmul.mubr.bf16.gmra.mxu0 %v909
        %v1065 = vpop.f32.mrf.mxu0
        %v1066 = vadd.f32 %v941, %v1065
        %v1067 = vpop.f32.mrf.mxu0
        %v1068 = vpop.f32.mrf.mxu0
        %v1069 = vadd.f32 %v941, %v1068
        %v1070 = vpop.f32.mrf.mxu0
        %1071 = vmatprep.mubr.bf16.mxu0 0
        %1072 = vmatmul.mubr.bf16.gmra.mxu0 %v910
        %v1073 = vpop.f32.mrf.mxu0
        %v1074 = vadd.f32 %v941, %v1073
        %v1075 = vpop.f32.mrf.mxu0
        %v1076 = vpop.f32.mrf.mxu0
        %v1077 = vadd.f32 %v941, %v1076
        %v1078 = vpop.f32.mrf.mxu0
        %1079 = vmatprep.mubr.bf16.mxu0 0
        %1080 = vmatmul.mubr.bf16.gmra.mxu0 %v911
        %v1081 = vpop.f32.mrf.mxu0
        %v1082 = vadd.f32 %v941, %v1081
        %v1083 = vpop.f32.mrf.mxu0
        %v1084 = vpop.f32.mrf.mxu0
        %v1085 = vadd.f32 %v941, %v1084
        %v1086 = vpop.f32.mrf.mxu0
        %1087 = vmatprep.mubr.bf16.mxu0 0
        %1088 = vmatmul.mubr.bf16.gmra.mxu0 %v912
        %v1089 = vpop.f32.mrf.mxu0
        %v1090 = vadd.f32 %v941, %v1089
        %v1091 = vpop.f32.mrf.mxu0
        %v1092 = vpop.f32.mrf.mxu0
        %v1093 = vadd.f32 %v941, %v1092
        %v1094 = vpop.f32.mrf.mxu0
        %1095 = vmatprep.mubr.bf16.mxu0 0
        %1096 = vmatmul.mubr.bf16.gmra.mxu0 %v913
        %v1097 = vpop.f32.mrf.mxu0
        %v1098 = vadd.f32 %v941, %v1097
        %v1099 = vpop.f32.mrf.mxu0
        %v1100 = vpop.f32.mrf.mxu0
        %v1101 = vadd.f32 %v941, %v1100
        %v1102 = vpop.f32.mrf.mxu0
        %1103 = vmatprep.mubr.bf16.mxu0 0
        %1104 = vmatmul.mubr.bf16.gmra.mxu0 %v914
        %v1105 = vpop.f32.mrf.mxu0
        %v1106 = vadd.f32 %v941, %v1105
        %v1107 = vpop.f32.mrf.mxu0
        %v1108 = vpop.f32.mrf.mxu0
        %v1109 = vadd.f32 %v941, %v1108
        %v1110 = vpop.f32.mrf.mxu0
        %1111 = vmatprep.mubr.bf16.mxu0 0
        %1112 = vmatmul.mubr.bf16.gmra.mxu0 %v915
        %v1113 = vpop.f32.mrf.mxu0
        %v1114 = vadd.f32 %v941, %v1113
        %v1115 = vpop.f32.mrf.mxu0
        %v1116 = vpop.f32.mrf.mxu0
        %v1117 = vadd.f32 %v941, %v1116
        %v1118 = vpop.f32.mrf.mxu0
        %1119 = vmatprep.mubr.bf16.mxu0 0
        %1120 = vmatmul.mubr.bf16.gmra.mxu0 %v916
        %v1121 = vpop.f32.mrf.mxu0
        %v1122 = vadd.f32 %v941, %v1121
        %v1123 = vpop.f32.mrf.mxu0
        %v1124 = vpop.f32.mrf.mxu0
        %v1125 = vadd.f32 %v941, %v1124
        %v1126 = vpop.f32.mrf.mxu0
        %1127 = vmatprep.mubr.bf16.mxu0 0
        %1128 = vmatmul.mubr.bf16.gmra.mxu0 %v917
        %v1129 = vpop.f32.mrf.mxu0
        %v1130 = vadd.f32 %v941, %v1129
        %v1131 = vpop.f32.mrf.mxu0
        %v1132 = vpop.f32.mrf.mxu0
        %v1133 = vadd.f32 %v941, %v1132
        %v1134 = vpop.f32.mrf.mxu0
        %1135 = vmatprep.mubr.bf16.mxu0 0
        %1136 = vmatmul.mubr.bf16.gmra.mxu0 %v918
        %v1137 = vpop.f32.mrf.mxu0
        %v1138 = vadd.f32 %v941, %v1137
        %v1139 = vpop.f32.mrf.mxu0
        %v1140 = vpop.f32.mrf.mxu0
        %v1141 = vadd.f32 %v941, %v1140
        %v1142 = vpop.f32.mrf.mxu0
        %1143 = vmatprep.mubr.bf16.mxu0 0
        %1144 = vmatmul.mubr.bf16.gmra.mxu0 %v919
        %v1145 = vpop.f32.mrf.mxu0
        %v1146 = vadd.f32 %v941, %v1145
        %v1147 = vpop.f32.mrf.mxu0
        %v1148 = vpop.f32.mrf.mxu0
        %v1149 = vadd.f32 %v941, %v1148
        %v1150 = vpop.f32.mrf.mxu0
        %1151 = vdwg.mxu0
        %v1152 = vmax.f32 %v1026, 0.0
        %v1153 = vmax.f32 %v1029, 0.0
        %v1154 = vmax.f32 %v1034, 0.0
        %v1155 = vmax.f32 %v1037, 0.0
        %v1156 = vmax.f32 %v1042, 0.0
        %v1157 = vmax.f32 %v1045, 0.0
        %v1158 = vmax.f32 %v1050, 0.0
        %v1159 = vmax.f32 %v1053, 0.0
        %v1160 = vmax.f32 %v1058, 0.0
        %v1161 = vmax.f32 %v1061, 0.0
        %v1162 = vmax.f32 %v1066, 0.0
        %v1163 = vmax.f32 %v1069, 0.0
        %v1164 = vmax.f32 %v1074, 0.0
        %v1165 = vmax.f32 %v1077, 0.0
        %v1166 = vmax.f32 %v1082, 0.0
        %v1167 = vmax.f32 %v1085, 0.0
        %v1168 = vmax.f32 %v1090, 0.0
        %v1169 = vmax.f32 %v1093, 0.0
        %v1170 = vmax.f32 %v1098, 0.0
        %v1171 = vmax.f32 %v1101, 0.0
        %v1172 = vmax.f32 %v1106, 0.0
        %v1173 = vmax.f32 %v1109, 0.0
        %v1174 = vmax.f32 %v1114, 0.0
        %v1175 = vmax.f32 %v1117, 0.0
        %v1176 = vmax.f32 %v1122, 0.0
        %v1177 = vmax.f32 %v1125, 0.0
        %v1178 = vmax.f32 %v1130, 0.0
        %v1179 = vmax.f32 %v1133, 0.0
        %v1180 = vmax.f32 %v1138, 0.0
        %v1181 = vmax.f32 %v1141, 0.0
        %v1182 = vmax.f32 %v1146, 0.0
        %v1183 = vmax.f32 %v1149, 0.0
        %v1184 = vpack.c.bf16 %v1153, %v1152
        %v1185 = vpack.c.bf16 %v1155, %v1154
        %v1186 = vpack.c.bf16 %v1157, %v1156
        %v1187 = vpack.c.bf16 %v1159, %v1158
        %v1188 = vpack.c.bf16 %v1161, %v1160
        %v1189 = vpack.c.bf16 %v1163, %v1162
        %v1190 = vpack.c.bf16 %v1165, %v1164
        %v1191 = vpack.c.bf16 %v1167, %v1166
        %v1192 = vpack.c.bf16 %v1169, %v1168
        %v1193 = vpack.c.bf16 %v1171, %v1170
        %v1194 = vpack.c.bf16 %v1173, %v1172
        %v1195 = vpack.c.bf16 %v1175, %v1174
        %v1196 = vpack.c.bf16 %v1177, %v1176
        %v1197 = vpack.c.bf16 %v1179, %v1178
        %v1198 = vpack.c.bf16 %v1181, %v1180
        %v1199 = vpack.c.bf16 %v1183, %v1182
        %v1200 = vld [vmem:[%s5] sm:$0xf]
        %v1201 = vld [vmem:[%s5 + $0x4] sm:$0xf]
        %v1202 = vld [vmem:[%s5 + $0x8] sm:$0xf]
        %v1203 = vld [vmem:[%s5 + $0xc] sm:$0xf]
        %v1204 = vld [vmem:[%s5 + $0x10] sm:$0xf]
        %v1205 = vld [vmem:[%s5 + $0x14] sm:$0xf]
        %v1206 = vld [vmem:[%s5 + $0x18] sm:$0xf]
        %v1207 = vld [vmem:[%s5 + $0x1c] sm:$0xf]
        %v1208 = vld [vmem:[%s5 + $0x20] sm:$0xf]
        %v1209 = vld [vmem:[%s5 + $0x24] sm:$0xf]
        %v1210 = vld [vmem:[%s5 + $0x28] sm:$0xf]
        %v1211 = vld [vmem:[%s5 + $0x2c] sm:$0xf]
        %v1212 = vld [vmem:[%s5 + $0x30] sm:$0xf]
        %v1213 = vld [vmem:[%s5 + $0x34] sm:$0xf]
        %v1214 = vld [vmem:[%s5 + $0x38] sm:$0xf]
        %v1215 = vld [vmem:[%s5 + $0x3c] sm:$0xf]
        %v1216 = vld [vmem:[%s6] sm:$0x1]
        %v1218 = vlaneseq
        %v1219 = vshrl.u32 %v1218, 7
        %v1220 = vsub.s32 0, %v1219
        %v1221 = vrot.slane %v1216, %v1220
        %v1239 = vunpack.c.l.b16 %v1200
        %v1240 = vunpack.c.l.b16 %v1201
        %v1241 = vunpack.c.l.b16 %v1202
        %v1242 = vunpack.c.l.b16 %v1203
        %v1243 = vunpack.c.l.b16 %v1204
        %v1244 = vunpack.c.l.b16 %v1205
        %v1245 = vunpack.c.l.b16 %v1206
        %v1246 = vunpack.c.l.b16 %v1207
        %v1247 = vunpack.c.l.b16 %v1208
        %v1248 = vunpack.c.l.b16 %v1209
        %v1249 = vunpack.c.l.b16 %v1210
        %v1250 = vunpack.c.l.b16 %v1211
        %v1251 = vunpack.c.l.b16 %v1212
        %v1252 = vunpack.c.l.b16 %v1213
        %v1253 = vunpack.c.l.b16 %v1214
        %v1254 = vunpack.c.l.b16 %v1215
        %v1255 = vpack.c.b16 %v1240, %v1239
        %v1256 = vpack.c.b16 %v1242, %v1241
        %v1257 = vpack.c.b16 %v1244, %v1243
        %v1258 = vpack.c.b16 %v1246, %v1245
        %v1259 = vpack.c.b16 %v1248, %v1247
        %v1260 = vpack.c.b16 %v1250, %v1249
        %v1261 = vpack.c.b16 %v1252, %v1251
        %v1262 = vpack.c.b16 %v1254, %v1253
        %1271 = vmatprep.subr.bf16.mxu0 0
        %1272 = vmatpush1.bf16.msra.mxu0 %v1262
        %1273 = vmatprep.subr.bf16.mxu0 0
        %1274 = vmatpush1.bf16.msra.mxu0 %v1261
        %1275 = vmatprep.subr.bf16.mxu0 0
        %1276 = vmatpush1.bf16.msra.mxu0 %v1260
        %1277 = vmatprep.subr.bf16.mxu0 0
        %1278 = vmatpush1.bf16.msra.mxu0 %v1259
        %1279 = vmatprep.subr.bf16.mxu0 0
        %1280 = vmatpush1.bf16.msra.mxu0 %v1258
        %1281 = vmatprep.subr.bf16.mxu0 0
        %1282 = vmatpush1.bf16.msra.mxu0 %v1257
        %1283 = vmatprep.subr.bf16.mxu0 0
        %1284 = vmatpush1.bf16.msra.mxu0 %v1256
        %1285 = vmatprep.subr.bf16.mxu0 0
        %1286 = vmatpush1.bf16.msra.mxu0 %v1255
        %1287 = vmatprep.subr.bf16.mxu0 0
        %1288 = vmatpush2.bf16.msra.mxu0 0
        %1289 = vmatprep.subr.bf16.mxu0 0
        %1290 = vmatpush2.bf16.msra.mxu0 0
        %1291 = vmatprep.subr.bf16.mxu0 0
        %1292 = vmatpush2.bf16.msra.mxu0 0
        %1293 = vmatprep.subr.bf16.mxu0 0
        %1294 = vmatpush2.bf16.msra.mxu0 0
        %1295 = vmatprep.subr.bf16.mxu0 0
        %1296 = vmatpush2.bf16.msra.mxu0 0
        %1297 = vmatprep.subr.bf16.mxu0 0
        %1298 = vmatpush2.bf16.msra.mxu0 0
        %1299 = vmatprep.subr.bf16.mxu0 0
        %1300 = vmatpush2.bf16.msra.mxu0 0
        %1301 = vmatprep.subr.bf16.mxu0 0
        %1302 = vmatpush2.bf16.msra.mxu0 0
        %1303 = vmatprep.mubr.bf16.mxu0 0
        %1304 = vmatmul.mubr.bf16.gmra.mxu0 %v1184
        %v1305 = vpop.f32.mrf.mxu0
        %v1306 = vadd.f32 %v1221, %v1305
        %v1307 = vpop.f32.mrf.mxu0
        %v1308 = vpop.f32.mrf.mxu0
        %v1309 = vadd.f32 %v1221, %v1308
        %v1310 = vpop.f32.mrf.mxu0
        %1311 = vmatprep.mubr.bf16.mxu0 0
        %1312 = vmatmul.mubr.bf16.gmra.mxu0 %v1185
        %v1313 = vpop.f32.mrf.mxu0
        %v1314 = vadd.f32 %v1221, %v1313
        %v1315 = vpop.f32.mrf.mxu0
        %v1316 = vpop.f32.mrf.mxu0
        %v1317 = vadd.f32 %v1221, %v1316
        %v1318 = vpop.f32.mrf.mxu0
        %1319 = vmatprep.mubr.bf16.mxu0 0
        %1320 = vmatmul.mubr.bf16.gmra.mxu0 %v1186
        %v1321 = vpop.f32.mrf.mxu0
        %v1322 = vadd.f32 %v1221, %v1321
        %v1323 = vpop.f32.mrf.mxu0
        %v1324 = vpop.f32.mrf.mxu0
        %v1325 = vadd.f32 %v1221, %v1324
        %v1326 = vpop.f32.mrf.mxu0
        %1327 = vmatprep.mubr.bf16.mxu0 0
        %1328 = vmatmul.mubr.bf16.gmra.mxu0 %v1187
        %v1329 = vpop.f32.mrf.mxu0
        %v1330 = vadd.f32 %v1221, %v1329
        %v1331 = vpop.f32.mrf.mxu0
        %v1332 = vpop.f32.mrf.mxu0
        %v1333 = vadd.f32 %v1221, %v1332
        %v1334 = vpop.f32.mrf.mxu0
        %1335 = vmatprep.mubr.bf16.mxu0 0
        %1336 = vmatmul.mubr.bf16.gmra.mxu0 %v1188
        %v1337 = vpop.f32.mrf.mxu0
        %v1338 = vadd.f32 %v1221, %v1337
        %v1339 = vpop.f32.mrf.mxu0
        %v1340 = vpop.f32.mrf.mxu0
        %v1341 = vadd.f32 %v1221, %v1340
        %v1342 = vpop.f32.mrf.mxu0
        %1343 = vmatprep.mubr.bf16.mxu0 0
        %1344 = vmatmul.mubr.bf16.gmra.mxu0 %v1189
        %v1345 = vpop.f32.mrf.mxu0
        %v1346 = vadd.f32 %v1221, %v1345
        %v1347 = vpop.f32.mrf.mxu0
        %v1348 = vpop.f32.mrf.mxu0
        %v1349 = vadd.f32 %v1221, %v1348
        %v1350 = vpop.f32.mrf.mxu0
        %1351 = vmatprep.mubr.bf16.mxu0 0
        %1352 = vmatmul.mubr.bf16.gmra.mxu0 %v1190
        %v1353 = vpop.f32.mrf.mxu0
        %v1354 = vadd.f32 %v1221, %v1353
        %v1355 = vpop.f32.mrf.mxu0
        %v1356 = vpop.f32.mrf.mxu0
        %v1357 = vadd.f32 %v1221, %v1356
        %v1358 = vpop.f32.mrf.mxu0
        %1359 = vmatprep.mubr.bf16.mxu0 0
        %1360 = vmatmul.mubr.bf16.gmra.mxu0 %v1191
        %v1361 = vpop.f32.mrf.mxu0
        %v1362 = vadd.f32 %v1221, %v1361
        %v1363 = vpop.f32.mrf.mxu0
        %v1364 = vpop.f32.mrf.mxu0
        %v1365 = vadd.f32 %v1221, %v1364
        %v1366 = vpop.f32.mrf.mxu0
        %1367 = vmatprep.mubr.bf16.mxu0 0
        %1368 = vmatmul.mubr.bf16.gmra.mxu0 %v1192
        %v1369 = vpop.f32.mrf.mxu0
        %v1370 = vadd.f32 %v1221, %v1369
        %v1371 = vpop.f32.mrf.mxu0
        %v1372 = vpop.f32.mrf.mxu0
        %v1373 = vadd.f32 %v1221, %v1372
        %v1374 = vpop.f32.mrf.mxu0
        %1375 = vmatprep.mubr.bf16.mxu0 0
        %1376 = vmatmul.mubr.bf16.gmra.mxu0 %v1193
        %v1377 = vpop.f32.mrf.mxu0
        %v1378 = vadd.f32 %v1221, %v1377
        %v1379 = vpop.f32.mrf.mxu0
        %v1380 = vpop.f32.mrf.mxu0
        %v1381 = vadd.f32 %v1221, %v1380
        %v1382 = vpop.f32.mrf.mxu0
        %1383 = vmatprep.mubr.bf16.mxu0 0
        %1384 = vmatmul.mubr.bf16.gmra.mxu0 %v1194
        %v1385 = vpop.f32.mrf.mxu0
        %v1386 = vadd.f32 %v1221, %v1385
        %v1387 = vpop.f32.mrf.mxu0
        %v1388 = vpop.f32.mrf.mxu0
        %v1389 = vadd.f32 %v1221, %v1388
        %v1390 = vpop.f32.mrf.mxu0
        %1391 = vmatprep.mubr.bf16.mxu0 0
        %1392 = vmatmul.mubr.bf16.gmra.mxu0 %v1195
        %v1393 = vpop.f32.mrf.mxu0
        %v1394 = vadd.f32 %v1221, %v1393
        %v1395 = vpop.f32.mrf.mxu0
        %v1396 = vpop.f32.mrf.mxu0
        %v1397 = vadd.f32 %v1221, %v1396
        %v1398 = vpop.f32.mrf.mxu0
        %1399 = vmatprep.mubr.bf16.mxu0 0
        %1400 = vmatmul.mubr.bf16.gmra.mxu0 %v1196
        %v1401 = vpop.f32.mrf.mxu0
        %v1402 = vadd.f32 %v1221, %v1401
        %v1403 = vpop.f32.mrf.mxu0
        %v1404 = vpop.f32.mrf.mxu0
        %v1405 = vadd.f32 %v1221, %v1404
        %v1406 = vpop.f32.mrf.mxu0
        %1407 = vmatprep.mubr.bf16.mxu0 0
        %1408 = vmatmul.mubr.bf16.gmra.mxu0 %v1197
        %v1409 = vpop.f32.mrf.mxu0
        %v1410 = vadd.f32 %v1221, %v1409
        %v1411 = vpop.f32.mrf.mxu0
        %v1412 = vpop.f32.mrf.mxu0
        %v1413 = vadd.f32 %v1221, %v1412
        %v1414 = vpop.f32.mrf.mxu0
        %1415 = vmatprep.mubr.bf16.mxu0 0
        %1416 = vmatmul.mubr.bf16.gmra.mxu0 %v1198
        %v1417 = vpop.f32.mrf.mxu0
        %v1418 = vadd.f32 %v1221, %v1417
        %v1419 = vpop.f32.mrf.mxu0
        %v1420 = vpop.f32.mrf.mxu0
        %v1421 = vadd.f32 %v1221, %v1420
        %v1422 = vpop.f32.mrf.mxu0
        %1423 = vmatprep.mubr.bf16.mxu0 0
        %1424 = vmatmul.mubr.bf16.gmra.mxu0 %v1199
        %v1425 = vpop.f32.mrf.mxu0
        %v1426 = vadd.f32 %v1221, %v1425
        %v1427 = vpop.f32.mrf.mxu0
        %v1428 = vpop.f32.mrf.mxu0
        %v1429 = vadd.f32 %v1221, %v1428
        %v1430 = vpop.f32.mrf.mxu0
        %1431 = vdwg.mxu0
        %v1432 = vmax.f32 %v1306, 0.0
        %v1433 = vmax.f32 %v1309, 0.0
        %v1434 = vmax.f32 %v1314, 0.0
        %v1435 = vmax.f32 %v1317, 0.0
        %v1436 = vmax.f32 %v1322, 0.0
        %v1437 = vmax.f32 %v1325, 0.0
        %v1438 = vmax.f32 %v1330, 0.0
        %v1439 = vmax.f32 %v1333, 0.0
        %v1440 = vmax.f32 %v1338, 0.0
        %v1441 = vmax.f32 %v1341, 0.0
        %v1442 = vmax.f32 %v1346, 0.0
        %v1443 = vmax.f32 %v1349, 0.0
        %v1444 = vmax.f32 %v1354, 0.0
        %v1445 = vmax.f32 %v1357, 0.0
        %v1446 = vmax.f32 %v1362, 0.0
        %v1447 = vmax.f32 %v1365, 0.0
        %v1448 = vmax.f32 %v1370, 0.0
        %v1449 = vmax.f32 %v1373, 0.0
        %v1450 = vmax.f32 %v1378, 0.0
        %v1451 = vmax.f32 %v1381, 0.0
        %v1452 = vmax.f32 %v1386, 0.0
        %v1453 = vmax.f32 %v1389, 0.0
        %v1454 = vmax.f32 %v1394, 0.0
        %v1455 = vmax.f32 %v1397, 0.0
        %v1456 = vmax.f32 %v1402, 0.0
        %v1457 = vmax.f32 %v1405, 0.0
        %v1458 = vmax.f32 %v1410, 0.0
        %v1459 = vmax.f32 %v1413, 0.0
        %v1460 = vmax.f32 %v1418, 0.0
        %v1461 = vmax.f32 %v1421, 0.0
        %v1462 = vmax.f32 %v1426, 0.0
        %v1463 = vmax.f32 %v1429, 0.0
        %v1464 = vpack.c.bf16 %v1433, %v1432
        %v1465 = vpack.c.bf16 %v1435, %v1434
        %v1466 = vpack.c.bf16 %v1437, %v1436
        %v1467 = vpack.c.bf16 %v1439, %v1438
        %v1468 = vpack.c.bf16 %v1441, %v1440
        %v1469 = vpack.c.bf16 %v1443, %v1442
        %v1470 = vpack.c.bf16 %v1445, %v1444
        %v1471 = vpack.c.bf16 %v1447, %v1446
        %v1472 = vpack.c.bf16 %v1449, %v1448
        %v1473 = vpack.c.bf16 %v1451, %v1450
        %v1474 = vpack.c.bf16 %v1453, %v1452
        %v1475 = vpack.c.bf16 %v1455, %v1454
        %v1476 = vpack.c.bf16 %v1457, %v1456
        %v1477 = vpack.c.bf16 %v1459, %v1458
        %v1478 = vpack.c.bf16 %v1461, %v1460
        %v1479 = vpack.c.bf16 %v1463, %v1462
        %v1480 = vld [vmem:[%s7] sm:$0xf]
        %v1481 = vld [vmem:[%s7 + $0x4] sm:$0xf]
        %v1482 = vld [vmem:[%s7 + $0x8] sm:$0xf]
        %v1483 = vld [vmem:[%s7 + $0xc] sm:$0xf]
        %v1484 = vld [vmem:[%s7 + $0x10] sm:$0xf]
        %v1485 = vld [vmem:[%s7 + $0x14] sm:$0xf]
        %v1486 = vld [vmem:[%s7 + $0x18] sm:$0xf]
        %v1487 = vld [vmem:[%s7 + $0x1c] sm:$0xf]
        %v1488 = vld [vmem:[%s7 + $0x20] sm:$0xf]
        %v1489 = vld [vmem:[%s7 + $0x24] sm:$0xf]
        %v1490 = vld [vmem:[%s7 + $0x28] sm:$0xf]
        %v1491 = vld [vmem:[%s7 + $0x2c] sm:$0xf]
        %v1492 = vld [vmem:[%s7 + $0x30] sm:$0xf]
        %v1493 = vld [vmem:[%s7 + $0x34] sm:$0xf]
        %v1494 = vld [vmem:[%s7 + $0x38] sm:$0xf]
        %v1495 = vld [vmem:[%s7 + $0x3c] sm:$0xf]
        %v1496 = vld [vmem:[%s8] sm:$0x1]
        %v1498 = vlaneseq
        %v1499 = vshrl.u32 %v1498, 7
        %v1500 = vsub.s32 0, %v1499
        %v1501 = vrot.slane %v1496, %v1500
        %v1519 = vunpack.c.l.b16 %v1480
        %v1520 = vunpack.c.l.b16 %v1481
        %v1521 = vunpack.c.l.b16 %v1482
        %v1522 = vunpack.c.l.b16 %v1483
        %v1523 = vunpack.c.l.b16 %v1484
        %v1524 = vunpack.c.l.b16 %v1485
        %v1525 = vunpack.c.l.b16 %v1486
        %v1526 = vunpack.c.l.b16 %v1487
        %v1527 = vunpack.c.l.b16 %v1488
        %v1528 = vunpack.c.l.b16 %v1489
        %v1529 = vunpack.c.l.b16 %v1490
        %v1530 = vunpack.c.l.b16 %v1491
        %v1531 = vunpack.c.l.b16 %v1492
        %v1532 = vunpack.c.l.b16 %v1493
        %v1533 = vunpack.c.l.b16 %v1494
        %v1534 = vunpack.c.l.b16 %v1495
        %v1535 = vpack.c.b16 %v1520, %v1519
        %v1536 = vpack.c.b16 %v1522, %v1521
        %v1537 = vpack.c.b16 %v1524, %v1523
        %v1538 = vpack.c.b16 %v1526, %v1525
        %v1539 = vpack.c.b16 %v1528, %v1527
        %v1540 = vpack.c.b16 %v1530, %v1529
        %v1541 = vpack.c.b16 %v1532, %v1531
        %v1542 = vpack.c.b16 %v1534, %v1533
        %1551 = vmatprep.subr.bf16.mxu0 0
        %1552 = vmatpush1.bf16.msra.mxu0 %v1542
        %1553 = vmatprep.subr.bf16.mxu0 0
        %1554 = vmatpush1.bf16.msra.mxu0 %v1541
        %1555 = vmatprep.subr.bf16.mxu0 0
        %1556 = vmatpush1.bf16.msra.mxu0 %v1540
        %1557 = vmatprep.subr.bf16.mxu0 0
        %1558 = vmatpush1.bf16.msra.mxu0 %v1539
        %1559 = vmatprep.subr.bf16.mxu0 0
        %1560 = vmatpush1.bf16.msra.mxu0 %v1538
        %1561 = vmatprep.subr.bf16.mxu0 0
        %1562 = vmatpush1.bf16.msra.mxu0 %v1537
        %1563 = vmatprep.subr.bf16.mxu0 0
        %1564 = vmatpush1.bf16.msra.mxu0 %v1536
        %1565 = vmatprep.subr.bf16.mxu0 0
        %1566 = vmatpush1.bf16.msra.mxu0 %v1535
        %1567 = vmatprep.subr.bf16.mxu0 0
        %1568 = vmatpush2.bf16.msra.mxu0 0
        %1569 = vmatprep.subr.bf16.mxu0 0
        %1570 = vmatpush2.bf16.msra.mxu0 0
        %1571 = vmatprep.subr.bf16.mxu0 0
        %1572 = vmatpush2.bf16.msra.mxu0 0
        %1573 = vmatprep.subr.bf16.mxu0 0
        %1574 = vmatpush2.bf16.msra.mxu0 0
        %1575 = vmatprep.subr.bf16.mxu0 0
        %1576 = vmatpush2.bf16.msra.mxu0 0
        %1577 = vmatprep.subr.bf16.mxu0 0
        %1578 = vmatpush2.bf16.msra.mxu0 0
        %1579 = vmatprep.subr.bf16.mxu0 0
        %1580 = vmatpush2.bf16.msra.mxu0 0
        %1581 = vmatprep.subr.bf16.mxu0 0
        %1582 = vmatpush2.bf16.msra.mxu0 0
        %1583 = vmatprep.mubr.bf16.mxu0 0
        %1584 = vmatmul.mubr.bf16.gmra.mxu0 %v1464
        %v1585 = vpop.f32.mrf.mxu0
        %v1586 = vadd.f32 %v1501, %v1585
        %v1587 = vpop.f32.mrf.mxu0
        %v1588 = vpop.f32.mrf.mxu0
        %v1589 = vadd.f32 %v1501, %v1588
        %v1590 = vpop.f32.mrf.mxu0
        %1591 = vmatprep.mubr.bf16.mxu0 0
        %1592 = vmatmul.mubr.bf16.gmra.mxu0 %v1465
        %v1593 = vpop.f32.mrf.mxu0
        %v1594 = vadd.f32 %v1501, %v1593
        %v1595 = vpop.f32.mrf.mxu0
        %v1596 = vpop.f32.mrf.mxu0
        %v1597 = vadd.f32 %v1501, %v1596
        %v1598 = vpop.f32.mrf.mxu0
        %1599 = vmatprep.mubr.bf16.mxu0 0
        %1600 = vmatmul.mubr.bf16.gmra.mxu0 %v1466
        %v1601 = vpop.f32.mrf.mxu0
        %v1602 = vadd.f32 %v1501, %v1601
        %v1603 = vpop.f32.mrf.mxu0
        %v1604 = vpop.f32.mrf.mxu0
        %v1605 = vadd.f32 %v1501, %v1604
        %v1606 = vpop.f32.mrf.mxu0
        %1607 = vmatprep.mubr.bf16.mxu0 0
        %1608 = vmatmul.mubr.bf16.gmra.mxu0 %v1467
        %v1609 = vpop.f32.mrf.mxu0
        %v1610 = vadd.f32 %v1501, %v1609
        %v1611 = vpop.f32.mrf.mxu0
        %v1612 = vpop.f32.mrf.mxu0
        %v1613 = vadd.f32 %v1501, %v1612
        %v1614 = vpop.f32.mrf.mxu0
        %1615 = vmatprep.mubr.bf16.mxu0 0
        %1616 = vmatmul.mubr.bf16.gmra.mxu0 %v1468
        %v1617 = vpop.f32.mrf.mxu0
        %v1618 = vadd.f32 %v1501, %v1617
        %v1619 = vpop.f32.mrf.mxu0
        %v1620 = vpop.f32.mrf.mxu0
        %v1621 = vadd.f32 %v1501, %v1620
        %v1622 = vpop.f32.mrf.mxu0
        %1623 = vmatprep.mubr.bf16.mxu0 0
        %1624 = vmatmul.mubr.bf16.gmra.mxu0 %v1469
        %v1625 = vpop.f32.mrf.mxu0
        %v1626 = vadd.f32 %v1501, %v1625
        %v1627 = vpop.f32.mrf.mxu0
        %v1628 = vpop.f32.mrf.mxu0
        %v1629 = vadd.f32 %v1501, %v1628
        %v1630 = vpop.f32.mrf.mxu0
        %1631 = vmatprep.mubr.bf16.mxu0 0
        %1632 = vmatmul.mubr.bf16.gmra.mxu0 %v1470
        %v1633 = vpop.f32.mrf.mxu0
        %v1634 = vadd.f32 %v1501, %v1633
        %v1635 = vpop.f32.mrf.mxu0
        %v1636 = vpop.f32.mrf.mxu0
        %v1637 = vadd.f32 %v1501, %v1636
        %v1638 = vpop.f32.mrf.mxu0
        %1639 = vmatprep.mubr.bf16.mxu0 0
        %1640 = vmatmul.mubr.bf16.gmra.mxu0 %v1471
        %v1641 = vpop.f32.mrf.mxu0
        %v1642 = vadd.f32 %v1501, %v1641
        %v1643 = vpop.f32.mrf.mxu0
        %v1644 = vpop.f32.mrf.mxu0
        %v1645 = vadd.f32 %v1501, %v1644
        %v1646 = vpop.f32.mrf.mxu0
        %1647 = vmatprep.mubr.bf16.mxu0 0
        %1648 = vmatmul.mubr.bf16.gmra.mxu0 %v1472
        %v1649 = vpop.f32.mrf.mxu0
        %v1650 = vadd.f32 %v1501, %v1649
        %v1651 = vpop.f32.mrf.mxu0
        %v1652 = vpop.f32.mrf.mxu0
        %v1653 = vadd.f32 %v1501, %v1652
        %v1654 = vpop.f32.mrf.mxu0
        %1655 = vmatprep.mubr.bf16.mxu0 0
        %1656 = vmatmul.mubr.bf16.gmra.mxu0 %v1473
        %v1657 = vpop.f32.mrf.mxu0
        %v1658 = vadd.f32 %v1501, %v1657
        %v1659 = vpop.f32.mrf.mxu0
        %v1660 = vpop.f32.mrf.mxu0
        %v1661 = vadd.f32 %v1501, %v1660
        %v1662 = vpop.f32.mrf.mxu0
        %1663 = vmatprep.mubr.bf16.mxu0 0
        %1664 = vmatmul.mubr.bf16.gmra.mxu0 %v1474
        %v1665 = vpop.f32.mrf.mxu0
        %v1666 = vadd.f32 %v1501, %v1665
        %v1667 = vpop.f32.mrf.mxu0
        %v1668 = vpop.f32.mrf.mxu0
        %v1669 = vadd.f32 %v1501, %v1668
        %v1670 = vpop.f32.mrf.mxu0
        %1671 = vmatprep.mubr.bf16.mxu0 0
        %1672 = vmatmul.mubr.bf16.gmra.mxu0 %v1475
        %v1673 = vpop.f32.mrf.mxu0
        %v1674 = vadd.f32 %v1501, %v1673
        %v1675 = vpop.f32.mrf.mxu0
        %v1676 = vpop.f32.mrf.mxu0
        %v1677 = vadd.f32 %v1501, %v1676
        %v1678 = vpop.f32.mrf.mxu0
        %1679 = vmatprep.mubr.bf16.mxu0 0
        %1680 = vmatmul.mubr.bf16.gmra.mxu0 %v1476
        %v1681 = vpop.f32.mrf.mxu0
        %v1682 = vadd.f32 %v1501, %v1681
        %v1683 = vpop.f32.mrf.mxu0
        %v1684 = vpop.f32.mrf.mxu0
        %v1685 = vadd.f32 %v1501, %v1684
        %v1686 = vpop.f32.mrf.mxu0
        %1687 = vmatprep.mubr.bf16.mxu0 0
        %1688 = vmatmul.mubr.bf16.gmra.mxu0 %v1477
        %v1689 = vpop.f32.mrf.mxu0
        %v1690 = vadd.f32 %v1501, %v1689
        %v1691 = vpop.f32.mrf.mxu0
        %v1692 = vpop.f32.mrf.mxu0
        %v1693 = vadd.f32 %v1501, %v1692
        %v1694 = vpop.f32.mrf.mxu0
        %1695 = vmatprep.mubr.bf16.mxu0 0
        %1696 = vmatmul.mubr.bf16.gmra.mxu0 %v1478
        %v1697 = vpop.f32.mrf.mxu0
        %v1698 = vadd.f32 %v1501, %v1697
        %v1699 = vpop.f32.mrf.mxu0
        %v1700 = vpop.f32.mrf.mxu0
        %v1701 = vadd.f32 %v1501, %v1700
        %v1702 = vpop.f32.mrf.mxu0
        %1703 = vmatprep.mubr.bf16.mxu0 0
        %1704 = vmatmul.mubr.bf16.gmra.mxu0 %v1479
        %v1705 = vpop.f32.mrf.mxu0
        %v1706 = vadd.f32 %v1501, %v1705
        %v1707 = vpop.f32.mrf.mxu0
        %v1708 = vpop.f32.mrf.mxu0
        %v1709 = vadd.f32 %v1501, %v1708
        %v1710 = vpop.f32.mrf.mxu0
        %1711 = vdwg.mxu0
        %v1712 = vmax.f32 %v1586, 0.0
        %v1713 = vmax.f32 %v1589, 0.0
        %v1714 = vmax.f32 %v1594, 0.0
        %v1715 = vmax.f32 %v1597, 0.0
        %v1716 = vmax.f32 %v1602, 0.0
        %v1717 = vmax.f32 %v1605, 0.0
        %v1718 = vmax.f32 %v1610, 0.0
        %v1719 = vmax.f32 %v1613, 0.0
        %v1720 = vmax.f32 %v1618, 0.0
        %v1721 = vmax.f32 %v1621, 0.0
        %v1722 = vmax.f32 %v1626, 0.0
        %v1723 = vmax.f32 %v1629, 0.0
        %v1724 = vmax.f32 %v1634, 0.0
        %v1725 = vmax.f32 %v1637, 0.0
        %v1726 = vmax.f32 %v1642, 0.0
        %v1727 = vmax.f32 %v1645, 0.0
        %v1728 = vmax.f32 %v1650, 0.0
        %v1729 = vmax.f32 %v1653, 0.0
        %v1730 = vmax.f32 %v1658, 0.0
        %v1731 = vmax.f32 %v1661, 0.0
        %v1732 = vmax.f32 %v1666, 0.0
        %v1733 = vmax.f32 %v1669, 0.0
        %v1734 = vmax.f32 %v1674, 0.0
        %v1735 = vmax.f32 %v1677, 0.0
        %v1736 = vmax.f32 %v1682, 0.0
        %v1737 = vmax.f32 %v1685, 0.0
        %v1738 = vmax.f32 %v1690, 0.0
        %v1739 = vmax.f32 %v1693, 0.0
        %v1740 = vmax.f32 %v1698, 0.0
        %v1741 = vmax.f32 %v1701, 0.0
        %v1742 = vmax.f32 %v1706, 0.0
        %v1743 = vmax.f32 %v1709, 0.0
        %v1744 = vpack.c.bf16 %v1713, %v1712
        %v1745 = vpack.c.bf16 %v1715, %v1714
        %v1746 = vpack.c.bf16 %v1717, %v1716
        %v1747 = vpack.c.bf16 %v1719, %v1718
        %v1748 = vpack.c.bf16 %v1721, %v1720
        %v1749 = vpack.c.bf16 %v1723, %v1722
        %v1750 = vpack.c.bf16 %v1725, %v1724
        %v1751 = vpack.c.bf16 %v1727, %v1726
        %v1752 = vpack.c.bf16 %v1729, %v1728
        %v1753 = vpack.c.bf16 %v1731, %v1730
        %v1754 = vpack.c.bf16 %v1733, %v1732
        %v1755 = vpack.c.bf16 %v1735, %v1734
        %v1756 = vpack.c.bf16 %v1737, %v1736
        %v1757 = vpack.c.bf16 %v1739, %v1738
        %v1758 = vpack.c.bf16 %v1741, %v1740
        %v1759 = vpack.c.bf16 %v1743, %v1742
        %v1760 = vld [vmem:[%s9] sm:$0xf]
        %v1761 = vld [vmem:[%s9 + $0x4] sm:$0xf]
        %v1762 = vld [vmem:[%s9 + $0x8] sm:$0xf]
        %v1763 = vld [vmem:[%s9 + $0xc] sm:$0xf]
        %v1764 = vld [vmem:[%s9 + $0x10] sm:$0xf]
        %v1765 = vld [vmem:[%s9 + $0x14] sm:$0xf]
        %v1766 = vld [vmem:[%s9 + $0x18] sm:$0xf]
        %v1767 = vld [vmem:[%s9 + $0x1c] sm:$0xf]
        %v1768 = vld [vmem:[%s9 + $0x20] sm:$0xf]
        %v1769 = vld [vmem:[%s9 + $0x24] sm:$0xf]
        %v1770 = vld [vmem:[%s9 + $0x28] sm:$0xf]
        %v1771 = vld [vmem:[%s9 + $0x2c] sm:$0xf]
        %v1772 = vld [vmem:[%s9 + $0x30] sm:$0xf]
        %v1773 = vld [vmem:[%s9 + $0x34] sm:$0xf]
        %v1774 = vld [vmem:[%s9 + $0x38] sm:$0xf]
        %v1775 = vld [vmem:[%s9 + $0x3c] sm:$0xf]
        %v1776 = vld [vmem:[%s10] sm:$0x1]
        %v1778 = vlaneseq
        %v1779 = vshrl.u32 %v1778, 7
        %v1780 = vsub.s32 0, %v1779
        %v1781 = vrot.slane %v1776, %v1780
        %v1799 = vunpack.c.l.b16 %v1760
        %v1800 = vunpack.c.l.b16 %v1761
        %v1801 = vunpack.c.l.b16 %v1762
        %v1802 = vunpack.c.l.b16 %v1763
        %v1803 = vunpack.c.l.b16 %v1764
        %v1804 = vunpack.c.l.b16 %v1765
        %v1805 = vunpack.c.l.b16 %v1766
        %v1806 = vunpack.c.l.b16 %v1767
        %v1807 = vunpack.c.l.b16 %v1768
        %v1808 = vunpack.c.l.b16 %v1769
        %v1809 = vunpack.c.l.b16 %v1770
        %v1810 = vunpack.c.l.b16 %v1771
        %v1811 = vunpack.c.l.b16 %v1772
        %v1812 = vunpack.c.l.b16 %v1773
        %v1813 = vunpack.c.l.b16 %v1774
        %v1814 = vunpack.c.l.b16 %v1775
        %v1815 = vpack.c.b16 %v1800, %v1799
        %v1816 = vpack.c.b16 %v1802, %v1801
        %v1817 = vpack.c.b16 %v1804, %v1803
        %v1818 = vpack.c.b16 %v1806, %v1805
        %v1819 = vpack.c.b16 %v1808, %v1807
        %v1820 = vpack.c.b16 %v1810, %v1809
        %v1821 = vpack.c.b16 %v1812, %v1811
        %v1822 = vpack.c.b16 %v1814, %v1813
        %1831 = vmatprep.subr.bf16.mxu0 0
        %1832 = vmatpush1.bf16.msra.mxu0 %v1822
        %1833 = vmatprep.subr.bf16.mxu0 0
        %1834 = vmatpush1.bf16.msra.mxu0 %v1821
        %1835 = vmatprep.subr.bf16.mxu0 0
        %1836 = vmatpush1.bf16.msra.mxu0 %v1820
        %1837 = vmatprep.subr.bf16.mxu0 0
        %1838 = vmatpush1.bf16.msra.mxu0 %v1819
        %1839 = vmatprep.subr.bf16.mxu0 0
        %1840 = vmatpush1.bf16.msra.mxu0 %v1818
        %1841 = vmatprep.subr.bf16.mxu0 0
        %1842 = vmatpush1.bf16.msra.mxu0 %v1817
        %1843 = vmatprep.subr.bf16.mxu0 0
        %1844 = vmatpush1.bf16.msra.mxu0 %v1816
        %1845 = vmatprep.subr.bf16.mxu0 0
        %1846 = vmatpush1.bf16.msra.mxu0 %v1815
        %1847 = vmatprep.subr.bf16.mxu0 0
        %1848 = vmatpush2.bf16.msra.mxu0 0
        %1849 = vmatprep.subr.bf16.mxu0 0
        %1850 = vmatpush2.bf16.msra.mxu0 0
        %1851 = vmatprep.subr.bf16.mxu0 0
        %1852 = vmatpush2.bf16.msra.mxu0 0
        %1853 = vmatprep.subr.bf16.mxu0 0
        %1854 = vmatpush2.bf16.msra.mxu0 0
        %1855 = vmatprep.subr.bf16.mxu0 0
        %1856 = vmatpush2.bf16.msra.mxu0 0
        %1857 = vmatprep.subr.bf16.mxu0 0
        %1858 = vmatpush2.bf16.msra.mxu0 0
        %1859 = vmatprep.subr.bf16.mxu0 0
        %1860 = vmatpush2.bf16.msra.mxu0 0
        %1861 = vmatprep.subr.bf16.mxu0 0
        %1862 = vmatpush2.bf16.msra.mxu0 0
        %1863 = vmatprep.mubr.bf16.mxu0 0
        %1864 = vmatmul.mubr.bf16.gmra.mxu0 %v1744
        %v1865 = vpop.f32.mrf.mxu0
        %v1866 = vadd.f32 %v1781, %v1865
        %v1867 = vpop.f32.mrf.mxu0
        %v1868 = vpop.f32.mrf.mxu0
        %v1869 = vadd.f32 %v1781, %v1868
        %v1870 = vpop.f32.mrf.mxu0
        %1871 = vmatprep.mubr.bf16.mxu0 0
        %1872 = vmatmul.mubr.bf16.gmra.mxu0 %v1745
        %v1873 = vpop.f32.mrf.mxu0
        %v1874 = vadd.f32 %v1781, %v1873
        %v1875 = vpop.f32.mrf.mxu0
        %v1876 = vpop.f32.mrf.mxu0
        %v1877 = vadd.f32 %v1781, %v1876
        %v1878 = vpop.f32.mrf.mxu0
        %1879 = vmatprep.mubr.bf16.mxu0 0
        %1880 = vmatmul.mubr.bf16.gmra.mxu0 %v1746
        %v1881 = vpop.f32.mrf.mxu0
        %v1882 = vadd.f32 %v1781, %v1881
        %v1883 = vpop.f32.mrf.mxu0
        %v1884 = vpop.f32.mrf.mxu0
        %v1885 = vadd.f32 %v1781, %v1884
        %v1886 = vpop.f32.mrf.mxu0
        %1887 = vmatprep.mubr.bf16.mxu0 0
        %1888 = vmatmul.mubr.bf16.gmra.mxu0 %v1747
        %v1889 = vpop.f32.mrf.mxu0
        %v1890 = vadd.f32 %v1781, %v1889
        %v1891 = vpop.f32.mrf.mxu0
        %v1892 = vpop.f32.mrf.mxu0
        %v1893 = vadd.f32 %v1781, %v1892
        %v1894 = vpop.f32.mrf.mxu0
        %1895 = vmatprep.mubr.bf16.mxu0 0
        %1896 = vmatmul.mubr.bf16.gmra.mxu0 %v1748
        %v1897 = vpop.f32.mrf.mxu0
        %v1898 = vadd.f32 %v1781, %v1897
        %v1899 = vpop.f32.mrf.mxu0
        %v1900 = vpop.f32.mrf.mxu0
        %v1901 = vadd.f32 %v1781, %v1900
        %v1902 = vpop.f32.mrf.mxu0
        %1903 = vmatprep.mubr.bf16.mxu0 0
        %1904 = vmatmul.mubr.bf16.gmra.mxu0 %v1749
        %v1905 = vpop.f32.mrf.mxu0
        %v1906 = vadd.f32 %v1781, %v1905
        %v1907 = vpop.f32.mrf.mxu0
        %v1908 = vpop.f32.mrf.mxu0
        %v1909 = vadd.f32 %v1781, %v1908
        %v1910 = vpop.f32.mrf.mxu0
        %1911 = vmatprep.mubr.bf16.mxu0 0
        %1912 = vmatmul.mubr.bf16.gmra.mxu0 %v1750
        %v1913 = vpop.f32.mrf.mxu0
        %v1914 = vadd.f32 %v1781, %v1913
        %v1915 = vpop.f32.mrf.mxu0
        %v1916 = vpop.f32.mrf.mxu0
        %v1917 = vadd.f32 %v1781, %v1916
        %v1918 = vpop.f32.mrf.mxu0
        %1919 = vmatprep.mubr.bf16.mxu0 0
        %1920 = vmatmul.mubr.bf16.gmra.mxu0 %v1751
        %v1921 = vpop.f32.mrf.mxu0
        %v1922 = vadd.f32 %v1781, %v1921
        %v1923 = vpop.f32.mrf.mxu0
        %v1924 = vpop.f32.mrf.mxu0
        %v1925 = vadd.f32 %v1781, %v1924
        %v1926 = vpop.f32.mrf.mxu0
        %1927 = vmatprep.mubr.bf16.mxu0 0
        %1928 = vmatmul.mubr.bf16.gmra.mxu0 %v1752
        %v1929 = vpop.f32.mrf.mxu0
        %v1930 = vadd.f32 %v1781, %v1929
        %v1931 = vpop.f32.mrf.mxu0
        %v1932 = vpop.f32.mrf.mxu0
        %v1933 = vadd.f32 %v1781, %v1932
        %v1934 = vpop.f32.mrf.mxu0
        %1935 = vmatprep.mubr.bf16.mxu0 0
        %1936 = vmatmul.mubr.bf16.gmra.mxu0 %v1753
        %v1937 = vpop.f32.mrf.mxu0
        %v1938 = vadd.f32 %v1781, %v1937
        %v1939 = vpop.f32.mrf.mxu0
        %v1940 = vpop.f32.mrf.mxu0
        %v1941 = vadd.f32 %v1781, %v1940
        %v1942 = vpop.f32.mrf.mxu0
        %1943 = vmatprep.mubr.bf16.mxu0 0
        %1944 = vmatmul.mubr.bf16.gmra.mxu0 %v1754
        %v1945 = vpop.f32.mrf.mxu0
        %v1946 = vadd.f32 %v1781, %v1945
        %v1947 = vpop.f32.mrf.mxu0
        %v1948 = vpop.f32.mrf.mxu0
        %v1949 = vadd.f32 %v1781, %v1948
        %v1950 = vpop.f32.mrf.mxu0
        %1951 = vmatprep.mubr.bf16.mxu0 0
        %1952 = vmatmul.mubr.bf16.gmra.mxu0 %v1755
        %v1953 = vpop.f32.mrf.mxu0
        %v1954 = vadd.f32 %v1781, %v1953
        %v1955 = vpop.f32.mrf.mxu0
        %v1956 = vpop.f32.mrf.mxu0
        %v1957 = vadd.f32 %v1781, %v1956
        %v1958 = vpop.f32.mrf.mxu0
        %1959 = vmatprep.mubr.bf16.mxu0 0
        %1960 = vmatmul.mubr.bf16.gmra.mxu0 %v1756
        %v1961 = vpop.f32.mrf.mxu0
        %v1962 = vadd.f32 %v1781, %v1961
        %v1963 = vpop.f32.mrf.mxu0
        %v1964 = vpop.f32.mrf.mxu0
        %v1965 = vadd.f32 %v1781, %v1964
        %v1966 = vpop.f32.mrf.mxu0
        %1967 = vmatprep.mubr.bf16.mxu0 0
        %1968 = vmatmul.mubr.bf16.gmra.mxu0 %v1757
        %v1969 = vpop.f32.mrf.mxu0
        %v1970 = vadd.f32 %v1781, %v1969
        %v1971 = vpop.f32.mrf.mxu0
        %v1972 = vpop.f32.mrf.mxu0
        %v1973 = vadd.f32 %v1781, %v1972
        %v1974 = vpop.f32.mrf.mxu0
        %1975 = vmatprep.mubr.bf16.mxu0 0
        %1976 = vmatmul.mubr.bf16.gmra.mxu0 %v1758
        %v1977 = vpop.f32.mrf.mxu0
        %v1978 = vadd.f32 %v1781, %v1977
        %v1979 = vpop.f32.mrf.mxu0
        %v1980 = vpop.f32.mrf.mxu0
        %v1981 = vadd.f32 %v1781, %v1980
        %v1982 = vpop.f32.mrf.mxu0
        %1983 = vmatprep.mubr.bf16.mxu0 0
        %1984 = vmatmul.mubr.bf16.gmra.mxu0 %v1759
        %v1985 = vpop.f32.mrf.mxu0
        %v1986 = vadd.f32 %v1781, %v1985
        %v1987 = vpop.f32.mrf.mxu0
        %v1988 = vpop.f32.mrf.mxu0
        %v1989 = vadd.f32 %v1781, %v1988
        %v1990 = vpop.f32.mrf.mxu0
        %1991 = vdwg.mxu0
        %v1992 = vmax.f32 %v1866, 0.0
        %v1993 = vmax.f32 %v1869, 0.0
        %v1994 = vmax.f32 %v1874, 0.0
        %v1995 = vmax.f32 %v1877, 0.0
        %v1996 = vmax.f32 %v1882, 0.0
        %v1997 = vmax.f32 %v1885, 0.0
        %v1998 = vmax.f32 %v1890, 0.0
        %v1999 = vmax.f32 %v1893, 0.0
        %v2000 = vmax.f32 %v1898, 0.0
        %v2001 = vmax.f32 %v1901, 0.0
        %v2002 = vmax.f32 %v1906, 0.0
        %v2003 = vmax.f32 %v1909, 0.0
        %v2004 = vmax.f32 %v1914, 0.0
        %v2005 = vmax.f32 %v1917, 0.0
        %v2006 = vmax.f32 %v1922, 0.0
        %v2007 = vmax.f32 %v1925, 0.0
        %v2008 = vmax.f32 %v1930, 0.0
        %v2009 = vmax.f32 %v1933, 0.0
        %v2010 = vmax.f32 %v1938, 0.0
        %v2011 = vmax.f32 %v1941, 0.0
        %v2012 = vmax.f32 %v1946, 0.0
        %v2013 = vmax.f32 %v1949, 0.0
        %v2014 = vmax.f32 %v1954, 0.0
        %v2015 = vmax.f32 %v1957, 0.0
        %v2016 = vmax.f32 %v1962, 0.0
        %v2017 = vmax.f32 %v1965, 0.0
        %v2018 = vmax.f32 %v1970, 0.0
        %v2019 = vmax.f32 %v1973, 0.0
        %v2020 = vmax.f32 %v1978, 0.0
        %v2021 = vmax.f32 %v1981, 0.0
        %v2022 = vmax.f32 %v1986, 0.0
        %v2023 = vmax.f32 %v1989, 0.0
        %v2024 = vpack.c.bf16 %v1993, %v1992
        %v2025 = vpack.c.bf16 %v1995, %v1994
        %v2026 = vpack.c.bf16 %v1997, %v1996
        %v2027 = vpack.c.bf16 %v1999, %v1998
        %v2028 = vpack.c.bf16 %v2001, %v2000
        %v2029 = vpack.c.bf16 %v2003, %v2002
        %v2030 = vpack.c.bf16 %v2005, %v2004
        %v2031 = vpack.c.bf16 %v2007, %v2006
        %v2032 = vpack.c.bf16 %v2009, %v2008
        %v2033 = vpack.c.bf16 %v2011, %v2010
        %v2034 = vpack.c.bf16 %v2013, %v2012
        %v2035 = vpack.c.bf16 %v2015, %v2014
        %v2036 = vpack.c.bf16 %v2017, %v2016
        %v2037 = vpack.c.bf16 %v2019, %v2018
        %v2038 = vpack.c.bf16 %v2021, %v2020
        %v2039 = vpack.c.bf16 %v2023, %v2022
        %v2040 = vld [vmem:[%s11] sm:$0xf]
        %v2041 = vld [vmem:[%s11 + $0x4] sm:$0xf]
        %v2042 = vld [vmem:[%s11 + $0x8] sm:$0xf]
        %v2043 = vld [vmem:[%s11 + $0xc] sm:$0xf]
        %v2044 = vld [vmem:[%s11 + $0x10] sm:$0xf]
        %v2045 = vld [vmem:[%s11 + $0x14] sm:$0xf]
        %v2046 = vld [vmem:[%s11 + $0x18] sm:$0xf]
        %v2047 = vld [vmem:[%s11 + $0x1c] sm:$0xf]
        %v2048 = vld [vmem:[%s11 + $0x20] sm:$0xf]
        %v2049 = vld [vmem:[%s11 + $0x24] sm:$0xf]
        %v2050 = vld [vmem:[%s11 + $0x28] sm:$0xf]
        %v2051 = vld [vmem:[%s11 + $0x2c] sm:$0xf]
        %v2052 = vld [vmem:[%s11 + $0x30] sm:$0xf]
        %v2053 = vld [vmem:[%s11 + $0x34] sm:$0xf]
        %v2054 = vld [vmem:[%s11 + $0x38] sm:$0xf]
        %v2055 = vld [vmem:[%s11 + $0x3c] sm:$0xf]
        %v2056 = vld [vmem:[%s12] sm:$0x1]
        %v2058 = vlaneseq
        %v2059 = vshrl.u32 %v2058, 7
        %v2060 = vsub.s32 0, %v2059
        %v2061 = vrot.slane %v2056, %v2060
        %v2079 = vunpack.c.l.b16 %v2040
        %v2080 = vunpack.c.l.b16 %v2041
        %v2081 = vunpack.c.l.b16 %v2042
        %v2082 = vunpack.c.l.b16 %v2043
        %v2083 = vunpack.c.l.b16 %v2044
        %v2084 = vunpack.c.l.b16 %v2045
        %v2085 = vunpack.c.l.b16 %v2046
        %v2086 = vunpack.c.l.b16 %v2047
        %v2087 = vunpack.c.l.b16 %v2048
        %v2088 = vunpack.c.l.b16 %v2049
        %v2089 = vunpack.c.l.b16 %v2050
        %v2090 = vunpack.c.l.b16 %v2051
        %v2091 = vunpack.c.l.b16 %v2052
        %v2092 = vunpack.c.l.b16 %v2053
        %v2093 = vunpack.c.l.b16 %v2054
        %v2094 = vunpack.c.l.b16 %v2055
        %v2095 = vpack.c.b16 %v2080, %v2079
        %v2096 = vpack.c.b16 %v2082, %v2081
        %v2097 = vpack.c.b16 %v2084, %v2083
        %v2098 = vpack.c.b16 %v2086, %v2085
        %v2099 = vpack.c.b16 %v2088, %v2087
        %v2100 = vpack.c.b16 %v2090, %v2089
        %v2101 = vpack.c.b16 %v2092, %v2091
        %v2102 = vpack.c.b16 %v2094, %v2093
        %2111 = vmatprep.subr.bf16.mxu0 0
        %2112 = vmatpush1.bf16.msra.mxu0 %v2102
        %2113 = vmatprep.subr.bf16.mxu0 0
        %2114 = vmatpush1.bf16.msra.mxu0 %v2101
        %2115 = vmatprep.subr.bf16.mxu0 0
        %2116 = vmatpush1.bf16.msra.mxu0 %v2100
        %2117 = vmatprep.subr.bf16.mxu0 0
        %2118 = vmatpush1.bf16.msra.mxu0 %v2099
        %2119 = vmatprep.subr.bf16.mxu0 0
        %2120 = vmatpush1.bf16.msra.mxu0 %v2098
        %2121 = vmatprep.subr.bf16.mxu0 0
        %2122 = vmatpush1.bf16.msra.mxu0 %v2097
        %2123 = vmatprep.subr.bf16.mxu0 0
        %2124 = vmatpush1.bf16.msra.mxu0 %v2096
        %2125 = vmatprep.subr.bf16.mxu0 0
        %2126 = vmatpush1.bf16.msra.mxu0 %v2095
        %2127 = vmatprep.subr.bf16.mxu0 0
        %2128 = vmatpush2.bf16.msra.mxu0 0
        %2129 = vmatprep.subr.bf16.mxu0 0
        %2130 = vmatpush2.bf16.msra.mxu0 0
        %2131 = vmatprep.subr.bf16.mxu0 0
        %2132 = vmatpush2.bf16.msra.mxu0 0
        %2133 = vmatprep.subr.bf16.mxu0 0
        %2134 = vmatpush2.bf16.msra.mxu0 0
        %2135 = vmatprep.subr.bf16.mxu0 0
        %2136 = vmatpush2.bf16.msra.mxu0 0
        %2137 = vmatprep.subr.bf16.mxu0 0
        %2138 = vmatpush2.bf16.msra.mxu0 0
        %2139 = vmatprep.subr.bf16.mxu0 0
        %2140 = vmatpush2.bf16.msra.mxu0 0
        %2141 = vmatprep.subr.bf16.mxu0 0
        %2142 = vmatpush2.bf16.msra.mxu0 0
        %2143 = vmatprep.mubr.bf16.mxu0 0
        %2144 = vmatmul.mubr.bf16.gmra.mxu0 %v2024
        %v2145 = vpop.f32.mrf.mxu0
        %v2146 = vadd.f32 %v2061, %v2145
        %v2147 = vpop.f32.mrf.mxu0
        %v2148 = vpop.f32.mrf.mxu0
        %v2149 = vadd.f32 %v2061, %v2148
        %v2150 = vpop.f32.mrf.mxu0
        %2151 = vmatprep.mubr.bf16.mxu0 0
        %2152 = vmatmul.mubr.bf16.gmra.mxu0 %v2025
        %v2153 = vpop.f32.mrf.mxu0
        %v2154 = vadd.f32 %v2061, %v2153
        %v2155 = vpop.f32.mrf.mxu0
        %v2156 = vpop.f32.mrf.mxu0
        %v2157 = vadd.f32 %v2061, %v2156
        %v2158 = vpop.f32.mrf.mxu0
        %2159 = vmatprep.mubr.bf16.mxu0 0
        %2160 = vmatmul.mubr.bf16.gmra.mxu0 %v2026
        %v2161 = vpop.f32.mrf.mxu0
        %v2162 = vadd.f32 %v2061, %v2161
        %v2163 = vpop.f32.mrf.mxu0
        %v2164 = vpop.f32.mrf.mxu0
        %v2165 = vadd.f32 %v2061, %v2164
        %v2166 = vpop.f32.mrf.mxu0
        %2167 = vmatprep.mubr.bf16.mxu0 0
        %2168 = vmatmul.mubr.bf16.gmra.mxu0 %v2027
        %v2169 = vpop.f32.mrf.mxu0
        %v2170 = vadd.f32 %v2061, %v2169
        %v2171 = vpop.f32.mrf.mxu0
        %v2172 = vpop.f32.mrf.mxu0
        %v2173 = vadd.f32 %v2061, %v2172
        %v2174 = vpop.f32.mrf.mxu0
        %2175 = vmatprep.mubr.bf16.mxu0 0
        %2176 = vmatmul.mubr.bf16.gmra.mxu0 %v2028
        %v2177 = vpop.f32.mrf.mxu0
        %v2178 = vadd.f32 %v2061, %v2177
        %v2179 = vpop.f32.mrf.mxu0
        %v2180 = vpop.f32.mrf.mxu0
        %v2181 = vadd.f32 %v2061, %v2180
        %v2182 = vpop.f32.mrf.mxu0
        %2183 = vmatprep.mubr.bf16.mxu0 0
        %2184 = vmatmul.mubr.bf16.gmra.mxu0 %v2029
        %v2185 = vpop.f32.mrf.mxu0
        %v2186 = vadd.f32 %v2061, %v2185
        %v2187 = vpop.f32.mrf.mxu0
        %v2188 = vpop.f32.mrf.mxu0
        %v2189 = vadd.f32 %v2061, %v2188
        %v2190 = vpop.f32.mrf.mxu0
        %2191 = vmatprep.mubr.bf16.mxu0 0
        %2192 = vmatmul.mubr.bf16.gmra.mxu0 %v2030
        %v2193 = vpop.f32.mrf.mxu0
        %v2194 = vadd.f32 %v2061, %v2193
        %v2195 = vpop.f32.mrf.mxu0
        %v2196 = vpop.f32.mrf.mxu0
        %v2197 = vadd.f32 %v2061, %v2196
        %v2198 = vpop.f32.mrf.mxu0
        %2199 = vmatprep.mubr.bf16.mxu0 0
        %2200 = vmatmul.mubr.bf16.gmra.mxu0 %v2031
        %v2201 = vpop.f32.mrf.mxu0
        %v2202 = vadd.f32 %v2061, %v2201
        %v2203 = vpop.f32.mrf.mxu0
        %v2204 = vpop.f32.mrf.mxu0
        %v2205 = vadd.f32 %v2061, %v2204
        %v2206 = vpop.f32.mrf.mxu0
        %2207 = vmatprep.mubr.bf16.mxu0 0
        %2208 = vmatmul.mubr.bf16.gmra.mxu0 %v2032
        %v2209 = vpop.f32.mrf.mxu0
        %v2210 = vadd.f32 %v2061, %v2209
        %v2211 = vpop.f32.mrf.mxu0
        %v2212 = vpop.f32.mrf.mxu0
        %v2213 = vadd.f32 %v2061, %v2212
        %v2214 = vpop.f32.mrf.mxu0
        %2215 = vmatprep.mubr.bf16.mxu0 0
        %2216 = vmatmul.mubr.bf16.gmra.mxu0 %v2033
        %v2217 = vpop.f32.mrf.mxu0
        %v2218 = vadd.f32 %v2061, %v2217
        %v2219 = vpop.f32.mrf.mxu0
        %v2220 = vpop.f32.mrf.mxu0
        %v2221 = vadd.f32 %v2061, %v2220
        %v2222 = vpop.f32.mrf.mxu0
        %2223 = vmatprep.mubr.bf16.mxu0 0
        %2224 = vmatmul.mubr.bf16.gmra.mxu0 %v2034
        %v2225 = vpop.f32.mrf.mxu0
        %v2226 = vadd.f32 %v2061, %v2225
        %v2227 = vpop.f32.mrf.mxu0
        %v2228 = vpop.f32.mrf.mxu0
        %v2229 = vadd.f32 %v2061, %v2228
        %v2230 = vpop.f32.mrf.mxu0
        %2231 = vmatprep.mubr.bf16.mxu0 0
        %2232 = vmatmul.mubr.bf16.gmra.mxu0 %v2035
        %v2233 = vpop.f32.mrf.mxu0
        %v2234 = vadd.f32 %v2061, %v2233
        %v2235 = vpop.f32.mrf.mxu0
        %v2236 = vpop.f32.mrf.mxu0
        %v2237 = vadd.f32 %v2061, %v2236
        %v2238 = vpop.f32.mrf.mxu0
        %2239 = vmatprep.mubr.bf16.mxu0 0
        %2240 = vmatmul.mubr.bf16.gmra.mxu0 %v2036
        %v2241 = vpop.f32.mrf.mxu0
        %v2242 = vadd.f32 %v2061, %v2241
        %v2243 = vpop.f32.mrf.mxu0
        %v2244 = vpop.f32.mrf.mxu0
        %v2245 = vadd.f32 %v2061, %v2244
        %v2246 = vpop.f32.mrf.mxu0
        %2247 = vmatprep.mubr.bf16.mxu0 0
        %2248 = vmatmul.mubr.bf16.gmra.mxu0 %v2037
        %v2249 = vpop.f32.mrf.mxu0
        %v2250 = vadd.f32 %v2061, %v2249
        %v2251 = vpop.f32.mrf.mxu0
        %v2252 = vpop.f32.mrf.mxu0
        %v2253 = vadd.f32 %v2061, %v2252
        %v2254 = vpop.f32.mrf.mxu0
        %2255 = vmatprep.mubr.bf16.mxu0 0
        %2256 = vmatmul.mubr.bf16.gmra.mxu0 %v2038
        %v2257 = vpop.f32.mrf.mxu0
        %v2258 = vadd.f32 %v2061, %v2257
        %v2259 = vpop.f32.mrf.mxu0
        %v2260 = vpop.f32.mrf.mxu0
        %v2261 = vadd.f32 %v2061, %v2260
        %v2262 = vpop.f32.mrf.mxu0
        %2263 = vmatprep.mubr.bf16.mxu0 0
        %2264 = vmatmul.mubr.bf16.gmra.mxu0 %v2039
        %v2265 = vpop.f32.mrf.mxu0
        %v2266 = vadd.f32 %v2061, %v2265
        %v2267 = vpop.f32.mrf.mxu0
        %v2268 = vpop.f32.mrf.mxu0
        %v2269 = vadd.f32 %v2061, %v2268
        %v2270 = vpop.f32.mrf.mxu0
        %2271 = vdwg.mxu0
        %v2272 = vmax.f32 %v2146, 0.0
        %v2273 = vmax.f32 %v2149, 0.0
        %v2274 = vmax.f32 %v2154, 0.0
        %v2275 = vmax.f32 %v2157, 0.0
        %v2276 = vmax.f32 %v2162, 0.0
        %v2277 = vmax.f32 %v2165, 0.0
        %v2278 = vmax.f32 %v2170, 0.0
        %v2279 = vmax.f32 %v2173, 0.0
        %v2280 = vmax.f32 %v2178, 0.0
        %v2281 = vmax.f32 %v2181, 0.0
        %v2282 = vmax.f32 %v2186, 0.0
        %v2283 = vmax.f32 %v2189, 0.0
        %v2284 = vmax.f32 %v2194, 0.0
        %v2285 = vmax.f32 %v2197, 0.0
        %v2286 = vmax.f32 %v2202, 0.0
        %v2287 = vmax.f32 %v2205, 0.0
        %v2288 = vmax.f32 %v2210, 0.0
        %v2289 = vmax.f32 %v2213, 0.0
        %v2290 = vmax.f32 %v2218, 0.0
        %v2291 = vmax.f32 %v2221, 0.0
        %v2292 = vmax.f32 %v2226, 0.0
        %v2293 = vmax.f32 %v2229, 0.0
        %v2294 = vmax.f32 %v2234, 0.0
        %v2295 = vmax.f32 %v2237, 0.0
        %v2296 = vmax.f32 %v2242, 0.0
        %v2297 = vmax.f32 %v2245, 0.0
        %v2298 = vmax.f32 %v2250, 0.0
        %v2299 = vmax.f32 %v2253, 0.0
        %v2300 = vmax.f32 %v2258, 0.0
        %v2301 = vmax.f32 %v2261, 0.0
        %v2302 = vmax.f32 %v2266, 0.0
        %v2303 = vmax.f32 %v2269, 0.0
        %v2304 = vpack.c.bf16 %v2273, %v2272
        %v2305 = vpack.c.bf16 %v2275, %v2274
        %v2306 = vpack.c.bf16 %v2277, %v2276
        %v2307 = vpack.c.bf16 %v2279, %v2278
        %v2308 = vpack.c.bf16 %v2281, %v2280
        %v2309 = vpack.c.bf16 %v2283, %v2282
        %v2310 = vpack.c.bf16 %v2285, %v2284
        %v2311 = vpack.c.bf16 %v2287, %v2286
        %v2312 = vpack.c.bf16 %v2289, %v2288
        %v2313 = vpack.c.bf16 %v2291, %v2290
        %v2314 = vpack.c.bf16 %v2293, %v2292
        %v2315 = vpack.c.bf16 %v2295, %v2294
        %v2316 = vpack.c.bf16 %v2297, %v2296
        %v2317 = vpack.c.bf16 %v2299, %v2298
        %v2318 = vpack.c.bf16 %v2301, %v2300
        %v2319 = vpack.c.bf16 %v2303, %v2302
        %v2320 = vld [vmem:[#allocation5] sm:$0xf]
        %v2321 = vld [vmem:[#allocation5 + $0x4] sm:$0xf]
        %v2322 = vld [vmem:[#allocation5 + $0x8] sm:$0xf]
        %v2323 = vld [vmem:[#allocation5 + $0xc] sm:$0xf]
        %v2324 = vld [vmem:[#allocation5 + $0x10] sm:$0xf]
        %v2325 = vld [vmem:[#allocation5 + $0x14] sm:$0xf]
        %v2326 = vld [vmem:[#allocation5 + $0x18] sm:$0xf]
        %v2327 = vld [vmem:[#allocation5 + $0x1c] sm:$0xf]
        %v2328 = vld [vmem:[#allocation5 + $0x20] sm:$0xf]
        %v2329 = vld [vmem:[#allocation5 + $0x24] sm:$0xf]
        %v2330 = vld [vmem:[#allocation5 + $0x28] sm:$0xf]
        %v2331 = vld [vmem:[#allocation5 + $0x2c] sm:$0xf]
        %v2332 = vld [vmem:[#allocation5 + $0x30] sm:$0xf]
        %v2333 = vld [vmem:[#allocation5 + $0x34] sm:$0xf]
        %v2334 = vld [vmem:[#allocation5 + $0x38] sm:$0xf]
        %v2335 = vld [vmem:[#allocation5 + $0x3c] sm:$0xf]
        %v2336 = vld [vmem:[%s14] sm:$0x1]
        %v2338 = vlaneseq
        %v2339 = vshrl.u32 %v2338, 7
        %v2340 = vsub.s32 0, %v2339
        %v2341 = vrot.slane %v2336, %v2340
        %v2359 = vunpack.c.l.b16 %v2320
        %v2360 = vunpack.c.l.b16 %v2321
        %v2361 = vunpack.c.l.b16 %v2322
        %v2362 = vunpack.c.l.b16 %v2323
        %v2363 = vunpack.c.l.b16 %v2324
        %v2364 = vunpack.c.l.b16 %v2325
        %v2365 = vunpack.c.l.b16 %v2326
        %v2366 = vunpack.c.l.b16 %v2327
        %v2367 = vunpack.c.l.b16 %v2328
        %v2368 = vunpack.c.l.b16 %v2329
        %v2369 = vunpack.c.l.b16 %v2330
        %v2370 = vunpack.c.l.b16 %v2331
        %v2371 = vunpack.c.l.b16 %v2332
        %v2372 = vunpack.c.l.b16 %v2333
        %v2373 = vunpack.c.l.b16 %v2334
        %v2374 = vunpack.c.l.b16 %v2335
        %v2375 = vpack.c.b16 %v2360, %v2359
        %v2376 = vpack.c.b16 %v2362, %v2361
        %v2377 = vpack.c.b16 %v2364, %v2363
        %v2378 = vpack.c.b16 %v2366, %v2365
        %v2379 = vpack.c.b16 %v2368, %v2367
        %v2380 = vpack.c.b16 %v2370, %v2369
        %v2381 = vpack.c.b16 %v2372, %v2371
        %v2382 = vpack.c.b16 %v2374, %v2373
        %2391 = vmatprep.subr.bf16.mxu0 0
        %2392 = vmatpush1.bf16.msra.mxu0 %v2382
        %2393 = vmatprep.subr.bf16.mxu0 0
        %2394 = vmatpush1.bf16.msra.mxu0 %v2381
        %2395 = vmatprep.subr.bf16.mxu0 0
        %2396 = vmatpush1.bf16.msra.mxu0 %v2380
        %2397 = vmatprep.subr.bf16.mxu0 0
        %2398 = vmatpush1.bf16.msra.mxu0 %v2379
        %2399 = vmatprep.subr.bf16.mxu0 0
        %2400 = vmatpush1.bf16.msra.mxu0 %v2378
        %2401 = vmatprep.subr.bf16.mxu0 0
        %2402 = vmatpush1.bf16.msra.mxu0 %v2377
        %2403 = vmatprep.subr.bf16.mxu0 0
        %2404 = vmatpush1.bf16.msra.mxu0 %v2376
        %2405 = vmatprep.subr.bf16.mxu0 0
        %2406 = vmatpush1.bf16.msra.mxu0 %v2375
        %2407 = vmatprep.subr.bf16.mxu0 0
        %2408 = vmatpush2.bf16.msra.mxu0 0
        %2409 = vmatprep.subr.bf16.mxu0 0
        %2410 = vmatpush2.bf16.msra.mxu0 0
        %2411 = vmatprep.subr.bf16.mxu0 0
        %2412 = vmatpush2.bf16.msra.mxu0 0
        %2413 = vmatprep.subr.bf16.mxu0 0
        %2414 = vmatpush2.bf16.msra.mxu0 0
        %2415 = vmatprep.subr.bf16.mxu0 0
        %2416 = vmatpush2.bf16.msra.mxu0 0
        %2417 = vmatprep.subr.bf16.mxu0 0
        %2418 = vmatpush2.bf16.msra.mxu0 0
        %2419 = vmatprep.subr.bf16.mxu0 0
        %2420 = vmatpush2.bf16.msra.mxu0 0
        %2421 = vmatprep.subr.bf16.mxu0 0
        %2422 = vmatpush2.bf16.msra.mxu0 0
        %2423 = vmatprep.mubr.bf16.mxu0 0
        %2424 = vmatmul.mubr.bf16.gmra.mxu0 %v2304
        %v2425 = vpop.f32.mrf.mxu0
        %v2426 = vadd.f32 %v2341, %v2425
        %v2427 = vpop.f32.mrf.mxu0
        %v2428 = vpop.f32.mrf.mxu0
        %v2429 = vadd.f32 %v2341, %v2428
        %v2430 = vpop.f32.mrf.mxu0
        %2431 = vmatprep.mubr.bf16.mxu0 0
        %2432 = vmatmul.mubr.bf16.gmra.mxu0 %v2305
        %v2433 = vpop.f32.mrf.mxu0
        %v2434 = vadd.f32 %v2341, %v2433
        %v2435 = vpop.f32.mrf.mxu0
        %v2436 = vpop.f32.mrf.mxu0
        %v2437 = vadd.f32 %v2341, %v2436
        %v2438 = vpop.f32.mrf.mxu0
        %2439 = vmatprep.mubr.bf16.mxu0 0
        %2440 = vmatmul.mubr.bf16.gmra.mxu0 %v2306
        %v2441 = vpop.f32.mrf.mxu0
        %v2442 = vadd.f32 %v2341, %v2441
        %v2443 = vpop.f32.mrf.mxu0
        %v2444 = vpop.f32.mrf.mxu0
        %v2445 = vadd.f32 %v2341, %v2444
        %v2446 = vpop.f32.mrf.mxu0
        %2447 = vmatprep.mubr.bf16.mxu0 0
        %2448 = vmatmul.mubr.bf16.gmra.mxu0 %v2307
        %v2449 = vpop.f32.mrf.mxu0
        %v2450 = vadd.f32 %v2341, %v2449
        %v2451 = vpop.f32.mrf.mxu0
        %v2452 = vpop.f32.mrf.mxu0
        %v2453 = vadd.f32 %v2341, %v2452
        %v2454 = vpop.f32.mrf.mxu0
        %2455 = vmatprep.mubr.bf16.mxu0 0
        %2456 = vmatmul.mubr.bf16.gmra.mxu0 %v2308
        %v2457 = vpop.f32.mrf.mxu0
        %v2458 = vadd.f32 %v2341, %v2457
        %v2459 = vpop.f32.mrf.mxu0
        %v2460 = vpop.f32.mrf.mxu0
        %v2461 = vadd.f32 %v2341, %v2460
        %v2462 = vpop.f32.mrf.mxu0
        %2463 = vmatprep.mubr.bf16.mxu0 0
        %2464 = vmatmul.mubr.bf16.gmra.mxu0 %v2309
        %v2465 = vpop.f32.mrf.mxu0
        %v2466 = vadd.f32 %v2341, %v2465
        %v2467 = vpop.f32.mrf.mxu0
        %v2468 = vpop.f32.mrf.mxu0
        %v2469 = vadd.f32 %v2341, %v2468
        %v2470 = vpop.f32.mrf.mxu0
        %2471 = vmatprep.mubr.bf16.mxu0 0
        %2472 = vmatmul.mubr.bf16.gmra.mxu0 %v2310
        %v2473 = vpop.f32.mrf.mxu0
        %v2474 = vadd.f32 %v2341, %v2473
        %v2475 = vpop.f32.mrf.mxu0
        %v2476 = vpop.f32.mrf.mxu0
        %v2477 = vadd.f32 %v2341, %v2476
        %v2478 = vpop.f32.mrf.mxu0
        %2479 = vmatprep.mubr.bf16.mxu0 0
        %2480 = vmatmul.mubr.bf16.gmra.mxu0 %v2311
        %v2481 = vpop.f32.mrf.mxu0
        %v2482 = vadd.f32 %v2341, %v2481
        %v2483 = vpop.f32.mrf.mxu0
        %v2484 = vpop.f32.mrf.mxu0
        %v2485 = vadd.f32 %v2341, %v2484
        %v2486 = vpop.f32.mrf.mxu0
        %2487 = vmatprep.mubr.bf16.mxu0 0
        %2488 = vmatmul.mubr.bf16.gmra.mxu0 %v2312
        %v2489 = vpop.f32.mrf.mxu0
        %v2490 = vadd.f32 %v2341, %v2489
        %v2491 = vpop.f32.mrf.mxu0
        %v2492 = vpop.f32.mrf.mxu0
        %v2493 = vadd.f32 %v2341, %v2492
        %v2494 = vpop.f32.mrf.mxu0
        %2495 = vmatprep.mubr.bf16.mxu0 0
        %2496 = vmatmul.mubr.bf16.gmra.mxu0 %v2313
        %v2497 = vpop.f32.mrf.mxu0
        %v2498 = vadd.f32 %v2341, %v2497
        %v2499 = vpop.f32.mrf.mxu0
        %v2500 = vpop.f32.mrf.mxu0
        %v2501 = vadd.f32 %v2341, %v2500
        %v2502 = vpop.f32.mrf.mxu0
        %2503 = vmatprep.mubr.bf16.mxu0 0
        %2504 = vmatmul.mubr.bf16.gmra.mxu0 %v2314
        %v2505 = vpop.f32.mrf.mxu0
        %v2506 = vadd.f32 %v2341, %v2505
        %v2507 = vpop.f32.mrf.mxu0
        %v2508 = vpop.f32.mrf.mxu0
        %v2509 = vadd.f32 %v2341, %v2508
        %v2510 = vpop.f32.mrf.mxu0
        %2511 = vmatprep.mubr.bf16.mxu0 0
        %2512 = vmatmul.mubr.bf16.gmra.mxu0 %v2315
        %v2513 = vpop.f32.mrf.mxu0
        %v2514 = vadd.f32 %v2341, %v2513
        %v2515 = vpop.f32.mrf.mxu0
        %v2516 = vpop.f32.mrf.mxu0
        %v2517 = vadd.f32 %v2341, %v2516
        %v2518 = vpop.f32.mrf.mxu0
        %2519 = vmatprep.mubr.bf16.mxu0 0
        %2520 = vmatmul.mubr.bf16.gmra.mxu0 %v2316
        %v2521 = vpop.f32.mrf.mxu0
        %v2522 = vadd.f32 %v2341, %v2521
        %v2523 = vpop.f32.mrf.mxu0
        %v2524 = vpop.f32.mrf.mxu0
        %v2525 = vadd.f32 %v2341, %v2524
        %v2526 = vpop.f32.mrf.mxu0
        %2527 = vmatprep.mubr.bf16.mxu0 0
        %2528 = vmatmul.mubr.bf16.gmra.mxu0 %v2317
        %v2529 = vpop.f32.mrf.mxu0
        %v2530 = vadd.f32 %v2341, %v2529
        %v2531 = vpop.f32.mrf.mxu0
        %v2532 = vpop.f32.mrf.mxu0
        %v2533 = vadd.f32 %v2341, %v2532
        %v2534 = vpop.f32.mrf.mxu0
        %2535 = vmatprep.mubr.bf16.mxu0 0
        %2536 = vmatmul.mubr.bf16.gmra.mxu0 %v2318
        %v2537 = vpop.f32.mrf.mxu0
        %v2538 = vadd.f32 %v2341, %v2537
        %v2539 = vpop.f32.mrf.mxu0
        %v2540 = vpop.f32.mrf.mxu0
        %v2541 = vadd.f32 %v2341, %v2540
        %v2542 = vpop.f32.mrf.mxu0
        %2543 = vmatprep.mubr.bf16.mxu0 0
        %2544 = vmatmul.mubr.bf16.gmra.mxu0 %v2319
        %v2545 = vpop.f32.mrf.mxu0
        %v2546 = vadd.f32 %v2341, %v2545
        %v2547 = vpop.f32.mrf.mxu0
        %v2548 = vpop.f32.mrf.mxu0
        %v2549 = vadd.f32 %v2341, %v2548
        %v2550 = vpop.f32.mrf.mxu0
        %2551 = vdwg.mxu0
        %2552 = vst [vmem:[%s518] sm:$0xff] %v2426
        %2553 = vst [vmem:[%s518 + $0x8] sm:$0xff] %v2429
        %2554 = vst [vmem:[%s518 + $0x10] sm:$0xff] %v2434
        %2555 = vst [vmem:[%s518 + $0x18] sm:$0xff] %v2437
        %2556 = vst [vmem:[%s518 + $0x20] sm:$0xff] %v2442
        %2557 = vst [vmem:[%s518 + $0x28] sm:$0xff] %v2445
        %2558 = vst [vmem:[%s518 + $0x30] sm:$0xff] %v2450
        %2559 = vst [vmem:[%s518 + $0x38] sm:$0xff] %v2453
        %2560 = vst [vmem:[%s518 + $0x40] sm:$0xff] %v2458
        %2561 = vst [vmem:[%s518 + $0x48] sm:$0xff] %v2461
        %2562 = vst [vmem:[%s518 + $0x50] sm:$0xff] %v2466
        %2563 = vst [vmem:[%s518 + $0x58] sm:$0xff] %v2469
        %2564 = vst [vmem:[%s518 + $0x60] sm:$0xff] %v2474
        %2565 = vst [vmem:[%s518 + $0x68] sm:$0xff] %v2477
        %2566 = vst [vmem:[%s518 + $0x70] sm:$0xff] %v2482
        %2567 = vst [vmem:[%s518 + $0x78] sm:$0xff] %v2485
        %2568 = vst [vmem:[%s518 + $0x80] sm:$0xff] %v2490
        %2569 = vst [vmem:[%s518 + $0x88] sm:$0xff] %v2493
        %2570 = vst [vmem:[%s518 + $0x90] sm:$0xff] %v2498
        %2571 = vst [vmem:[%s518 + $0x98] sm:$0xff] %v2501
        %2572 = vst [vmem:[%s518 + $0xa0] sm:$0xff] %v2506
        %2573 = vst [vmem:[%s518 + $0xa8] sm:$0xff] %v2509
        %2574 = vst [vmem:[%s518 + $0xb0] sm:$0xff] %v2514
        %2575 = vst [vmem:[%s518 + $0xb8] sm:$0xff] %v2517
        %2576 = vst [vmem:[%s518 + $0xc0] sm:$0xff] %v2522
        %2577 = vst [vmem:[%s518 + $0xc8] sm:$0xff] %v2525
        %2578 = vst [vmem:[%s518 + $0xd0] sm:$0xff] %v2530
        %2579 = vst [vmem:[%s518 + $0xd8] sm:$0xff] %v2533
        %2580 = vst [vmem:[%s518 + $0xe0] sm:$0xff] %v2538
        %2581 = vst [vmem:[%s518 + $0xe8] sm:$0xff] %v2541
        %2582 = vst [vmem:[%s518 + $0xf0] sm:$0xff] %v2546
        %2583 = vst [vmem:[%s518 + $0xf8] sm:$0xff] %v2549
        %s2584 = sand.u32 %s359, 1
        %s2585 = scalar_lea.sflag [#allocation4], %s2584
        %s2586 = sand.u32 %s359, 1
        %s2587 = smul.addr %s2586, 256
        %s2588 = scalar_lea.vmem [#allocation7], %s2587
        // Predicated region
        $region89: #{tpu_custom_call.1} parent=79 // pred_check
          %p2589 = pneg %p369
        $region90: #{tpu_custom_call.1} parent=79 // pred_check_branch
          %2591 = sbr.rel (%p2589) target = $region92
        $region91: #{tpu_custom_call.1} parent=79 // pred_region
          %s2592 = smul.u32 32, %s31
          %s2594 = ssub.s32 4096, 4096
          %2595 = vsyncadd %s2585, %s2594
          %s2596 = smul.addr %s2592, 128
          %s2597 = scalar_lea.hbm %s15, %s2596
          %s2598 = sshll.u32 %s2588, 4
          %s2599 = int_to_ptr.vmem [resolvable:$true] %s2598
          %2604 = dma.vmem_to_hbm [thread:$0]  %s2599, 4096, %s2597, %s2585, 128, 128, 8
        $region92: #{tpu_custom_call.1} parent=79 // pred_fallthru
          _
      $region80: #{tpu_custom_call.1} parent=5 // pred_fallthru
        _
      %p2605 = scmp.le.s32.totalorder 2, %s26
      // Predicated region
      $region93: #{tpu_custom_call.1} parent=5 // pred_check
        %p2606 = pneg %p2605
      $region94: #{tpu_custom_call.1} parent=5 // pred_check_branch
        %2608 = sbr.rel (%p2606) target = $region96
      $region95: #{tpu_custom_call.1} parent=5 // pred_region
        %s2609 = ssub.s32 %s26, 2
        // Predicated region
        $region97: #{tpu_custom_call.1} parent=95 // pred_check
          %p2610 = pneg %p375
        $region98: #{tpu_custom_call.1} parent=95 // pred_check_branch
          %2612 = sbr.rel (%p2610) target = $region100
        $region99: #{tpu_custom_call.1} parent=95 // pred_region
          %s2613 = sand.u32 %s360, 1
          %s2614 = scalar_lea.sflag [#allocation4], %s2613
          %s2615 = sand.u32 %s360, 1
          %s2616 = smul.addr %s2615, 256
          %s2617 = scalar_lea.vmem [#allocation7], %s2616
          %2618 = dma.done %s2614, 4096
        $region100: #{tpu_custom_call.1} parent=95 // pred_fallthru
          _
      $region96: #{tpu_custom_call.1} parent=5 // pred_fallthru
        _
    $region6: #{tpu_custom_call.1} parent=1 // loop_footer
      %s30 = sadd.s32 1, %s26
    $region7: #{tpu_custom_call.1} parent=1 // loop_footer_branch
      %25 = sbr.rel target = $region3
    $region8: #{tpu_custom_call.1} parent=1 // loop_exit
      _
    %2619 = vsyncpa [#allocation3], 1
    %s2620 = scalar_lea.sflag [#allocation3], 1
    %2621 = vsyncpa %s2620, 1
    %2622 = vsyncpa [#allocation6], 1
    %2623 = vsyncpa [#allocation4], 1
    %s2624 = scalar_lea.sflag [#allocation4], 1
    %2625 = vsyncpa %s2624, 1

</llo_original>
